<compile_context>
chip_gen: v7x
topology: tpu7x:2x2x1
jax: 0.10.0
libtpu: 0.0.40
codegen_flags: <defaults>
</compile_context>

<pallas_src>
import jax
import jax.numpy as jnp
from jax import lax
from jax.experimental import pallas as pl
from jax.experimental.pallas import tpu as pltpu


def _basic_block_kernel(x_ref, w1_ref, w2_ref, s1_ref, b1_ref, s2_ref, b2_ref,
                        o_ref):
    _, H, W, Cp = x_ref.shape
    HW = H * W

    # Flatten to a lane-dense (H*W, Cp) matrix (minor dim = Cp = k*128).
    x = x_ref[...].reshape(HW, Cp)

    # Boundary masks (shared by both convs).  Built via iota, no integer rem.
    row = lax.broadcasted_iota(jnp.int32, (HW, Cp), 0)
    col = lax.broadcasted_iota(jnp.int32, (H, W, Cp), 1).reshape(HW, Cp)
    not_first_col = col > 0
    not_last_col = col < (W - 1)
    not_first_row = row >= W
    not_last_row = row < (HW - W)

    def conv3x3(t, w_ref):
        # t: (HW, Cp) f32.  w_ref: (3*Cp, 3*Cp) bf16 packed as
        #   w_big[kx*Cp + ci, ky*Cp + co] = w[ky, kx, ci, co].
        # x-neighbours via XLU sublane rotations + masks (no padded scratch).
        t_xm1 = jnp.where(not_first_col, pltpu.roll(t, 1, axis=0), 0.0)
        t_xp1 = jnp.where(not_last_col, pltpu.roll(t, HW - 1, axis=0), 0.0)
        patch = jnp.concatenate([t_xm1, t, t_xp1], axis=1)        # (HW, 3Cp)
        # Single MXU matmul per conv, bf16 operands, f32 accumulation.
        r = jnp.dot(patch.astype(jnp.bfloat16), w_ref[...],
                    preferred_element_type=jnp.float32)           # (HW, 3Cp)
        # Combine the three ky row-offsets: shift by one image row (= W flat
        # rows, a multiple of 8 -> aligned sublane rotate).
        acc = r[:, Cp:2 * Cp]                                     # ky = 1
        acc = acc + jnp.where(not_first_row,
                              pltpu.roll(r[:, :Cp], W, axis=0), 0.0)      # ky=0
        acc = acc + jnp.where(not_last_row,
                              pltpu.roll(r[:, 2 * Cp:], HW - W, axis=0), 0.0)  # ky=2
        return acc                                                # (HW, Cp) f32

    # BN1 (folded, eval mode) + ReLU   (f32 elementwise)
    t1 = jnp.maximum(x * s1_ref[...] + b1_ref[...], 0.0)
    y1 = conv3x3(t1, w1_ref)
    # BN2 + ReLU
    t2 = jnp.maximum(y1 * s2_ref[...] + b2_ref[...], 0.0)
    y2 = conv3x3(t2, w2_ref)
    # Residual (stride=1, downsample=None -> identity shortcut).
    o_ref[...] = (y2 + x).reshape(1, H, W, Cp).astype(o_ref.dtype)


def basic_block_forward(x_nchw, params, eps=1e-5):
    """x_nchw: (N, C, H, W) float32 (PyTorch layout). Returns same layout."""
    x = jnp.transpose(x_nchw, (0, 2, 3, 1)).astype(jnp.float32)   # -> NHWC
    N, H, W, C = x.shape
    Cp = ((C + 127) // 128) * 128                                 # lane-dense pad

    def pad_ch(a, axes):
        pads = [(0, 0)] * a.ndim
        for ax in axes:
            pads[ax] = (0, Cp - a.shape[ax])
        return jnp.pad(a, pads)

    xp = pad_ch(x, [3])                                           # (N,H,W,Cp)

    def pack_w(w):  # (3,3,C,C) HWIO -> (3*Cp, 3*Cp) bf16, [kx*Cp+ci, ky*Cp+co]
        wp = pad_ch(w.astype(jnp.float32), [2, 3])                # (3,3,Cp,Cp)
        return (jnp.transpose(wp, (1, 2, 0, 3))
                .reshape(3 * Cp, 3 * Cp).astype(jnp.bfloat16))

    w1 = pack_w(params["conv1_w"])
    w2 = pack_w(params["conv2_w"])

    def fold_bn(g, b, m, v):  # eval-mode BN folded into per-channel scale/bias
        sc = g / jnp.sqrt(v + eps)
        bi = b - m * sc
        return pad_ch(sc.reshape(1, C), [1]), pad_ch(bi.reshape(1, C), [1])

    s1, b1 = fold_bn(params["bn1_gamma"], params["bn1_beta"],
                     params["bn1_mean"], params["bn1_var"])
    s2, b2 = fold_bn(params["bn2_gamma"], params["bn2_beta"],
                     params["bn2_mean"], params["bn2_var"])

    flops = 4 * N * H * W * 9 * Cp * Cp                           # 2 convs, 2 flop/MAC
    bytes_accessed = (int(xp.size) * 4 + N * H * W * Cp * 4
                      + int(w1.size) * 2 + int(w2.size) * 2 + 4 * Cp * 4)

    out = pl.pallas_call(
        _basic_block_kernel,
        out_shape=jax.ShapeDtypeStruct((N, H, W, Cp), jnp.float32),
        grid=(N,),
        in_specs=[
            pl.BlockSpec((1, H, W, Cp), lambda n: (n, 0, 0, 0)),
            pl.BlockSpec((3 * Cp, 3 * Cp), lambda n: (0, 0)),
            pl.BlockSpec((3 * Cp, 3 * Cp), lambda n: (0, 0)),
            pl.BlockSpec((1, Cp), lambda n: (0, 0)),
            pl.BlockSpec((1, Cp), lambda n: (0, 0)),
            pl.BlockSpec((1, Cp), lambda n: (0, 0)),
            pl.BlockSpec((1, Cp), lambda n: (0, 0)),
        ],
        out_specs=pl.BlockSpec((1, H, W, Cp), lambda n: (n, 0, 0, 0)),
        compiler_params=pltpu.CompilerParams(
            dimension_semantics=("parallel",)),   # 2x on v7x (2 TCs), neutral elsewhere
        cost_estimate=pl.CostEstimate(flops=flops, transcendentals=0,
                                      bytes_accessed=bytes_accessed),
    )(xp, w1, w2, s1, b1, s2, b2)

    out = out[..., :C]                                            # drop channel pad
    return jnp.transpose(out, (0, 3, 1, 2))                       # -> NCHW


def reference_forward(x, params, eps=1e-5):
    """Pure-JAX reference in NCHW (mirrors the PyTorch forward, eval-mode BN)."""
    def bn(v, g, b, m, var):
        return (g[None, :, None, None] * (v - m[None, :, None, None])
                / jnp.sqrt(var[None, :, None, None] + eps)
                + b[None, :, None, None])

    w1 = jnp.transpose(params["conv1_w"], (3, 2, 0, 1))   # HWIO -> OIHW
    w2 = jnp.transpose(params["conv2_w"], (3, 2, 0, 1))
    t = jax.nn.relu(bn(x, params["bn1_gamma"], params["bn1_beta"],
                       params["bn1_mean"], params["bn1_var"]))
    t = lax.conv_general_dilated(t, w1, (1, 1), ((1, 1), (1, 1)),
                                 dimension_numbers=("NCHW", "OIHW", "NCHW"),
                                 precision=lax.Precision.HIGHEST)
    t = jax.nn.relu(bn(t, params["bn2_gamma"], params["bn2_beta"],
                       params["bn2_mean"], params["bn2_var"]))
    t = lax.conv_general_dilated(t, w2, (1, 1), ((1, 1), (1, 1)),
                                 dimension_numbers=("NCHW", "OIHW", "NCHW"),
                                 precision=lax.Precision.HIGHEST)
    return t + x


if __name__ == "__main__":
    # One residual block of layer1: BasicBlock(64, 64, stride=1, downsample=None)
    N, C, H, W = 2, 64, 16, 16
    key = jax.random.PRNGKey(0)
    ks = jax.random.split(key, 11)

    x = jax.random.normal(ks[0], (N, C, H, W), jnp.float32)
    params = dict(
        conv1_w=jax.random.normal(ks[1], (3, 3, C, C), jnp.float32) * 0.1,
        conv2_w=jax.random.normal(ks[2], (3, 3, C, C), jnp.float32) * 0.1,
        bn1_gamma=1.0 + 0.1 * jax.random.normal(ks[3], (C,), jnp.float32),
        bn1_beta=0.1 * jax.random.normal(ks[4], (C,), jnp.float32),
        bn1_mean=0.1 * jax.random.normal(ks[5], (C,), jnp.float32),
        bn1_var=0.9 + 0.1 * jnp.abs(jax.random.normal(ks[6], (C,), jnp.float32)),
        bn2_gamma=1.0 + 0.1 * jax.random.normal(ks[7], (C,), jnp.float32),
        bn2_beta=0.1 * jax.random.normal(ks[8], (C,), jnp.float32),
        bn2_mean=0.1 * jax.random.normal(ks[9], (C,), jnp.float32),
        bn2_var=0.9 + 0.1 * jnp.abs(jax.random.normal(ks[10], (C,), jnp.float32)),
    )

    out = jax.block_until_ready(basic_block_forward(x, params))
    ref = jax.block_until_ready(reference_forward(x, params))

    assert out.shape == (N, C, H, W) and out.dtype == jnp.float32
    # Kernel uses bf16 MXU operands (f32 accumulate); compare with a normalized
    # tolerance against the f32 HIGHEST-precision reference.
    max_err = float(jnp.max(jnp.abs(out - ref)))
    scale = float(jnp.max(jnp.abs(ref))) + 1e-6
    if max_err / scale > 2e-2:
        raise AssertionError(
            f"kernel/reference mismatch: max abs err = {max_err}, scale = {scale}")
    print("KERNEL_OK")
</pallas_src>

<mosaic_0001>
module attributes {stable_mosaic.version = 11 : i64} {
  func.func @_basic_block_kernel(%arg0: i32, %arg1: memref<1x16x16x128xf32, #tpu.memory_space<vmem>>, %arg2: memref<384x384xbf16, #tpu.memory_space<vmem>>, %arg3: memref<384x384xbf16, #tpu.memory_space<vmem>>, %arg4: memref<1x128xf32, #tpu.memory_space<vmem>>, %arg5: memref<1x128xf32, #tpu.memory_space<vmem>>, %arg6: memref<1x128xf32, #tpu.memory_space<vmem>>, %arg7: memref<1x128xf32, #tpu.memory_space<vmem>>, %arg8: memref<1x16x16x128xf32, #tpu.memory_space<vmem>>) attributes {dimension_semantics = [#tpu.dimension_semantics<parallel>], iteration_bounds = array<i64: 2>, scalar_prefetch = 0 : i64, scratch_operands = 0 : i64, tpu.core_type = #tpu.core_type<tc>, window_params = [{transform_indices = @transform_0, window_bounds = array<i64: 1, 16, 16, 128>}, {pipeline_mode = #tpu.pipeline_mode<synchronous>, transform_indices = @transform_1, window_bounds = array<i64: 384, 384>}, {pipeline_mode = #tpu.pipeline_mode<synchronous>, transform_indices = @transform_2, window_bounds = array<i64: 384, 384>}, {pipeline_mode = #tpu.pipeline_mode<synchronous>, transform_indices = @transform_3, window_bounds = array<i64: 1, 128>}, {pipeline_mode = #tpu.pipeline_mode<synchronous>, transform_indices = @transform_4, window_bounds = array<i64: 1, 128>}, {pipeline_mode = #tpu.pipeline_mode<synchronous>, transform_indices = @transform_5, window_bounds = array<i64: 1, 128>}, {pipeline_mode = #tpu.pipeline_mode<synchronous>, transform_indices = @transform_6, window_bounds = array<i64: 1, 128>}, {transform_indices = @transform_7, window_bounds = array<i64: 1, 16, 16, 128>}]} {
    %c0 = arith.constant 0 : index
    %c0_0 = arith.constant 0 : index
    %c0_1 = arith.constant 0 : index
    %c0_2 = arith.constant 0 : index
    %0 = vector.load %arg1[%c0, %c0_0, %c0_1, %c0_2] : memref<1x16x16x128xf32, #tpu.memory_space<vmem>>, vector<1x16x16x128xf32>
    %1 = vector.shape_cast %0 : vector<1x16x16x128xf32> to vector<256x128xf32>
    %2 = tpu.iota {dimensions = array<i32: 0>} : vector<256x128xi32>
    %3 = tpu.iota {dimensions = array<i32: 1>} : vector<16x16x128xi32>
    %4 = vector.shape_cast %3 : vector<16x16x128xi32> to vector<256x128xi32>
    %c0_i32 = arith.constant 0 : i32
    %5 = vector.broadcast %c0_i32 : i32 to vector<256x128xi32>
    %6 = arith.cmpi sgt, %4, %5 : vector<256x128xi32>
    %c15_i32 = arith.constant 15 : i32
    %7 = vector.broadcast %c15_i32 : i32 to vector<256x128xi32>
    %8 = arith.cmpi slt, %4, %7 : vector<256x128xi32>
    %c16_i32 = arith.constant 16 : i32
    %9 = vector.broadcast %c16_i32 : i32 to vector<256x128xi32>
    %10 = arith.cmpi sge, %2, %9 : vector<256x128xi32>
    %c240_i32 = arith.constant 240 : i32
    %11 = vector.broadcast %c240_i32 : i32 to vector<256x128xi32>
    %12 = arith.cmpi slt, %2, %11 : vector<256x128xi32>
    %c0_3 = arith.constant 0 : index
    %c0_4 = arith.constant 0 : index
    %13 = vector.load %arg4[%c0_3, %c0_4] : memref<1x128xf32, #tpu.memory_space<vmem>>, vector<1x128xf32>
    %14 = vector.broadcast %13 : vector<1x128xf32> to vector<256x128xf32>
    %15 = arith.mulf %1, %14 : vector<256x128xf32>
    %c0_5 = arith.constant 0 : index
    %c0_6 = arith.constant 0 : index
    %16 = vector.load %arg5[%c0_5, %c0_6] : memref<1x128xf32, #tpu.memory_space<vmem>>, vector<1x128xf32>
    %17 = vector.broadcast %16 : vector<1x128xf32> to vector<256x128xf32>
    %18 = arith.addf %15, %17 : vector<256x128xf32>
    %cst = arith.constant 0.000000e+00 : f32
    %19 = vector.broadcast %cst : f32 to vector<256x128xf32>
    %20 = arith.maximumf %18, %19 : vector<256x128xf32>
    %c1_i32 = arith.constant 1 : i32
    %21 = tpu.dynamic_rotate %20 by %c1_i32 dim 0 : vector<256x128xf32>, i32 -> vector<256x128xf32>
    %cst_7 = arith.constant 0.000000e+00 : f32
    %22 = vector.broadcast %cst_7 : f32 to vector<256x128xf32>
    %23 = arith.select %6, %21, %22 : vector<256x128xi1>, vector<256x128xf32>
    %c255_i32 = arith.constant 255 : i32
    %24 = tpu.dynamic_rotate %20 by %c255_i32 dim 0 : vector<256x128xf32>, i32 -> vector<256x128xf32>
    %cst_8 = arith.constant 0.000000e+00 : f32
    %25 = vector.broadcast %cst_8 : f32 to vector<256x128xf32>
    %26 = arith.select %8, %24, %25 : vector<256x128xi1>, vector<256x128xf32>
    %27 = tpu.concatenate %23, %20, %26 in 1 : vector<256x128xf32>, vector<256x128xf32>, vector<256x128xf32> -> vector<256x384xf32>
    %28 = arith.truncf %27 : vector<256x384xf32> to vector<256x384xbf16>
    %c0_9 = arith.constant 0 : index
    %c0_10 = arith.constant 0 : index
    %29 = vector.load %arg2[%c0_9, %c0_10] : memref<384x384xbf16, #tpu.memory_space<vmem>>, vector<384x384xbf16>
    %cst_11 = arith.constant dense<0.000000e+00> : vector<256x384xf32>
    %30 = tpu.matmul %28, %29, %cst_11 {dimension_numbers = #tpu.dot_dimension_numbers<[1], [0], [0], [1], [0, 0, 1, 1], [], []>} : vector<256x384xbf16>, vector<384x384xbf16>, vector<256x384xf32> -> vector<256x384xf32>
    %31 = vector.extract_strided_slice %30 {offsets = [0, 128], sizes = [256, 128], strides = [1, 1]} : vector<256x384xf32> to vector<256x128xf32>
    %32 = vector.extract_strided_slice %30 {offsets = [0, 0], sizes = [256, 128], strides = [1, 1]} : vector<256x384xf32> to vector<256x128xf32>
    %c16_i32_12 = arith.constant 16 : i32
    %33 = tpu.dynamic_rotate %32 by %c16_i32_12 dim 0 : vector<256x128xf32>, i32 -> vector<256x128xf32>
    %cst_13 = arith.constant 0.000000e+00 : f32
    %34 = vector.broadcast %cst_13 : f32 to vector<256x128xf32>
    %35 = arith.select %10, %33, %34 : vector<256x128xi1>, vector<256x128xf32>
    %36 = arith.addf %31, %35 : vector<256x128xf32>
    %37 = vector.extract_strided_slice %30 {offsets = [0, 256], sizes = [256, 128], strides = [1, 1]} : vector<256x384xf32> to vector<256x128xf32>
    %c240_i32_14 = arith.constant 240 : i32
    %38 = tpu.dynamic_rotate %37 by %c240_i32_14 dim 0 : vector<256x128xf32>, i32 -> vector<256x128xf32>
    %cst_15 = arith.constant 0.000000e+00 : f32
    %39 = vector.broadcast %cst_15 : f32 to vector<256x128xf32>
    %40 = arith.select %12, %38, %39 : vector<256x128xi1>, vector<256x128xf32>
    %41 = arith.addf %36, %40 : vector<256x128xf32>
    %c0_16 = arith.constant 0 : index
    %c0_17 = arith.constant 0 : index
    %42 = vector.load %arg6[%c0_16, %c0_17] : memref<1x128xf32, #tpu.memory_space<vmem>>, vector<1x128xf32>
    %43 = vector.broadcast %42 : vector<1x128xf32> to vector<256x128xf32>
    %44 = arith.mulf %41, %43 : vector<256x128xf32>
    %c0_18 = arith.constant 0 : index
    %c0_19 = arith.constant 0 : index
    %45 = vector.load %arg7[%c0_18, %c0_19] : memref<1x128xf32, #tpu.memory_space<vmem>>, vector<1x128xf32>
    %46 = vector.broadcast %45 : vector<1x128xf32> to vector<256x128xf32>
    %47 = arith.addf %44, %46 : vector<256x128xf32>
    %cst_20 = arith.constant 0.000000e+00 : f32
    %48 = vector.broadcast %cst_20 : f32 to vector<256x128xf32>
    %49 = arith.maximumf %47, %48 : vector<256x128xf32>
    %c1_i32_21 = arith.constant 1 : i32
    %50 = tpu.dynamic_rotate %49 by %c1_i32_21 dim 0 : vector<256x128xf32>, i32 -> vector<256x128xf32>
    %cst_22 = arith.constant 0.000000e+00 : f32
    %51 = vector.broadcast %cst_22 : f32 to vector<256x128xf32>
    %52 = arith.select %6, %50, %51 : vector<256x128xi1>, vector<256x128xf32>
    %c255_i32_23 = arith.constant 255 : i32
    %53 = tpu.dynamic_rotate %49 by %c255_i32_23 dim 0 : vector<256x128xf32>, i32 -> vector<256x128xf32>
    %cst_24 = arith.constant 0.000000e+00 : f32
    %54 = vector.broadcast %cst_24 : f32 to vector<256x128xf32>
    %55 = arith.select %8, %53, %54 : vector<256x128xi1>, vector<256x128xf32>
    %56 = tpu.concatenate %52, %49, %55 in 1 : vector<256x128xf32>, vector<256x128xf32>, vector<256x128xf32> -> vector<256x384xf32>
    %57 = arith.truncf %56 : vector<256x384xf32> to vector<256x384xbf16>
    %c0_25 = arith.constant 0 : index
    %c0_26 = arith.constant 0 : index
    %58 = vector.load %arg3[%c0_25, %c0_26] : memref<384x384xbf16, #tpu.memory_space<vmem>>, vector<384x384xbf16>
    %cst_27 = arith.constant dense<0.000000e+00> : vector<256x384xf32>
    %59 = tpu.matmul %57, %58, %cst_27 {dimension_numbers = #tpu.dot_dimension_numbers<[1], [0], [0], [1], [0, 0, 1, 1], [], []>} : vector<256x384xbf16>, vector<384x384xbf16>, vector<256x384xf32> -> vector<256x384xf32>
    %60 = vector.extract_strided_slice %59 {offsets = [0, 128], sizes = [256, 128], strides = [1, 1]} : vector<256x384xf32> to vector<256x128xf32>
    %61 = vector.extract_strided_slice %59 {offsets = [0, 0], sizes = [256, 128], strides = [1, 1]} : vector<256x384xf32> to vector<256x128xf32>
    %c16_i32_28 = arith.constant 16 : i32
    %62 = tpu.dynamic_rotate %61 by %c16_i32_28 dim 0 : vector<256x128xf32>, i32 -> vector<256x128xf32>
    %cst_29 = arith.constant 0.000000e+00 : f32
    %63 = vector.broadcast %cst_29 : f32 to vector<256x128xf32>
    %64 = arith.select %10, %62, %63 : vector<256x128xi1>, vector<256x128xf32>
    %65 = arith.addf %60, %64 : vector<256x128xf32>
    %66 = vector.extract_strided_slice %59 {offsets = [0, 256], sizes = [256, 128], strides = [1, 1]} : vector<256x384xf32> to vector<256x128xf32>
    %c240_i32_30 = arith.constant 240 : i32
    %67 = tpu.dynamic_rotate %66 by %c240_i32_30 dim 0 : vector<256x128xf32>, i32 -> vector<256x128xf32>
    %cst_31 = arith.constant 0.000000e+00 : f32
    %68 = vector.broadcast %cst_31 : f32 to vector<256x128xf32>
    %69 = arith.select %12, %67, %68 : vector<256x128xi1>, vector<256x128xf32>
    %70 = arith.addf %65, %69 : vector<256x128xf32>
    %71 = arith.addf %70, %1 : vector<256x128xf32>
    %72 = vector.shape_cast %71 : vector<256x128xf32> to vector<1x16x16x128xf32>
    %c0_32 = arith.constant 0 : index
    %c0_33 = arith.constant 0 : index
    %c0_34 = arith.constant 0 : index
    %c0_35 = arith.constant 0 : index
    %73 = vector.load %arg8[%c0_32, %c0_33, %c0_34, %c0_35] : memref<1x16x16x128xf32, #tpu.memory_space<vmem>>, vector<1x16x16x128xf32>
    tpu.vector_store %arg8[%c0_32, %c0_33, %c0_34, %c0_35], %72 {strides = array<i32>} : memref<1x16x16x128xf32, #tpu.memory_space<vmem>>, vector<1x16x16x128xf32>,
    return
  }
  func.func @transform_0(%arg0: i32) -> (i32, i32, i32, i32) {
    %c0_i32 = arith.constant 0 : i32
    %c0_i32_0 = arith.constant 0 : i32
    %c0_i32_1 = arith.constant 0 : i32
    %c0_i32_2 = arith.constant 0 : i32
    return %arg0, %c0_i32, %c0_i32_0, %c0_i32_1 : i32, i32, i32, i32
  }
  func.func @transform_1(%arg0: i32) -> (i32, i32) {
    %c0_i32 = arith.constant 0 : i32
    %c0_i32_0 = arith.constant 0 : i32
    %c0_i32_1 = arith.constant 0 : i32
    return %c0_i32, %c0_i32_0 : i32, i32
  }
  func.func @transform_2(%arg0: i32) -> (i32, i32) {
    %c0_i32 = arith.constant 0 : i32
    %c0_i32_0 = arith.constant 0 : i32
    %c0_i32_1 = arith.constant 0 : i32
    return %c0_i32, %c0_i32_0 : i32, i32
  }
  func.func @transform_3(%arg0: i32) -> (i32, i32) {
    %c0_i32 = arith.constant 0 : i32
    %c0_i32_0 = arith.constant 0 : i32
    %c0_i32_1 = arith.constant 0 : i32
    return %c0_i32, %c0_i32_0 : i32, i32
  }
  func.func @transform_4(%arg0: i32) -> (i32, i32) {
    %c0_i32 = arith.constant 0 : i32
    %c0_i32_0 = arith.constant 0 : i32
    %c0_i32_1 = arith.constant 0 : i32
    return %c0_i32, %c0_i32_0 : i32, i32
  }
  func.func @transform_5(%arg0: i32) -> (i32, i32) {
    %c0_i32 = arith.constant 0 : i32
    %c0_i32_0 = arith.constant 0 : i32
    %c0_i32_1 = arith.constant 0 : i32
    return %c0_i32, %c0_i32_0 : i32, i32
  }
  func.func @transform_6(%arg0: i32) -> (i32, i32) {
    %c0_i32 = arith.constant 0 : i32
    %c0_i32_0 = arith.constant 0 : i32
    %c0_i32_1 = arith.constant 0 : i32
    return %c0_i32, %c0_i32_0 : i32, i32
  }
  func.func @transform_7(%arg0: i32) -> (i32, i32, i32, i32) {
    %c0_i32 = arith.constant 0 : i32
    %c0_i32_0 = arith.constant 0 : i32
    %c0_i32_1 = arith.constant 0 : i32
    %c0_i32_2 = arith.constant 0 : i32
    return %arg0, %c0_i32, %c0_i32_0, %c0_i32_1 : i32, i32, i32, i32
  }
}

</mosaic_0001>

<llo_original>
// kernel: tpu_custom_call.1
$region0: #{tpu_custom_call.1}
  #allocation0 [shape = 'u32[]', space=smem, size = 0x4, offset = 0x4, fixed_abs, tag = 'smem constant byte address 0x4 - core index']
  #allocation1 [shape = 'u32[144,128]{1,0:T(1,128)}', space=vmem, size = 0x12000, scoped, tag = 'internal scratch']
  %s0 = inlined_call_operand.hbm [shape: f32[2,16,16,128], index: 0, kind: input, shape index: {}]
  %s1 = inlined_call_operand.hbm [shape: bf16[384,384], index: 1, kind: input, shape index: {}]
  %s2 = inlined_call_operand.hbm [shape: bf16[384,384], index: 2, kind: input, shape index: {}]
  %s3 = inlined_call_operand.vmem [shape: f32[1,128], index: 3, kind: input, shape index: {}]
  %s4 = inlined_call_operand.vmem [shape: f32[1,128], index: 4, kind: input, shape index: {}]
  %s5 = inlined_call_operand.vmem [shape: f32[1,128], index: 5, kind: input, shape index: {}]
  %s6 = inlined_call_operand.vmem [shape: f32[1,128], index: 6, kind: input, shape index: {}]
  %s7 = inlined_call_operand.hbm [shape: f32[2,16,16,128], index: 7, kind: output, shape index: {}]
  %s8 = sld [smem:[#allocation0]]
  $region73: #{tpu_custom_call.1} parent=0
    _
  %s10 = ssub.s32 1, %s8
  %s11 = scalar_select 0, %s10, %s8
  $region1: #{tpu_custom_call.1} parent=0
    #allocation2 [shape = 'u8[262144]{0}', space=vmem, size = 0x40000, scoped, tag = 'input window, operand 0']
    #allocation3 [shape = 's32[2]{0}', space=sflag, size = 0x8, scoped, tag = 'scoped memory for tpu_custom_call.1']
    #allocation4 [shape = 's32[2]{0}', space=sflag, size = 0x8, scoped, tag = 'scoped memory for tpu_custom_call.1']
    #allocation5 [shape = 'u8[294912]{0}', space=vmem, size = 0x48000, scoped, tag = 'input window, operand 1, single buffered']
    #allocation6 [shape = 's32[1]{0}', space=sflag, size = 0x4, scoped, tag = 'scoped memory for tpu_custom_call.1']
    #allocation7 [shape = 'u8[294912]{0}', space=vmem, size = 0x48000, scoped, tag = 'input window, operand 2, single buffered']
    #allocation8 [shape = 'u8[262144]{0}', space=vmem, size = 0x40000, scoped, tag = 'output window, operand 0']
    %12 = vsyncpa [#allocation3], 0
    %s13 = scalar_lea.sflag [#allocation3], 1
    %14 = vsyncpa %s13, 0
    %15 = vsyncpa [#allocation6], 0
    %16 = vsyncpa [#allocation4], 0
    %s17 = scalar_lea.sflag [#allocation4], 1
    %18 = vsyncpa %s17, 0
    loop: start=0, step=1, limit=4
    $region2: #{tpu_custom_call.1} parent=1 // loop_pre_header
      _
    $region3: #{tpu_custom_call.1} parent=1 // loop_header
      %s20 = sphi 0, %s24
      %p21 = scmp.ge.s32.totalorder %s20, 4
      %s30 = sphi 0, %s32
      %s33 = sphi 0, %s30
      %s34 = sphi 0, %s33
      %s50 = sphi 0, %s34
      %s54 = sphi 0, %s54
      %s56 = sphi 0, %s54
      %s57 = sphi 0, %s56
      %s71 = sphi 0, %s57
      %s75 = sphi 0, %s75
      %s77 = sphi 0, %s75
      %s78 = sphi 0, %s77
      %s92 = sphi 0, %s78
      %s96 = sphi 0, %s96
      %s98 = sphi 0, %s96
      %s99 = sphi 0, %s98
      %s113 = sphi 0, %s99
      %s117 = sphi 0, %s117
      %s119 = sphi 0, %s117
      %s120 = sphi 0, %s119
      %s134 = sphi 0, %s120
      %s138 = sphi 0, %s138
      %s140 = sphi 0, %s138
      %s141 = sphi 0, %s140
      %s155 = sphi 0, %s141
      %s159 = sphi 0, %s159
      %s161 = sphi 0, %s159
      %s162 = sphi 0, %s161
      %s176 = sphi 0, %s162
      %s182 = sphi 0, %s184
      %s185 = sphi 0, %s182
      %s186 = sphi 0, %s185
      %s202 = sphi 0, %s186
    $region4: #{tpu_custom_call.1} parent=1 // loop_header_branch
      %23 = sbr.rel (%p21) target = $region8
    $region5: #{tpu_custom_call.1} parent=1 // loop_body
      %s25 = ssub.s32 %s20, 1
      %s26 = ssub.s32 %s20, 2
      %s27 = sadd.s32 %s20, 1
      %s28 = ssub.s32 %s20, %s27
      %p29 = scmp.eq.s32.totalorder %s28, 0
      %s31 = sadd.s32 %s30, 1
      %s32 = scalar_select %p29, %s30, %s31
      %p35 = pneg %p29
      %p36 = scmp.eq.s32.totalorder %s20, 1
      %p37 = por %p35, %p36
      %p38 = scmp.ne.s32.totalorder %s30, %s33
      %p39 = scmp.eq.s32.totalorder %s20, 0
      %p40 = por %p38, %p39
      %p41 = scmp.ne.s32.totalorder %s30, %s33
      %p42 = scmp.eq.s32.totalorder %s25, 1
      %p43 = por %p41, %p42
      %p44 = scmp.ne.s32.totalorder %s33, %s34
      %p45 = scmp.eq.s32.totalorder %s25, 0
      %p46 = por %p44, %p45
      %p47 = scmp.ne.s32.totalorder %s33, %s34
      %p48 = scmp.eq.s32.totalorder %s26, 1
      %p49 = por %p47, %p48
      %p51 = scmp.ne.s32.totalorder %s34, %s50
      %p52 = scmp.eq.s32.totalorder %s26, 0
      %p53 = por %p51, %p52
      %s55 = sadd.s32 %s54, 1
      %p58 = scmp.eq.s32.totalorder %s20, 1
      %p59 = scmp.ne.s32.totalorder %s54, %s56
      %p60 = scmp.eq.s32.totalorder %s20, 0
      %p61 = por %p59, %p60
      %p62 = scmp.ne.s32.totalorder %s54, %s56
      %p63 = scmp.eq.s32.totalorder %s25, 1
      %p64 = por %p62, %p63
      %p65 = scmp.ne.s32.totalorder %s56, %s57
      %p66 = scmp.eq.s32.totalorder %s25, 0
      %p67 = por %p65, %p66
      %p68 = scmp.ne.s32.totalorder %s56, %s57
      %p69 = scmp.eq.s32.totalorder %s26, 1
      %p70 = por %p68, %p69
      %p72 = scmp.ne.s32.totalorder %s57, %s71
      %p73 = scmp.eq.s32.totalorder %s26, 0
      %p74 = por %p72, %p73
      %s76 = sadd.s32 %s75, 1
      %p79 = scmp.eq.s32.totalorder %s20, 1
      %p80 = scmp.ne.s32.totalorder %s75, %s77
      %p81 = scmp.eq.s32.totalorder %s20, 0
      %p82 = por %p80, %p81
      %p83 = scmp.ne.s32.totalorder %s75, %s77
      %p84 = scmp.eq.s32.totalorder %s25, 1
      %p85 = por %p83, %p84
      %p86 = scmp.ne.s32.totalorder %s77, %s78
      %p87 = scmp.eq.s32.totalorder %s25, 0
      %p88 = por %p86, %p87
      %p89 = scmp.ne.s32.totalorder %s77, %s78
      %p90 = scmp.eq.s32.totalorder %s26, 1
      %p91 = por %p89, %p90
      %p93 = scmp.ne.s32.totalorder %s78, %s92
      %p94 = scmp.eq.s32.totalorder %s26, 0
      %p95 = por %p93, %p94
      %s97 = sadd.s32 %s96, 1
      %p100 = scmp.eq.s32.totalorder %s20, 1
      %p101 = scmp.ne.s32.totalorder %s96, %s98
      %p102 = scmp.eq.s32.totalorder %s20, 0
      %p103 = por %p101, %p102
      %p104 = scmp.ne.s32.totalorder %s96, %s98
      %p105 = scmp.eq.s32.totalorder %s25, 1
      %p106 = por %p104, %p105
      %p107 = scmp.ne.s32.totalorder %s98, %s99
      %p108 = scmp.eq.s32.totalorder %s25, 0
      %p109 = por %p107, %p108
      %p110 = scmp.ne.s32.totalorder %s98, %s99
      %p111 = scmp.eq.s32.totalorder %s26, 1
      %p112 = por %p110, %p111
      %p114 = scmp.ne.s32.totalorder %s99, %s113
      %p115 = scmp.eq.s32.totalorder %s26, 0
      %p116 = por %p114, %p115
      %s118 = sadd.s32 %s117, 1
      %p121 = scmp.eq.s32.totalorder %s20, 1
      %p122 = scmp.ne.s32.totalorder %s117, %s119
      %p123 = scmp.eq.s32.totalorder %s20, 0
      %p124 = por %p122, %p123
      %p125 = scmp.ne.s32.totalorder %s117, %s119
      %p126 = scmp.eq.s32.totalorder %s25, 1
      %p127 = por %p125, %p126
      %p128 = scmp.ne.s32.totalorder %s119, %s120
      %p129 = scmp.eq.s32.totalorder %s25, 0
      %p130 = por %p128, %p129
      %p131 = scmp.ne.s32.totalorder %s119, %s120
      %p132 = scmp.eq.s32.totalorder %s26, 1
      %p133 = por %p131, %p132
      %p135 = scmp.ne.s32.totalorder %s120, %s134
      %p136 = scmp.eq.s32.totalorder %s26, 0
      %p137 = por %p135, %p136
      %s139 = sadd.s32 %s138, 1
      %p142 = scmp.eq.s32.totalorder %s20, 1
      %p143 = scmp.ne.s32.totalorder %s138, %s140
      %p144 = scmp.eq.s32.totalorder %s20, 0
      %p145 = por %p143, %p144
      %p146 = scmp.ne.s32.totalorder %s138, %s140
      %p147 = scmp.eq.s32.totalorder %s25, 1
      %p148 = por %p146, %p147
      %p149 = scmp.ne.s32.totalorder %s140, %s141
      %p150 = scmp.eq.s32.totalorder %s25, 0
      %p151 = por %p149, %p150
      %p152 = scmp.ne.s32.totalorder %s140, %s141
      %p153 = scmp.eq.s32.totalorder %s26, 1
      %p154 = por %p152, %p153
      %p156 = scmp.ne.s32.totalorder %s141, %s155
      %p157 = scmp.eq.s32.totalorder %s26, 0
      %p158 = por %p156, %p157
      %s160 = sadd.s32 %s159, 1
      %p163 = scmp.eq.s32.totalorder %s20, 1
      %p164 = scmp.ne.s32.totalorder %s159, %s161
      %p165 = scmp.eq.s32.totalorder %s20, 0
      %p166 = por %p164, %p165
      %p167 = scmp.ne.s32.totalorder %s159, %s161
      %p168 = scmp.eq.s32.totalorder %s25, 1
      %p169 = por %p167, %p168
      %p170 = scmp.ne.s32.totalorder %s161, %s162
      %p171 = scmp.eq.s32.totalorder %s25, 0
      %p172 = por %p170, %p171
      %p173 = scmp.ne.s32.totalorder %s161, %s162
      %p174 = scmp.eq.s32.totalorder %s26, 1
      %p175 = por %p173, %p174
      %p177 = scmp.ne.s32.totalorder %s162, %s176
      %p178 = scmp.eq.s32.totalorder %s26, 0
      %p179 = por %p177, %p178
      %s180 = ssub.s32 %s20, %s27
      %p181 = scmp.eq.s32.totalorder %s180, 0
      %s183 = sadd.s32 %s182, 1
      %s184 = scalar_select %p181, %s182, %s183
      %p187 = pneg %p181
      %p188 = scmp.eq.s32.totalorder %s20, 1
      %p189 = por %p187, %p188
      %p190 = scmp.ne.s32.totalorder %s182, %s185
      %p191 = scmp.eq.s32.totalorder %s20, 0
      %p192 = por %p190, %p191
      %p193 = scmp.ne.s32.totalorder %s182, %s185
      %p194 = scmp.eq.s32.totalorder %s25, 1
      %p195 = por %p193, %p194
      %p196 = scmp.ne.s32.totalorder %s185, %s186
      %p197 = scmp.eq.s32.totalorder %s25, 0
      %p198 = por %p196, %p197
      %p199 = scmp.ne.s32.totalorder %s185, %s186
      %p200 = scmp.eq.s32.totalorder %s26, 1
      %p201 = por %p199, %p200
      %p203 = scmp.ne.s32.totalorder %s186, %s202
      %p204 = scmp.eq.s32.totalorder %s26, 0
      %p205 = por %p203, %p204
      %p206 = scmp.le.s32.totalorder 1, %s20
      %p207 = scmp.lt.s32.totalorder %s20, 3
      %p208 = pnand %p206, %p207
      %p209 = pneg %p208
      // Predicated region
      $region9: #{tpu_custom_call.1} parent=5 // pred_check
        _
      $region10: #{tpu_custom_call.1} parent=5 // pred_check_branch
        %211 = sbr.rel (%p208) target = $region12
      $region11: #{tpu_custom_call.1} parent=5 // pred_region
        %s212 = ssub.s32 %s20, 1
        // Predicated region
        $region13: #{tpu_custom_call.1} parent=11 // pred_check
          %p213 = pneg %p67
        $region14: #{tpu_custom_call.1} parent=11 // pred_check_branch
          %215 = sbr.rel (%p213) target = $region16
        $region15: #{tpu_custom_call.1} parent=11 // pred_region
          %s217 = ssub.s32 9216, 9216
          %218 = vsyncadd [#allocation6], %s217
          %s219 = sshll.u32 [#allocation5], 4
          %s220 = int_to_ptr.vmem [resolvable:$true] %s219
          %225 = dma.hbm_to_vmem [thread:$0]  %s1, 9216, %s220, [#allocation6], 192, 192, 12
        $region16: #{tpu_custom_call.1} parent=11 // pred_fallthru
          _
        // Predicated region
        $region17: #{tpu_custom_call.1} parent=11 // pred_check
          %p226 = pneg %p88
        $region18: #{tpu_custom_call.1} parent=11 // pred_check_branch
          %228 = sbr.rel (%p226) target = $region20
        $region19: #{tpu_custom_call.1} parent=11 // pred_region
          %s230 = ssub.s32 9216, 9216
          %231 = vsyncadd [#allocation6], %s230
          %s232 = sshll.u32 [#allocation7], 4
          %s233 = int_to_ptr.vmem [resolvable:$true] %s232
          %238 = dma.hbm_to_vmem [thread:$0]  %s2, 9216, %s233, [#allocation6], 192, 192, 12
        $region20: #{tpu_custom_call.1} parent=11 // pred_fallthru
          _
        // Predicated region
        $region21: #{tpu_custom_call.1} parent=11 // pred_check
          %p239 = pneg %p109
        $region22: #{tpu_custom_call.1} parent=11 // pred_check_branch
          %241 = sbr.rel (%p239) target = $region24
        $region23: #{tpu_custom_call.1} parent=11 // pred_region
          _
        $region24: #{tpu_custom_call.1} parent=11 // pred_fallthru
          _
        // Predicated region
        $region25: #{tpu_custom_call.1} parent=11 // pred_check
          %p242 = pneg %p130
        $region26: #{tpu_custom_call.1} parent=11 // pred_check_branch
          %244 = sbr.rel (%p242) target = $region28
        $region27: #{tpu_custom_call.1} parent=11 // pred_region
          _
        $region28: #{tpu_custom_call.1} parent=11 // pred_fallthru
          _
        // Predicated region
        $region29: #{tpu_custom_call.1} parent=11 // pred_check
          %p245 = pneg %p151
        $region30: #{tpu_custom_call.1} parent=11 // pred_check_branch
          %247 = sbr.rel (%p245) target = $region32
        $region31: #{tpu_custom_call.1} parent=11 // pred_region
          _
        $region32: #{tpu_custom_call.1} parent=11 // pred_fallthru
          _
        // Predicated region
        $region33: #{tpu_custom_call.1} parent=11 // pred_check
          %p248 = pneg %p172
        $region34: #{tpu_custom_call.1} parent=11 // pred_check_branch
          %250 = sbr.rel (%p248) target = $region36
        $region35: #{tpu_custom_call.1} parent=11 // pred_region
          _
        $region36: #{tpu_custom_call.1} parent=11 // pred_fallthru
          _
      $region12: #{tpu_custom_call.1} parent=5 // pred_fallthru
        _
      %p251 = scmp.lt.s32.totalorder %s20, 2
      // Predicated region
      $region37: #{tpu_custom_call.1} parent=5 // pred_check
        %p252 = pneg %p251
      $region38: #{tpu_custom_call.1} parent=5 // pred_check_branch
        %254 = sbr.rel (%p252) target = $region40
      $region39: #{tpu_custom_call.1} parent=5 // pred_region
        // Predicated region
        $region41: #{tpu_custom_call.1} parent=39 // pred_check
          %p255 = pneg %p40
        $region42: #{tpu_custom_call.1} parent=39 // pred_check_branch
          %257 = sbr.rel (%p255) target = $region44
        $region43: #{tpu_custom_call.1} parent=39 // pred_region
          %s258 = sand.u32 %s30, 1
          %s259 = scalar_lea.sflag [#allocation3], %s258
          %s260 = sand.u32 %s30, 1
          %s261 = smul.addr %s260, 256
          %s262 = scalar_lea.vmem [#allocation2], %s261
          %s264 = ssub.s32 4096, 4096
          %265 = vsyncadd %s259, %s264
          %s266 = smul.addr %s20, 32
          %s267 = smul.addr %s266, 128
          %s268 = scalar_lea.hbm %s0, %s267
          %s269 = sshll.u32 %s262, 4
          %s270 = int_to_ptr.vmem [resolvable:$true] %s269
          %275 = dma.hbm_to_vmem [thread:$0]  %s268, 4096, %s270, %s259, 128, 128, 8
        $region44: #{tpu_custom_call.1} parent=39 // pred_fallthru
          _
      $region40: #{tpu_custom_call.1} parent=5 // pred_fallthru
        _
      %p276 = scmp.le.s32.totalorder 1, %s20
      %p277 = scmp.lt.s32.totalorder %s20, 3
      %p278 = pnand %p276, %p277
      %p279 = pneg %p278
      // Predicated region
      $region45: #{tpu_custom_call.1} parent=5 // pred_check
        _
      $region46: #{tpu_custom_call.1} parent=5 // pred_check_branch
        %281 = sbr.rel (%p278) target = $region48
      $region47: #{tpu_custom_call.1} parent=5 // pred_region
        %s282 = ssub.s32 %s20, 1
        %s283 = sand.u32 %s33, 1
        %s284 = scalar_lea.sflag [#allocation3], %s283
        %s285 = sand.u32 %s33, 1
        %s286 = smul.addr %s285, 256
        %s287 = scalar_lea.vmem [#allocation2], %s286
        // Predicated region
        $region49: #{tpu_custom_call.1} parent=47 // pred_check
          %p288 = pneg %p46
        $region50: #{tpu_custom_call.1} parent=47 // pred_check_branch
          %290 = sbr.rel (%p288) target = $region52
        $region51: #{tpu_custom_call.1} parent=47 // pred_region
          %291 = dma.done %s284, 4096
        $region52: #{tpu_custom_call.1} parent=47 // pred_fallthru
          _
        // Predicated region
        $region53: #{tpu_custom_call.1} parent=47 // pred_check
          %p292 = pneg %p67
        $region54: #{tpu_custom_call.1} parent=47 // pred_check_branch
          %294 = sbr.rel (%p292) target = $region56
        $region55: #{tpu_custom_call.1} parent=47 // pred_region
          %295 = dma.done [#allocation6], 9216
        $region56: #{tpu_custom_call.1} parent=47 // pred_fallthru
          _
        // Predicated region
        $region57: #{tpu_custom_call.1} parent=47 // pred_check
          %p296 = pneg %p88
        $region58: #{tpu_custom_call.1} parent=47 // pred_check_branch
          %298 = sbr.rel (%p296) target = $region60
        $region59: #{tpu_custom_call.1} parent=47 // pred_region
          %299 = dma.done [#allocation6], 9216
        $region60: #{tpu_custom_call.1} parent=47 // pred_fallthru
          _
        %s300 = sand.u32 %s33, 1
        %s301 = scalar_lea.sflag [#allocation3], %s300
        %s302 = sand.u32 %s33, 1
        %s303 = smul.addr %s302, 256
        %s304 = scalar_lea.vmem [#allocation2], %s303
        %p305 = pneg %p46
        %p306 = pneg %p43
        %p307 = pneg %p67
        %p308 = pneg %p64
        %p309 = pneg %p88
        %p310 = pneg %p85
        %p311 = pneg %p109
        %p312 = pneg %p106
        %p313 = pneg %p130
        %p314 = pneg %p127
        %p315 = pneg %p151
        %p316 = pneg %p148
        %p317 = pneg %p172
        %p318 = pneg %p169
        %p319 = pneg %p198
        %p320 = pneg %p195
        %s321 = sand.u32 %s185, 1
        %s322 = scalar_lea.sflag [#allocation4], %s321
        %s323 = sand.u32 %s185, 1
        %s324 = smul.addr %s323, 256
        %s325 = scalar_lea.vmem [#allocation8], %s324
        %v327 = vld [vmem:[%s287] sm:$0xff]
        %v328 = vld [vmem:[%s287 + $0x8] sm:$0xff]
        %v329 = vld [vmem:[%s287 + $0x10] sm:$0xff]
        %v330 = vld [vmem:[%s287 + $0x18] sm:$0xff]
        %v331 = vld [vmem:[%s287 + $0x20] sm:$0xff]
        %v332 = vld [vmem:[%s287 + $0x28] sm:$0xff]
        %v333 = vld [vmem:[%s287 + $0x30] sm:$0xff]
        %v334 = vld [vmem:[%s287 + $0x38] sm:$0xff]
        %v335 = vld [vmem:[%s287 + $0x40] sm:$0xff]
        %v336 = vld [vmem:[%s287 + $0x48] sm:$0xff]
        %v337 = vld [vmem:[%s287 + $0x50] sm:$0xff]
        %v338 = vld [vmem:[%s287 + $0x58] sm:$0xff]
        %v339 = vld [vmem:[%s287 + $0x60] sm:$0xff]
        %v340 = vld [vmem:[%s287 + $0x68] sm:$0xff]
        %v341 = vld [vmem:[%s287 + $0x70] sm:$0xff]
        %v342 = vld [vmem:[%s287 + $0x78] sm:$0xff]
        %v343 = vld [vmem:[%s287 + $0x80] sm:$0xff]
        %v344 = vld [vmem:[%s287 + $0x88] sm:$0xff]
        %v345 = vld [vmem:[%s287 + $0x90] sm:$0xff]
        %v346 = vld [vmem:[%s287 + $0x98] sm:$0xff]
        %v347 = vld [vmem:[%s287 + $0xa0] sm:$0xff]
        %v348 = vld [vmem:[%s287 + $0xa8] sm:$0xff]
        %v349 = vld [vmem:[%s287 + $0xb0] sm:$0xff]
        %v350 = vld [vmem:[%s287 + $0xb8] sm:$0xff]
        %v351 = vld [vmem:[%s287 + $0xc0] sm:$0xff]
        %v352 = vld [vmem:[%s287 + $0xc8] sm:$0xff]
        %v353 = vld [vmem:[%s287 + $0xd0] sm:$0xff]
        %v354 = vld [vmem:[%s287 + $0xd8] sm:$0xff]
        %v355 = vld [vmem:[%s287 + $0xe0] sm:$0xff]
        %v356 = vld [vmem:[%s287 + $0xe8] sm:$0xff]
        %v357 = vld [vmem:[%s287 + $0xf0] sm:$0xff]
        %v358 = vld [vmem:[%s287 + $0xf8] sm:$0xff]
        %v359 = vlaneseq
        %v360 = vshrl.u32 %v359, 7
        %v361 = vadd.s32 %v360, 8
        %v362 = vadd.s32 %v360, 16
        %v363 = vadd.s32 %v360, 24
        %v364 = vadd.s32 %v360, 32
        %v365 = vadd.s32 %v360, 40
        %v366 = vadd.s32 %v360, 48
        %v367 = vadd.s32 %v360, 56
        %v368 = vadd.s32 %v360, 64
        %v369 = vadd.s32 %v360, 72
        %v370 = vadd.s32 %v360, 80
        %v371 = vadd.s32 %v360, 88
        %v372 = vadd.s32 %v360, 96
        %v373 = vadd.s32 %v360, 104
        %v374 = vadd.s32 %v360, 112
        %v375 = vadd.s32 %v360, 120
        %v376 = vadd.s32 %v360, 128
        %v377 = vadd.s32 %v360, 136
        %v378 = vadd.s32 %v360, 144
        %v379 = vadd.s32 %v360, 152
        %v380 = vadd.s32 %v360, 160
        %v381 = vadd.s32 %v360, 168
        %v382 = vadd.s32 %v360, 176
        %v383 = vadd.s32 %v360, 184
        %v384 = vadd.s32 %v360, 192
        %v385 = vadd.s32 %v360, 200
        %v386 = vadd.s32 %v360, 208
        %v387 = vadd.s32 %v360, 216
        %v388 = vadd.s32 %v360, 224
        %v389 = vadd.s32 %v360, 232
        %v390 = vadd.s32 %v360, 240
        %v391 = vadd.s32 %v360, 248
        %vm392 = vcmp.gt.s32.totalorder %v360, 0
        %vm393 = vcmp.gt.s32.totalorder %v361, 0
        %vm394 = vcmp.lt.s32.totalorder %v360, 15
        %vm395 = vcmp.lt.s32.totalorder %v361, 15
        %vm396 = vcmp.ge.s32.totalorder %v360, 16
        %vm397 = vcmp.ge.s32.totalorder %v361, 16
        %vm398 = vcmp.ge.s32.totalorder %v362, 16
        %vm399 = vcmp.ge.s32.totalorder %v363, 16
        %vm400 = vcmp.ge.s32.totalorder %v364, 16
        %vm401 = vcmp.ge.s32.totalorder %v365, 16
        %vm402 = vcmp.ge.s32.totalorder %v366, 16
        %vm403 = vcmp.ge.s32.totalorder %v367, 16
        %vm404 = vcmp.ge.s32.totalorder %v368, 16
        %vm405 = vcmp.ge.s32.totalorder %v369, 16
        %vm406 = vcmp.ge.s32.totalorder %v370, 16
        %vm407 = vcmp.ge.s32.totalorder %v371, 16
        %vm408 = vcmp.ge.s32.totalorder %v372, 16
        %vm409 = vcmp.ge.s32.totalorder %v373, 16
        %vm410 = vcmp.ge.s32.totalorder %v374, 16
        %vm411 = vcmp.ge.s32.totalorder %v375, 16
        %vm412 = vcmp.ge.s32.totalorder %v376, 16
        %vm413 = vcmp.ge.s32.totalorder %v377, 16
        %vm414 = vcmp.ge.s32.totalorder %v378, 16
        %vm415 = vcmp.ge.s32.totalorder %v379, 16
        %vm416 = vcmp.ge.s32.totalorder %v380, 16
        %vm417 = vcmp.ge.s32.totalorder %v381, 16
        %vm418 = vcmp.ge.s32.totalorder %v382, 16
        %vm419 = vcmp.ge.s32.totalorder %v383, 16
        %vm420 = vcmp.ge.s32.totalorder %v384, 16
        %vm421 = vcmp.ge.s32.totalorder %v385, 16
        %vm422 = vcmp.ge.s32.totalorder %v386, 16
        %vm423 = vcmp.ge.s32.totalorder %v387, 16
        %vm424 = vcmp.ge.s32.totalorder %v388, 16
        %vm425 = vcmp.ge.s32.totalorder %v389, 16
        %vm426 = vcmp.ge.s32.totalorder %v390, 16
        %vm427 = vcmp.ge.s32.totalorder %v391, 16
        %vm428 = vcmp.lt.s32.totalorder %v360, 240
        %vm429 = vcmp.lt.s32.totalorder %v361, 240
        %vm430 = vcmp.lt.s32.totalorder %v362, 240
        %vm431 = vcmp.lt.s32.totalorder %v363, 240
        %vm432 = vcmp.lt.s32.totalorder %v364, 240
        %vm433 = vcmp.lt.s32.totalorder %v365, 240
        %vm434 = vcmp.lt.s32.totalorder %v366, 240
        %vm435 = vcmp.lt.s32.totalorder %v367, 240
        %vm436 = vcmp.lt.s32.totalorder %v368, 240
        %vm437 = vcmp.lt.s32.totalorder %v369, 240
        %vm438 = vcmp.lt.s32.totalorder %v370, 240
        %vm439 = vcmp.lt.s32.totalorder %v371, 240
        %vm440 = vcmp.lt.s32.totalorder %v372, 240
        %vm441 = vcmp.lt.s32.totalorder %v373, 240
        %vm442 = vcmp.lt.s32.totalorder %v374, 240
        %vm443 = vcmp.lt.s32.totalorder %v375, 240
        %vm444 = vcmp.lt.s32.totalorder %v376, 240
        %vm445 = vcmp.lt.s32.totalorder %v377, 240
        %vm446 = vcmp.lt.s32.totalorder %v378, 240
        %vm447 = vcmp.lt.s32.totalorder %v379, 240
        %vm448 = vcmp.lt.s32.totalorder %v380, 240
        %vm449 = vcmp.lt.s32.totalorder %v381, 240
        %vm450 = vcmp.lt.s32.totalorder %v382, 240
        %vm451 = vcmp.lt.s32.totalorder %v383, 240
        %vm452 = vcmp.lt.s32.totalorder %v384, 240
        %vm453 = vcmp.lt.s32.totalorder %v385, 240
        %vm454 = vcmp.lt.s32.totalorder %v386, 240
        %vm455 = vcmp.lt.s32.totalorder %v387, 240
        %vm456 = vcmp.lt.s32.totalorder %v388, 240
        %vm457 = vcmp.lt.s32.totalorder %v389, 240
        %vm458 = vcmp.lt.s32.totalorder %v390, 240
        %vm459 = vcmp.lt.s32.totalorder %v391, 240
        %v460 = vld [vmem:[%s3] sm:$0x1]
        %v462 = vlaneseq
        %v463 = vshrl.u32 %v462, 7
        %v464 = vsub.s32 0, %v463
        %v465 = vrot.slane %v460, %v464
        %v467 = vmul.f32 %v327, %v465
        %v468 = vmul.f32 %v328, %v465
        %v469 = vmul.f32 %v329, %v465
        %v470 = vmul.f32 %v330, %v465
        %v471 = vmul.f32 %v331, %v465
        %v472 = vmul.f32 %v332, %v465
        %v473 = vmul.f32 %v333, %v465
        %v474 = vmul.f32 %v334, %v465
        %v475 = vmul.f32 %v335, %v465
        %v476 = vmul.f32 %v336, %v465
        %v477 = vmul.f32 %v337, %v465
        %v478 = vmul.f32 %v338, %v465
        %v479 = vmul.f32 %v339, %v465
        %v480 = vmul.f32 %v340, %v465
        %v481 = vmul.f32 %v341, %v465
        %v482 = vmul.f32 %v342, %v465
        %v483 = vmul.f32 %v343, %v465
        %v484 = vmul.f32 %v344, %v465
        %v485 = vmul.f32 %v345, %v465
        %v486 = vmul.f32 %v346, %v465
        %v487 = vmul.f32 %v347, %v465
        %v488 = vmul.f32 %v348, %v465
        %v489 = vmul.f32 %v349, %v465
        %v490 = vmul.f32 %v350, %v465
        %v491 = vmul.f32 %v351, %v465
        %v492 = vmul.f32 %v352, %v465
        %v493 = vmul.f32 %v353, %v465
        %v494 = vmul.f32 %v354, %v465
        %v495 = vmul.f32 %v355, %v465
        %v496 = vmul.f32 %v356, %v465
        %v497 = vmul.f32 %v357, %v465
        %v498 = vmul.f32 %v358, %v465
        %v499 = vld [vmem:[%s4] sm:$0x1]
        %v501 = vlaneseq
        %v502 = vshrl.u32 %v501, 7
        %v503 = vsub.s32 0, %v502
        %v504 = vrot.slane %v499, %v503
        %v506 = vadd.f32 %v467, %v504
        %v507 = vadd.f32 %v468, %v504
        %v508 = vadd.f32 %v469, %v504
        %v509 = vadd.f32 %v470, %v504
        %v510 = vadd.f32 %v471, %v504
        %v511 = vadd.f32 %v472, %v504
        %v512 = vadd.f32 %v473, %v504
        %v513 = vadd.f32 %v474, %v504
        %v514 = vadd.f32 %v475, %v504
        %v515 = vadd.f32 %v476, %v504
        %v516 = vadd.f32 %v477, %v504
        %v517 = vadd.f32 %v478, %v504
        %v518 = vadd.f32 %v479, %v504
        %v519 = vadd.f32 %v480, %v504
        %v520 = vadd.f32 %v481, %v504
        %v521 = vadd.f32 %v482, %v504
        %v522 = vadd.f32 %v483, %v504
        %v523 = vadd.f32 %v484, %v504
        %v524 = vadd.f32 %v485, %v504
        %v525 = vadd.f32 %v486, %v504
        %v526 = vadd.f32 %v487, %v504
        %v527 = vadd.f32 %v488, %v504
        %v528 = vadd.f32 %v489, %v504
        %v529 = vadd.f32 %v490, %v504
        %v530 = vadd.f32 %v491, %v504
        %v531 = vadd.f32 %v492, %v504
        %v532 = vadd.f32 %v493, %v504
        %v533 = vadd.f32 %v494, %v504
        %v534 = vadd.f32 %v495, %v504
        %v535 = vadd.f32 %v496, %v504
        %v536 = vadd.f32 %v497, %v504
        %v537 = vadd.f32 %v498, %v504
        %v538 = vmax.f32 %v506, 0.0
        %v539 = vmax.f32 %v507, 0.0
        %v540 = vmax.f32 %v508, 0.0
        %v541 = vmax.f32 %v509, 0.0
        %v542 = vmax.f32 %v510, 0.0
        %v543 = vmax.f32 %v511, 0.0
        %v544 = vmax.f32 %v512, 0.0
        %v545 = vmax.f32 %v513, 0.0
        %v546 = vmax.f32 %v514, 0.0
        %v547 = vmax.f32 %v515, 0.0
        %v548 = vmax.f32 %v516, 0.0
        %v549 = vmax.f32 %v517, 0.0
        %v550 = vmax.f32 %v518, 0.0
        %v551 = vmax.f32 %v519, 0.0
        %v552 = vmax.f32 %v520, 0.0
        %v553 = vmax.f32 %v521, 0.0
        %v554 = vmax.f32 %v522, 0.0
        %v555 = vmax.f32 %v523, 0.0
        %v556 = vmax.f32 %v524, 0.0
        %v557 = vmax.f32 %v525, 0.0
        %v558 = vmax.f32 %v526, 0.0
        %v559 = vmax.f32 %v527, 0.0
        %v560 = vmax.f32 %v528, 0.0
        %v561 = vmax.f32 %v529, 0.0
        %v562 = vmax.f32 %v530, 0.0
        %v563 = vmax.f32 %v531, 0.0
        %v564 = vmax.f32 %v532, 0.0
        %v565 = vmax.f32 %v533, 0.0
        %v566 = vmax.f32 %v534, 0.0
        %v567 = vmax.f32 %v535, 0.0
        %v568 = vmax.f32 %v536, 0.0
        %v569 = vmax.f32 %v537, 0.0
        %v570 = vrot.slane %v538, 7
        %v571 = vrot.slane %v539, 7
        %v572 = vrot.slane %v540, 7
        %v573 = vrot.slane %v541, 7
        %v574 = vrot.slane %v542, 7
        %v575 = vrot.slane %v543, 7
        %v576 = vrot.slane %v544, 7
        %v577 = vrot.slane %v545, 7
        %v578 = vrot.slane %v546, 7
        %v579 = vrot.slane %v547, 7
        %v580 = vrot.slane %v548, 7
        %v581 = vrot.slane %v549, 7
        %v582 = vrot.slane %v550, 7
        %v583 = vrot.slane %v551, 7
        %v584 = vrot.slane %v552, 7
        %v585 = vrot.slane %v553, 7
        %v586 = vrot.slane %v554, 7
        %v587 = vrot.slane %v555, 7
        %v588 = vrot.slane %v556, 7
        %v589 = vrot.slane %v557, 7
        %v590 = vrot.slane %v558, 7
        %v591 = vrot.slane %v559, 7
        %v592 = vrot.slane %v560, 7
        %v593 = vrot.slane %v561, 7
        %v594 = vrot.slane %v562, 7
        %v595 = vrot.slane %v563, 7
        %v596 = vrot.slane %v564, 7
        %v597 = vrot.slane %v565, 7
        %v598 = vrot.slane %v566, 7
        %v599 = vrot.slane %v567, 7
        %v600 = vrot.slane %v568, 7
        %v601 = vrot.slane %v569, 7
        %vm602 = vcmp.lt.s32.totalorder %v360, 1
        %v603 = vsel %vm602, %v600, %v601
        %v604 = vsel %vm602, %v599, %v600
        %v605 = vsel %vm602, %v598, %v599
        %v606 = vsel %vm602, %v597, %v598
        %v607 = vsel %vm602, %v596, %v597
        %v608 = vsel %vm602, %v595, %v596
        %v609 = vsel %vm602, %v594, %v595
        %v610 = vsel %vm602, %v593, %v594
        %v611 = vsel %vm602, %v592, %v593
        %v612 = vsel %vm602, %v591, %v592
        %v613 = vsel %vm602, %v590, %v591
        %v614 = vsel %vm602, %v589, %v590
        %v615 = vsel %vm602, %v588, %v589
        %v616 = vsel %vm602, %v587, %v588
        %v617 = vsel %vm602, %v586, %v587
        %v618 = vsel %vm602, %v585, %v586
        %v619 = vsel %vm602, %v584, %v585
        %v620 = vsel %vm602, %v583, %v584
        %v621 = vsel %vm602, %v582, %v583
        %v622 = vsel %vm602, %v581, %v582
        %v623 = vsel %vm602, %v580, %v581
        %v624 = vsel %vm602, %v579, %v580
        %v625 = vsel %vm602, %v578, %v579
        %v626 = vsel %vm602, %v577, %v578
        %v627 = vsel %vm602, %v576, %v577
        %v628 = vsel %vm602, %v575, %v576
        %v629 = vsel %vm602, %v574, %v575
        %v630 = vsel %vm602, %v573, %v574
        %v631 = vsel %vm602, %v572, %v573
        %v632 = vsel %vm602, %v571, %v572
        %v633 = vsel %vm602, %v570, %v571
        %v634 = vsel %vm602, %v601, %v570
        %v635 = vsel %vm392, %v634, 0.0
        %v636 = vsel %vm393, %v633, 0.0
        %v637 = vsel %vm392, %v632, 0.0
        %v638 = vsel %vm393, %v631, 0.0
        %v639 = vsel %vm392, %v630, 0.0
        %v640 = vsel %vm393, %v629, 0.0
        %v641 = vsel %vm392, %v628, 0.0
        %v642 = vsel %vm393, %v627, 0.0
        %v643 = vsel %vm392, %v626, 0.0
        %v644 = vsel %vm393, %v625, 0.0
        %v645 = vsel %vm392, %v624, 0.0
        %v646 = vsel %vm393, %v623, 0.0
        %v647 = vsel %vm392, %v622, 0.0
        %v648 = vsel %vm393, %v621, 0.0
        %v649 = vsel %vm392, %v620, 0.0
        %v650 = vsel %vm393, %v619, 0.0
        %v651 = vsel %vm392, %v618, 0.0
        %v652 = vsel %vm393, %v617, 0.0
        %v653 = vsel %vm392, %v616, 0.0
        %v654 = vsel %vm393, %v615, 0.0
        %v655 = vsel %vm392, %v614, 0.0
        %v656 = vsel %vm393, %v613, 0.0
        %v657 = vsel %vm392, %v612, 0.0
        %v658 = vsel %vm393, %v611, 0.0
        %v659 = vsel %vm392, %v610, 0.0
        %v660 = vsel %vm393, %v609, 0.0
        %v661 = vsel %vm392, %v608, 0.0
        %v662 = vsel %vm393, %v607, 0.0
        %v663 = vsel %vm392, %v606, 0.0
        %v664 = vsel %vm393, %v605, 0.0
        %v665 = vsel %vm392, %v604, 0.0
        %v666 = vsel %vm393, %v603, 0.0
        %v667 = vrot.slane %v538, 1
        %v668 = vrot.slane %v539, 1
        %v669 = vrot.slane %v540, 1
        %v670 = vrot.slane %v541, 1
        %v671 = vrot.slane %v542, 1
        %v672 = vrot.slane %v543, 1
        %v673 = vrot.slane %v544, 1
        %v674 = vrot.slane %v545, 1
        %v675 = vrot.slane %v546, 1
        %v676 = vrot.slane %v547, 1
        %v677 = vrot.slane %v548, 1
        %v678 = vrot.slane %v549, 1
        %v679 = vrot.slane %v550, 1
        %v680 = vrot.slane %v551, 1
        %v681 = vrot.slane %v552, 1
        %v682 = vrot.slane %v553, 1
        %v683 = vrot.slane %v554, 1
        %v684 = vrot.slane %v555, 1
        %v685 = vrot.slane %v556, 1
        %v686 = vrot.slane %v557, 1
        %v687 = vrot.slane %v558, 1
        %v688 = vrot.slane %v559, 1
        %v689 = vrot.slane %v560, 1
        %v690 = vrot.slane %v561, 1
        %v691 = vrot.slane %v562, 1
        %v692 = vrot.slane %v563, 1
        %v693 = vrot.slane %v564, 1
        %v694 = vrot.slane %v565, 1
        %v695 = vrot.slane %v566, 1
        %v696 = vrot.slane %v567, 1
        %v697 = vrot.slane %v568, 1
        %v698 = vrot.slane %v569, 1
        %vm699 = vcmp.lt.s32.totalorder %v360, 7
        %v700 = vsel %vm699, %v697, %v698
        %v701 = vsel %vm699, %v696, %v697
        %v702 = vsel %vm699, %v695, %v696
        %v703 = vsel %vm699, %v694, %v695
        %v704 = vsel %vm699, %v693, %v694
        %v705 = vsel %vm699, %v692, %v693
        %v706 = vsel %vm699, %v691, %v692
        %v707 = vsel %vm699, %v690, %v691
        %v708 = vsel %vm699, %v689, %v690
        %v709 = vsel %vm699, %v688, %v689
        %v710 = vsel %vm699, %v687, %v688
        %v711 = vsel %vm699, %v686, %v687
        %v712 = vsel %vm699, %v685, %v686
        %v713 = vsel %vm699, %v684, %v685
        %v714 = vsel %vm699, %v683, %v684
        %v715 = vsel %vm699, %v682, %v683
        %v716 = vsel %vm699, %v681, %v682
        %v717 = vsel %vm699, %v680, %v681
        %v718 = vsel %vm699, %v679, %v680
        %v719 = vsel %vm699, %v678, %v679
        %v720 = vsel %vm699, %v677, %v678
        %v721 = vsel %vm699, %v676, %v677
        %v722 = vsel %vm699, %v675, %v676
        %v723 = vsel %vm699, %v674, %v675
        %v724 = vsel %vm699, %v673, %v674
        %v725 = vsel %vm699, %v672, %v673
        %v726 = vsel %vm699, %v671, %v672
        %v727 = vsel %vm699, %v670, %v671
        %v728 = vsel %vm699, %v669, %v670
        %v729 = vsel %vm699, %v668, %v669
        %v730 = vsel %vm699, %v667, %v668
        %v731 = vsel %vm699, %v698, %v667
        %v732 = vsel %vm394, %v730, 0.0
        %v733 = vsel %vm395, %v729, 0.0
        %v734 = vsel %vm394, %v728, 0.0
        %v735 = vsel %vm395, %v727, 0.0
        %v736 = vsel %vm394, %v726, 0.0
        %v737 = vsel %vm395, %v725, 0.0
        %v738 = vsel %vm394, %v724, 0.0
        %v739 = vsel %vm395, %v723, 0.0
        %v740 = vsel %vm394, %v722, 0.0
        %v741 = vsel %vm395, %v721, 0.0
        %v742 = vsel %vm394, %v720, 0.0
        %v743 = vsel %vm395, %v719, 0.0
        %v744 = vsel %vm394, %v718, 0.0
        %v745 = vsel %vm395, %v717, 0.0
        %v746 = vsel %vm394, %v716, 0.0
        %v747 = vsel %vm395, %v715, 0.0
        %v748 = vsel %vm394, %v714, 0.0
        %v749 = vsel %vm395, %v713, 0.0
        %v750 = vsel %vm394, %v712, 0.0
        %v751 = vsel %vm395, %v711, 0.0
        %v752 = vsel %vm394, %v710, 0.0
        %v753 = vsel %vm395, %v709, 0.0
        %v754 = vsel %vm394, %v708, 0.0
        %v755 = vsel %vm395, %v707, 0.0
        %v756 = vsel %vm394, %v706, 0.0
        %v757 = vsel %vm395, %v705, 0.0
        %v758 = vsel %vm394, %v704, 0.0
        %v759 = vsel %vm395, %v703, 0.0
        %v760 = vsel %vm394, %v702, 0.0
        %v761 = vsel %vm395, %v701, 0.0
        %v762 = vsel %vm394, %v700, 0.0
        %v763 = vsel %vm395, %v731, 0.0
        %v764 = vpack.c.bf16 %v636, %v635
        %v765 = vpack.c.bf16 %v539, %v538
        %v766 = vpack.c.bf16 %v733, %v732
        %v767 = vpack.c.bf16 %v638, %v637
        %v768 = vpack.c.bf16 %v541, %v540
        %v769 = vpack.c.bf16 %v735, %v734
        %v770 = vpack.c.bf16 %v640, %v639
        %v771 = vpack.c.bf16 %v543, %v542
        %v772 = vpack.c.bf16 %v737, %v736
        %v773 = vpack.c.bf16 %v642, %v641
        %v774 = vpack.c.bf16 %v545, %v544
        %v775 = vpack.c.bf16 %v739, %v738
        %v776 = vpack.c.bf16 %v644, %v643
        %v777 = vpack.c.bf16 %v547, %v546
        %v778 = vpack.c.bf16 %v741, %v740
        %v779 = vpack.c.bf16 %v646, %v645
        %v780 = vpack.c.bf16 %v549, %v548
        %v781 = vpack.c.bf16 %v743, %v742
        %v782 = vpack.c.bf16 %v648, %v647
        %v783 = vpack.c.bf16 %v551, %v550
        %v784 = vpack.c.bf16 %v745, %v744
        %v785 = vpack.c.bf16 %v650, %v649
        %v786 = vpack.c.bf16 %v553, %v552
        %v787 = vpack.c.bf16 %v747, %v746
        %v788 = vpack.c.bf16 %v652, %v651
        %v789 = vpack.c.bf16 %v555, %v554
        %v790 = vpack.c.bf16 %v749, %v748
        %v791 = vpack.c.bf16 %v654, %v653
        %v792 = vpack.c.bf16 %v557, %v556
        %v793 = vpack.c.bf16 %v751, %v750
        %v794 = vpack.c.bf16 %v656, %v655
        %v795 = vpack.c.bf16 %v559, %v558
        %v796 = vpack.c.bf16 %v753, %v752
        %v797 = vpack.c.bf16 %v658, %v657
        %v798 = vpack.c.bf16 %v561, %v560
        %v799 = vpack.c.bf16 %v755, %v754
        %v800 = vpack.c.bf16 %v660, %v659
        %v801 = vpack.c.bf16 %v563, %v562
        %v802 = vpack.c.bf16 %v757, %v756
        %v803 = vpack.c.bf16 %v662, %v661
        %v804 = vpack.c.bf16 %v565, %v564
        %v805 = vpack.c.bf16 %v759, %v758
        %v806 = vpack.c.bf16 %v664, %v663
        %v807 = vpack.c.bf16 %v567, %v566
        %v808 = vpack.c.bf16 %v761, %v760
        %v809 = vpack.c.bf16 %v666, %v665
        %v810 = vpack.c.bf16 %v569, %v568
        %v811 = vpack.c.bf16 %v763, %v762
        %v812 = vld [vmem:[#allocation5] sm:$0xff]
        %v813 = vld [vmem:[#allocation5 + $0x8] sm:$0xf]
        %v814 = vld [vmem:[#allocation5 + $0xc] sm:$0xff]
        %v815 = vld [vmem:[#allocation5 + $0x14] sm:$0xf]
        %v816 = vld [vmem:[#allocation5 + $0x18] sm:$0xff]
        %v817 = vld [vmem:[#allocation5 + $0x20] sm:$0xf]
        %v818 = vld [vmem:[#allocation5 + $0x24] sm:$0xff]
        %v819 = vld [vmem:[#allocation5 + $0x2c] sm:$0xf]
        %v820 = vld [vmem:[#allocation5 + $0x30] sm:$0xff]
        %v821 = vld [vmem:[#allocation5 + $0x38] sm:$0xf]
        %v822 = vld [vmem:[#allocation5 + $0x3c] sm:$0xff]
        %v823 = vld [vmem:[#allocation5 + $0x44] sm:$0xf]
        %v824 = vld [vmem:[#allocation5 + $0x48] sm:$0xff]
        %v825 = vld [vmem:[#allocation5 + $0x50] sm:$0xf]
        %v826 = vld [vmem:[#allocation5 + $0x54] sm:$0xff]
        %v827 = vld [vmem:[#allocation5 + $0x5c] sm:$0xf]
        %v828 = vld [vmem:[#allocation5 + $0x60] sm:$0xff]
        %v829 = vld [vmem:[#allocation5 + $0x68] sm:$0xf]
        %v830 = vld [vmem:[#allocation5 + $0x6c] sm:$0xff]
        %v831 = vld [vmem:[#allocation5 + $0x74] sm:$0xf]
        %v832 = vld [vmem:[#allocation5 + $0x78] sm:$0xff]
        %v833 = vld [vmem:[#allocation5 + $0x80] sm:$0xf]
        %v834 = vld [vmem:[#allocation5 + $0x84] sm:$0xff]
        %v835 = vld [vmem:[#allocation5 + $0x8c] sm:$0xf]
        %v836 = vld [vmem:[#allocation5 + $0x90] sm:$0xff]
        %v837 = vld [vmem:[#allocation5 + $0x98] sm:$0xf]
        %v838 = vld [vmem:[#allocation5 + $0x9c] sm:$0xff]
        %v839 = vld [vmem:[#allocation5 + $0xa4] sm:$0xf]
        %v840 = vld [vmem:[#allocation5 + $0xa8] sm:$0xff]
        %v841 = vld [vmem:[#allocation5 + $0xb0] sm:$0xf]
        %v842 = vld [vmem:[#allocation5 + $0xb4] sm:$0xff]
        %v843 = vld [vmem:[#allocation5 + $0xbc] sm:$0xf]
        %v844 = vld [vmem:[#allocation5 + $0xc0] sm:$0xff]
        %v845 = vld [vmem:[#allocation5 + $0xc8] sm:$0xf]
        %v846 = vld [vmem:[#allocation5 + $0xcc] sm:$0xff]
        %v847 = vld [vmem:[#allocation5 + $0xd4] sm:$0xf]
        %v848 = vld [vmem:[#allocation5 + $0xd8] sm:$0xff]
        %v849 = vld [vmem:[#allocation5 + $0xe0] sm:$0xf]
        %v850 = vld [vmem:[#allocation5 + $0xe4] sm:$0xff]
        %v851 = vld [vmem:[#allocation5 + $0xec] sm:$0xf]
        %v852 = vld [vmem:[#allocation5 + $0xf0] sm:$0xff]
        %v853 = vld [vmem:[#allocation5 + $0xf8] sm:$0xf]
        %v854 = vld [vmem:[#allocation5 + $0xfc] sm:$0xff]
        %v855 = vld [vmem:[#allocation5 + $0x104] sm:$0xf]
        %v856 = vld [vmem:[#allocation5 + $0x108] sm:$0xff]
        %v857 = vld [vmem:[#allocation5 + $0x110] sm:$0xf]
        %v858 = vld [vmem:[#allocation5 + $0x114] sm:$0xff]
        %v859 = vld [vmem:[#allocation5 + $0x11c] sm:$0xf]
        %v860 = vld [vmem:[#allocation5 + $0x120] sm:$0xff]
        %v861 = vld [vmem:[#allocation5 + $0x128] sm:$0xf]
        %v862 = vld [vmem:[#allocation5 + $0x12c] sm:$0xff]
        %v863 = vld [vmem:[#allocation5 + $0x134] sm:$0xf]
        %v864 = vld [vmem:[#allocation5 + $0x138] sm:$0xff]
        %v865 = vld [vmem:[#allocation5 + $0x140] sm:$0xf]
        %v866 = vld [vmem:[#allocation5 + $0x144] sm:$0xff]
        %v867 = vld [vmem:[#allocation5 + $0x14c] sm:$0xf]
        %v868 = vld [vmem:[#allocation5 + $0x150] sm:$0xff]
        %v869 = vld [vmem:[#allocation5 + $0x158] sm:$0xf]
        %v870 = vld [vmem:[#allocation5 + $0x15c] sm:$0xff]
        %v871 = vld [vmem:[#allocation5 + $0x164] sm:$0xf]
        %v872 = vld [vmem:[#allocation5 + $0x168] sm:$0xff]
        %v873 = vld [vmem:[#allocation5 + $0x170] sm:$0xf]
        %v874 = vld [vmem:[#allocation5 + $0x174] sm:$0xff]
        %v875 = vld [vmem:[#allocation5 + $0x17c] sm:$0xf]
        %v876 = vld [vmem:[#allocation5 + $0x180] sm:$0xff]
        %v877 = vld [vmem:[#allocation5 + $0x188] sm:$0xf]
        %v878 = vld [vmem:[#allocation5 + $0x18c] sm:$0xff]
        %v879 = vld [vmem:[#allocation5 + $0x194] sm:$0xf]
        %v880 = vld [vmem:[#allocation5 + $0x198] sm:$0xff]
        %v881 = vld [vmem:[#allocation5 + $0x1a0] sm:$0xf]
        %v882 = vld [vmem:[#allocation5 + $0x1a4] sm:$0xff]
        %v883 = vld [vmem:[#allocation5 + $0x1ac] sm:$0xf]
        %v884 = vld [vmem:[#allocation5 + $0x1b0] sm:$0xff]
        %v885 = vld [vmem:[#allocation5 + $0x1b8] sm:$0xf]
        %v886 = vld [vmem:[#allocation5 + $0x1bc] sm:$0xff]
        %v887 = vld [vmem:[#allocation5 + $0x1c4] sm:$0xf]
        %v888 = vld [vmem:[#allocation5 + $0x1c8] sm:$0xff]
        %v889 = vld [vmem:[#allocation5 + $0x1d0] sm:$0xf]
        %v890 = vld [vmem:[#allocation5 + $0x1d4] sm:$0xff]
        %v891 = vld [vmem:[#allocation5 + $0x1dc] sm:$0xf]
        %v892 = vld [vmem:[#allocation5 + $0x1e0] sm:$0xff]
        %v893 = vld [vmem:[#allocation5 + $0x1e8] sm:$0xf]
        %v894 = vld [vmem:[#allocation5 + $0x1ec] sm:$0xff]
        %v895 = vld [vmem:[#allocation5 + $0x1f4] sm:$0xf]
        %v896 = vld [vmem:[#allocation5 + $0x1f8] sm:$0xff]
        %v897 = vld [vmem:[#allocation5 + $0x200] sm:$0xf]
        %v898 = vld [vmem:[#allocation5 + $0x204] sm:$0xff]
        %v899 = vld [vmem:[#allocation5 + $0x20c] sm:$0xf]
        %v900 = vld [vmem:[#allocation5 + $0x210] sm:$0xff]
        %v901 = vld [vmem:[#allocation5 + $0x218] sm:$0xf]
        %v902 = vld [vmem:[#allocation5 + $0x21c] sm:$0xff]
        %v903 = vld [vmem:[#allocation5 + $0x224] sm:$0xf]
        %v904 = vld [vmem:[#allocation5 + $0x228] sm:$0xff]
        %v905 = vld [vmem:[#allocation5 + $0x230] sm:$0xf]
        %v906 = vld [vmem:[#allocation5 + $0x234] sm:$0xff]
        %v907 = vld [vmem:[#allocation5 + $0x23c] sm:$0xf]
        %v1004 = vunpack.c.l.b16 %v812
        %v1005 = vunpack.c.h.b16 %v812
        %v1006 = vunpack.c.l.b16 %v813
        %v1007 = vunpack.c.l.b16 %v814
        %v1008 = vunpack.c.h.b16 %v814
        %v1009 = vunpack.c.l.b16 %v815
        %v1010 = vunpack.c.l.b16 %v816
        %v1011 = vunpack.c.h.b16 %v816
        %v1012 = vunpack.c.l.b16 %v817
        %v1013 = vunpack.c.l.b16 %v818
        %v1014 = vunpack.c.h.b16 %v818
        %v1015 = vunpack.c.l.b16 %v819
        %v1016 = vunpack.c.l.b16 %v820
        %v1017 = vunpack.c.h.b16 %v820
        %v1018 = vunpack.c.l.b16 %v821
        %v1019 = vunpack.c.l.b16 %v822
        %v1020 = vunpack.c.h.b16 %v822
        %v1021 = vunpack.c.l.b16 %v823
        %v1022 = vunpack.c.l.b16 %v824
        %v1023 = vunpack.c.h.b16 %v824
        %v1024 = vunpack.c.l.b16 %v825
        %v1025 = vunpack.c.l.b16 %v826
        %v1026 = vunpack.c.h.b16 %v826
        %v1027 = vunpack.c.l.b16 %v827
        %v1028 = vunpack.c.l.b16 %v828
        %v1029 = vunpack.c.h.b16 %v828
        %v1030 = vunpack.c.l.b16 %v829
        %v1031 = vunpack.c.l.b16 %v830
        %v1032 = vunpack.c.h.b16 %v830
        %v1033 = vunpack.c.l.b16 %v831
        %v1034 = vunpack.c.l.b16 %v832
        %v1035 = vunpack.c.h.b16 %v832
        %v1036 = vunpack.c.l.b16 %v833
        %v1037 = vunpack.c.l.b16 %v834
        %v1038 = vunpack.c.h.b16 %v834
        %v1039 = vunpack.c.l.b16 %v835
        %v1040 = vunpack.c.l.b16 %v836
        %v1041 = vunpack.c.h.b16 %v836
        %v1042 = vunpack.c.l.b16 %v837
        %v1043 = vunpack.c.l.b16 %v838
        %v1044 = vunpack.c.h.b16 %v838
        %v1045 = vunpack.c.l.b16 %v839
        %v1046 = vunpack.c.l.b16 %v840
        %v1047 = vunpack.c.h.b16 %v840
        %v1048 = vunpack.c.l.b16 %v841
        %v1049 = vunpack.c.l.b16 %v842
        %v1050 = vunpack.c.h.b16 %v842
        %v1051 = vunpack.c.l.b16 %v843
        %v1052 = vunpack.c.l.b16 %v844
        %v1053 = vunpack.c.h.b16 %v844
        %v1054 = vunpack.c.l.b16 %v845
        %v1055 = vunpack.c.l.b16 %v846
        %v1056 = vunpack.c.h.b16 %v846
        %v1057 = vunpack.c.l.b16 %v847
        %v1058 = vunpack.c.l.b16 %v848
        %v1059 = vunpack.c.h.b16 %v848
        %v1060 = vunpack.c.l.b16 %v849
        %v1061 = vunpack.c.l.b16 %v850
        %v1062 = vunpack.c.h.b16 %v850
        %v1063 = vunpack.c.l.b16 %v851
        %v1064 = vunpack.c.l.b16 %v852
        %v1065 = vunpack.c.h.b16 %v852
        %v1066 = vunpack.c.l.b16 %v853
        %v1067 = vunpack.c.l.b16 %v854
        %v1068 = vunpack.c.h.b16 %v854
        %v1069 = vunpack.c.l.b16 %v855
        %v1070 = vunpack.c.l.b16 %v856
        %v1071 = vunpack.c.h.b16 %v856
        %v1072 = vunpack.c.l.b16 %v857
        %v1073 = vunpack.c.l.b16 %v858
        %v1074 = vunpack.c.h.b16 %v858
        %v1075 = vunpack.c.l.b16 %v859
        %v1076 = vunpack.c.l.b16 %v860
        %v1077 = vunpack.c.h.b16 %v860
        %v1078 = vunpack.c.l.b16 %v861
        %v1079 = vunpack.c.l.b16 %v862
        %v1080 = vunpack.c.h.b16 %v862
        %v1081 = vunpack.c.l.b16 %v863
        %v1082 = vunpack.c.l.b16 %v864
        %v1083 = vunpack.c.h.b16 %v864
        %v1084 = vunpack.c.l.b16 %v865
        %v1085 = vunpack.c.l.b16 %v866
        %v1086 = vunpack.c.h.b16 %v866
        %v1087 = vunpack.c.l.b16 %v867
        %v1088 = vunpack.c.l.b16 %v868
        %v1089 = vunpack.c.h.b16 %v868
        %v1090 = vunpack.c.l.b16 %v869
        %v1091 = vunpack.c.l.b16 %v870
        %v1092 = vunpack.c.h.b16 %v870
        %v1093 = vunpack.c.l.b16 %v871
        %v1094 = vunpack.c.l.b16 %v872
        %v1095 = vunpack.c.h.b16 %v872
        %v1096 = vunpack.c.l.b16 %v873
        %v1097 = vunpack.c.l.b16 %v874
        %v1098 = vunpack.c.h.b16 %v874
        %v1099 = vunpack.c.l.b16 %v875
        %v1100 = vunpack.c.l.b16 %v876
        %v1101 = vunpack.c.h.b16 %v876
        %v1102 = vunpack.c.l.b16 %v877
        %v1103 = vunpack.c.l.b16 %v878
        %v1104 = vunpack.c.h.b16 %v878
        %v1105 = vunpack.c.l.b16 %v879
        %v1106 = vunpack.c.l.b16 %v880
        %v1107 = vunpack.c.h.b16 %v880
        %v1108 = vunpack.c.l.b16 %v881
        %v1109 = vunpack.c.l.b16 %v882
        %v1110 = vunpack.c.h.b16 %v882
        %v1111 = vunpack.c.l.b16 %v883
        %v1112 = vunpack.c.l.b16 %v884
        %v1113 = vunpack.c.h.b16 %v884
        %v1114 = vunpack.c.l.b16 %v885
        %v1115 = vunpack.c.l.b16 %v886
        %v1116 = vunpack.c.h.b16 %v886
        %v1117 = vunpack.c.l.b16 %v887
        %v1118 = vunpack.c.l.b16 %v888
        %v1119 = vunpack.c.h.b16 %v888
        %v1120 = vunpack.c.l.b16 %v889
        %v1121 = vunpack.c.l.b16 %v890
        %v1122 = vunpack.c.h.b16 %v890
        %v1123 = vunpack.c.l.b16 %v891
        %v1124 = vunpack.c.l.b16 %v892
        %v1125 = vunpack.c.h.b16 %v892
        %v1126 = vunpack.c.l.b16 %v893
        %v1127 = vunpack.c.l.b16 %v894
        %v1128 = vunpack.c.h.b16 %v894
        %v1129 = vunpack.c.l.b16 %v895
        %v1130 = vunpack.c.l.b16 %v896
        %v1131 = vunpack.c.h.b16 %v896
        %v1132 = vunpack.c.l.b16 %v897
        %v1133 = vunpack.c.l.b16 %v898
        %v1134 = vunpack.c.h.b16 %v898
        %v1135 = vunpack.c.l.b16 %v899
        %v1136 = vunpack.c.l.b16 %v900
        %v1137 = vunpack.c.h.b16 %v900
        %v1138 = vunpack.c.l.b16 %v901
        %v1139 = vunpack.c.l.b16 %v902
        %v1140 = vunpack.c.h.b16 %v902
        %v1141 = vunpack.c.l.b16 %v903
        %v1142 = vunpack.c.l.b16 %v904
        %v1143 = vunpack.c.h.b16 %v904
        %v1144 = vunpack.c.l.b16 %v905
        %v1145 = vunpack.c.l.b16 %v906
        %v1146 = vunpack.c.h.b16 %v906
        %v1147 = vunpack.c.l.b16 %v907
        %v1148 = vpack.c.b16 %v1007, %v1004
        %v1149 = vpack.c.b16 %v1008, %v1005
        %v1150 = vpack.c.b16 %v1009, %v1006
        %v1151 = vpack.c.b16 %v1013, %v1010
        %v1152 = vpack.c.b16 %v1014, %v1011
        %v1153 = vpack.c.b16 %v1015, %v1012
        %v1154 = vpack.c.b16 %v1019, %v1016
        %v1155 = vpack.c.b16 %v1020, %v1017
        %v1156 = vpack.c.b16 %v1021, %v1018
        %v1157 = vpack.c.b16 %v1025, %v1022
        %v1158 = vpack.c.b16 %v1026, %v1023
        %v1159 = vpack.c.b16 %v1027, %v1024
        %v1160 = vpack.c.b16 %v1031, %v1028
        %v1161 = vpack.c.b16 %v1032, %v1029
        %v1162 = vpack.c.b16 %v1033, %v1030
        %v1163 = vpack.c.b16 %v1037, %v1034
        %v1164 = vpack.c.b16 %v1038, %v1035
        %v1165 = vpack.c.b16 %v1039, %v1036
        %v1166 = vpack.c.b16 %v1043, %v1040
        %v1167 = vpack.c.b16 %v1044, %v1041
        %v1168 = vpack.c.b16 %v1045, %v1042
        %v1169 = vpack.c.b16 %v1049, %v1046
        %v1170 = vpack.c.b16 %v1050, %v1047
        %v1171 = vpack.c.b16 %v1051, %v1048
        %v1172 = vpack.c.b16 %v1055, %v1052
        %v1173 = vpack.c.b16 %v1056, %v1053
        %v1174 = vpack.c.b16 %v1057, %v1054
        %v1175 = vpack.c.b16 %v1061, %v1058
        %v1176 = vpack.c.b16 %v1062, %v1059
        %v1177 = vpack.c.b16 %v1063, %v1060
        %v1178 = vpack.c.b16 %v1067, %v1064
        %v1179 = vpack.c.b16 %v1068, %v1065
        %v1180 = vpack.c.b16 %v1069, %v1066
        %v1181 = vpack.c.b16 %v1073, %v1070
        %v1182 = vpack.c.b16 %v1074, %v1071
        %v1183 = vpack.c.b16 %v1075, %v1072
        %v1184 = vpack.c.b16 %v1079, %v1076
        %v1185 = vpack.c.b16 %v1080, %v1077
        %v1186 = vpack.c.b16 %v1081, %v1078
        %v1187 = vpack.c.b16 %v1085, %v1082
        %v1188 = vpack.c.b16 %v1086, %v1083
        %v1189 = vpack.c.b16 %v1087, %v1084
        %v1190 = vpack.c.b16 %v1091, %v1088
        %v1191 = vpack.c.b16 %v1092, %v1089
        %v1192 = vpack.c.b16 %v1093, %v1090
        %v1193 = vpack.c.b16 %v1097, %v1094
        %v1194 = vpack.c.b16 %v1098, %v1095
        %v1195 = vpack.c.b16 %v1099, %v1096
        %v1196 = vpack.c.b16 %v1103, %v1100
        %v1197 = vpack.c.b16 %v1104, %v1101
        %v1198 = vpack.c.b16 %v1105, %v1102
        %v1199 = vpack.c.b16 %v1109, %v1106
        %v1200 = vpack.c.b16 %v1110, %v1107
        %v1201 = vpack.c.b16 %v1111, %v1108
        %v1202 = vpack.c.b16 %v1115, %v1112
        %v1203 = vpack.c.b16 %v1116, %v1113
        %v1204 = vpack.c.b16 %v1117, %v1114
        %v1205 = vpack.c.b16 %v1121, %v1118
        %v1206 = vpack.c.b16 %v1122, %v1119
        %v1207 = vpack.c.b16 %v1123, %v1120
        %v1208 = vpack.c.b16 %v1127, %v1124
        %v1209 = vpack.c.b16 %v1128, %v1125
        %v1210 = vpack.c.b16 %v1129, %v1126
        %v1211 = vpack.c.b16 %v1133, %v1130
        %v1212 = vpack.c.b16 %v1134, %v1131
        %v1213 = vpack.c.b16 %v1135, %v1132
        %v1214 = vpack.c.b16 %v1139, %v1136
        %v1215 = vpack.c.b16 %v1140, %v1137
        %v1216 = vpack.c.b16 %v1141, %v1138
        %v1217 = vpack.c.b16 %v1145, %v1142
        %v1218 = vpack.c.b16 %v1146, %v1143
        %v1219 = vpack.c.b16 %v1147, %v1144
        %1292 = vmatprep.subr.bf16.mxu0 %v1149
        %1293 = vmatpush1.bf16.msra.mxu0 %v1148
        %1294 = vmatprep.subr.bf16.mxu0 %v1152
        %1295 = vmatpush1.bf16.msra.mxu0 %v1151
        %1296 = vmatprep.subr.bf16.mxu0 %v1155
        %1297 = vmatpush1.bf16.msra.mxu0 %v1154
        %1298 = vmatprep.subr.bf16.mxu0 %v1158
        %1299 = vmatpush1.bf16.msra.mxu0 %v1157
        %1300 = vmatprep.subr.bf16.mxu0 %v1161
        %1301 = vmatpush1.bf16.msra.mxu0 %v1160
        %1302 = vmatprep.subr.bf16.mxu0 %v1164
        %1303 = vmatpush1.bf16.msra.mxu0 %v1163
        %1304 = vmatprep.subr.bf16.mxu0 %v1167
        %1305 = vmatpush1.bf16.msra.mxu0 %v1166
        %1306 = vmatprep.subr.bf16.mxu0 %v1170
        %1307 = vmatpush1.bf16.msra.mxu0 %v1169
        %1308 = vmatprep.subr.bf16.mxu0 %v1173
        %1309 = vmatpush1.bf16.msra.mxu0 %v1172
        %1310 = vmatprep.subr.bf16.mxu0 %v1176
        %1311 = vmatpush1.bf16.msra.mxu0 %v1175
        %1312 = vmatprep.subr.bf16.mxu0 %v1179
        %1313 = vmatpush1.bf16.msra.mxu0 %v1178
        %1314 = vmatprep.subr.bf16.mxu0 %v1182
        %1315 = vmatpush1.bf16.msra.mxu0 %v1181
        %1316 = vmatprep.subr.bf16.mxu0 %v1185
        %1317 = vmatpush1.bf16.msra.mxu0 %v1184
        %1318 = vmatprep.subr.bf16.mxu0 %v1188
        %1319 = vmatpush1.bf16.msra.mxu0 %v1187
        %1320 = vmatprep.subr.bf16.mxu0 %v1191
        %1321 = vmatpush1.bf16.msra.mxu0 %v1190
        %1322 = vmatprep.subr.bf16.mxu0 %v1194
        %1323 = vmatpush1.bf16.msra.mxu0 %v1193
        %1324 = vmatprep.mubr.bf16.mxu0 %v765
        %1325 = vmatmul.mubr.bf16.gmra.mrb[0].mxu0 %v764
        %v1326 = vpop.f32.mrb[0].mxu0
        %v1327 = vadd.f32 0.0, %v1326
        %v1328 = vpop.f32.mrb[0].mxu0
        %v1329 = vadd.f32 0.0, %v1328
        %v1330 = vpop.f32.mrb[0].mxu0
        %v1331 = vadd.f32 0.0, %v1330
        %v1332 = vpop.f32.mrb[0].mxu0
        %v1333 = vadd.f32 0.0, %v1332
        %1334 = vmatprep.mubr.bf16.mxu0 %v768
        %1335 = vmatmul.mubr.bf16.gmra.mrb[0].mxu0 %v767
        %v1336 = vpop.f32.mrb[0].mxu0
        %v1337 = vadd.f32 0.0, %v1336
        %v1338 = vpop.f32.mrb[0].mxu0
        %v1339 = vadd.f32 0.0, %v1338
        %v1340 = vpop.f32.mrb[0].mxu0
        %v1341 = vadd.f32 0.0, %v1340
        %v1342 = vpop.f32.mrb[0].mxu0
        %v1343 = vadd.f32 0.0, %v1342
        %1344 = vmatprep.mubr.bf16.mxu0 %v771
        %1345 = vmatmul.mubr.bf16.gmra.mrb[0].mxu0 %v770
        %v1346 = vpop.f32.mrb[0].mxu0
        %v1347 = vadd.f32 0.0, %v1346
        %v1348 = vpop.f32.mrb[0].mxu0
        %v1349 = vadd.f32 0.0, %v1348
        %v1350 = vpop.f32.mrb[0].mxu0
        %v1351 = vadd.f32 0.0, %v1350
        %v1352 = vpop.f32.mrb[0].mxu0
        %v1353 = vadd.f32 0.0, %v1352
        %1354 = vmatprep.mubr.bf16.mxu0 %v774
        %1355 = vmatmul.mubr.bf16.gmra.mrb[0].mxu0 %v773
        %v1356 = vpop.f32.mrb[0].mxu0
        %v1357 = vadd.f32 0.0, %v1356
        %v1358 = vpop.f32.mrb[0].mxu0
        %v1359 = vadd.f32 0.0, %v1358
        %v1360 = vpop.f32.mrb[0].mxu0
        %v1361 = vadd.f32 0.0, %v1360
        %v1362 = vpop.f32.mrb[0].mxu0
        %v1363 = vadd.f32 0.0, %v1362
        %1364 = vmatprep.mubr.bf16.mxu0 %v777
        %1365 = vmatmul.mubr.bf16.gmra.mrb[0].mxu0 %v776
        %v1366 = vpop.f32.mrb[0].mxu0
        %v1367 = vadd.f32 0.0, %v1366
        %v1368 = vpop.f32.mrb[0].mxu0
        %v1369 = vadd.f32 0.0, %v1368
        %v1370 = vpop.f32.mrb[0].mxu0
        %v1371 = vadd.f32 0.0, %v1370
        %v1372 = vpop.f32.mrb[0].mxu0
        %v1373 = vadd.f32 0.0, %v1372
        %1374 = vmatprep.mubr.bf16.mxu0 %v780
        %1375 = vmatmul.mubr.bf16.gmra.mrb[0].mxu0 %v779
        %v1376 = vpop.f32.mrb[0].mxu0
        %v1377 = vadd.f32 0.0, %v1376
        %v1378 = vpop.f32.mrb[0].mxu0
        %v1379 = vadd.f32 0.0, %v1378
        %v1380 = vpop.f32.mrb[0].mxu0
        %v1381 = vadd.f32 0.0, %v1380
        %v1382 = vpop.f32.mrb[0].mxu0
        %v1383 = vadd.f32 0.0, %v1382
        %1384 = vmatprep.mubr.bf16.mxu0 %v783
        %1385 = vmatmul.mubr.bf16.gmra.mrb[0].mxu0 %v782
        %v1386 = vpop.f32.mrb[0].mxu0
        %v1387 = vadd.f32 0.0, %v1386
        %v1388 = vpop.f32.mrb[0].mxu0
        %v1389 = vadd.f32 0.0, %v1388
        %v1390 = vpop.f32.mrb[0].mxu0
        %v1391 = vadd.f32 0.0, %v1390
        %v1392 = vpop.f32.mrb[0].mxu0
        %v1393 = vadd.f32 0.0, %v1392
        %1394 = vmatprep.mubr.bf16.mxu0 %v786
        %1395 = vmatmul.mubr.bf16.gmra.mrb[0].mxu0 %v785
        %v1396 = vpop.f32.mrb[0].mxu0
        %v1397 = vadd.f32 0.0, %v1396
        %v1398 = vpop.f32.mrb[0].mxu0
        %v1399 = vadd.f32 0.0, %v1398
        %v1400 = vpop.f32.mrb[0].mxu0
        %v1401 = vadd.f32 0.0, %v1400
        %v1402 = vpop.f32.mrb[0].mxu0
        %v1403 = vadd.f32 0.0, %v1402
        %1404 = vmatprep.mubr.bf16.mxu0 %v789
        %1405 = vmatmul.mubr.bf16.gmra.mrb[0].mxu0 %v788
        %v1406 = vpop.f32.mrb[0].mxu0
        %v1407 = vadd.f32 0.0, %v1406
        %v1408 = vpop.f32.mrb[0].mxu0
        %v1409 = vadd.f32 0.0, %v1408
        %v1410 = vpop.f32.mrb[0].mxu0
        %v1411 = vadd.f32 0.0, %v1410
        %v1412 = vpop.f32.mrb[0].mxu0
        %v1413 = vadd.f32 0.0, %v1412
        %1414 = vmatprep.mubr.bf16.mxu0 %v792
        %1415 = vmatmul.mubr.bf16.gmra.mrb[0].mxu0 %v791
        %v1416 = vpop.f32.mrb[0].mxu0
        %v1417 = vadd.f32 0.0, %v1416
        %v1418 = vpop.f32.mrb[0].mxu0
        %v1419 = vadd.f32 0.0, %v1418
        %v1420 = vpop.f32.mrb[0].mxu0
        %v1421 = vadd.f32 0.0, %v1420
        %v1422 = vpop.f32.mrb[0].mxu0
        %v1423 = vadd.f32 0.0, %v1422
        %1424 = vmatprep.mubr.bf16.mxu0 %v795
        %1425 = vmatmul.mubr.bf16.gmra.mrb[0].mxu0 %v794
        %v1426 = vpop.f32.mrb[0].mxu0
        %v1427 = vadd.f32 0.0, %v1426
        %v1428 = vpop.f32.mrb[0].mxu0
        %v1429 = vadd.f32 0.0, %v1428
        %v1430 = vpop.f32.mrb[0].mxu0
        %v1431 = vadd.f32 0.0, %v1430
        %v1432 = vpop.f32.mrb[0].mxu0
        %v1433 = vadd.f32 0.0, %v1432
        %1434 = vmatprep.mubr.bf16.mxu0 %v798
        %1435 = vmatmul.mubr.bf16.gmra.mrb[0].mxu0 %v797
        %v1436 = vpop.f32.mrb[0].mxu0
        %v1437 = vadd.f32 0.0, %v1436
        %v1438 = vpop.f32.mrb[0].mxu0
        %v1439 = vadd.f32 0.0, %v1438
        %v1440 = vpop.f32.mrb[0].mxu0
        %v1441 = vadd.f32 0.0, %v1440
        %v1442 = vpop.f32.mrb[0].mxu0
        %v1443 = vadd.f32 0.0, %v1442
        %1444 = vmatprep.mubr.bf16.mxu0 %v801
        %1445 = vmatmul.mubr.bf16.gmra.mrb[0].mxu0 %v800
        %v1446 = vpop.f32.mrb[0].mxu0
        %v1447 = vadd.f32 0.0, %v1446
        %v1448 = vpop.f32.mrb[0].mxu0
        %v1449 = vadd.f32 0.0, %v1448
        %v1450 = vpop.f32.mrb[0].mxu0
        %v1451 = vadd.f32 0.0, %v1450
        %v1452 = vpop.f32.mrb[0].mxu0
        %v1453 = vadd.f32 0.0, %v1452
        %1454 = vmatprep.mubr.bf16.mxu0 %v804
        %1455 = vmatmul.mubr.bf16.gmra.mrb[0].mxu0 %v803
        %v1456 = vpop.f32.mrb[0].mxu0
        %v1457 = vadd.f32 0.0, %v1456
        %v1458 = vpop.f32.mrb[0].mxu0
        %v1459 = vadd.f32 0.0, %v1458
        %v1460 = vpop.f32.mrb[0].mxu0
        %v1461 = vadd.f32 0.0, %v1460
        %v1462 = vpop.f32.mrb[0].mxu0
        %v1463 = vadd.f32 0.0, %v1462
        %1464 = vmatprep.mubr.bf16.mxu0 %v807
        %1465 = vmatmul.mubr.bf16.gmra.mrb[0].mxu0 %v806
        %v1466 = vpop.f32.mrb[0].mxu0
        %v1467 = vadd.f32 0.0, %v1466
        %v1468 = vpop.f32.mrb[0].mxu0
        %v1469 = vadd.f32 0.0, %v1468
        %v1470 = vpop.f32.mrb[0].mxu0
        %v1471 = vadd.f32 0.0, %v1470
        %v1472 = vpop.f32.mrb[0].mxu0
        %v1473 = vadd.f32 0.0, %v1472
        %1474 = vmatprep.mubr.bf16.mxu0 %v810
        %1475 = vmatmul.mubr.bf16.gmra.mrb[0].mxu0 %v809
        %v1476 = vpop.f32.mrb[0].mxu0
        %v1477 = vadd.f32 0.0, %v1476
        %v1478 = vpop.f32.mrb[0].mxu0
        %v1479 = vadd.f32 0.0, %v1478
        %v1480 = vpop.f32.mrb[0].mxu0
        %v1481 = vadd.f32 0.0, %v1480
        %v1482 = vpop.f32.mrb[0].mxu0
        %v1483 = vadd.f32 0.0, %v1482
        %1484 = vdwg.mxu0
        %1485 = vmatprep.subr.bf16.mxu0 %v1197
        %1486 = vmatpush1.bf16.msra.mxu0 %v1196
        %1487 = vmatprep.subr.bf16.mxu0 %v1200
        %1488 = vmatpush1.bf16.msra.mxu0 %v1199
        %1489 = vmatprep.subr.bf16.mxu0 %v1203
        %1490 = vmatpush1.bf16.msra.mxu0 %v1202
        %1491 = vmatprep.subr.bf16.mxu0 %v1206
        %1492 = vmatpush1.bf16.msra.mxu0 %v1205
        %1493 = vmatprep.subr.bf16.mxu0 %v1209
        %1494 = vmatpush1.bf16.msra.mxu0 %v1208
        %1495 = vmatprep.subr.bf16.mxu0 %v1212
        %1496 = vmatpush1.bf16.msra.mxu0 %v1211
        %1497 = vmatprep.subr.bf16.mxu0 %v1215
        %1498 = vmatpush1.bf16.msra.mxu0 %v1214
        %1499 = vmatprep.subr.bf16.mxu0 %v1218
        %1500 = vmatpush1.bf16.msra.mxu0 %v1217
        %1501 = vmatprep.subr.bf16.mxu0 0
        %1502 = vmatpush1.bf16.msra.mxu0 0
        %1503 = vmatprep.subr.bf16.mxu0 0
        %1504 = vmatpush1.bf16.msra.mxu0 0
        %1505 = vmatprep.subr.bf16.mxu0 0
        %1506 = vmatpush1.bf16.msra.mxu0 0
        %1507 = vmatprep.subr.bf16.mxu0 0
        %1508 = vmatpush1.bf16.msra.mxu0 0
        %1509 = vmatprep.subr.bf16.mxu0 0
        %1510 = vmatpush1.bf16.msra.mxu0 0
        %1511 = vmatprep.subr.bf16.mxu0 0
        %1512 = vmatpush1.bf16.msra.mxu0 0
        %1513 = vmatprep.subr.bf16.mxu0 0
        %1514 = vmatpush1.bf16.msra.mxu0 0
        %1515 = vmatprep.subr.bf16.mxu0 0
        %1516 = vmatpush1.bf16.msra.mxu0 0
        %1517 = vmatprep.mubr.bf16.mxu0 0
        %1518 = vmatmul.mubr.bf16.gmra.mrb[0].mxu0 %v766
        %v1519 = vpop.f32.mrb[0].mxu0
        %v1520 = vadd.f32 %v1327, %v1519
        %v1521 = vpop.f32.mrb[0].mxu0
        %v1522 = vadd.f32 %v1329, %v1521
        %v1523 = vpop.f32.mrb[0].mxu0
        %v1524 = vadd.f32 %v1331, %v1523
        %v1525 = vpop.f32.mrb[0].mxu0
        %v1526 = vadd.f32 %v1333, %v1525
        %1527 = vmatprep.mubr.bf16.mxu0 0
        %1528 = vmatmul.mubr.bf16.gmra.mrb[0].mxu0 %v769
        %v1529 = vpop.f32.mrb[0].mxu0
        %v1530 = vadd.f32 %v1337, %v1529
        %v1531 = vpop.f32.mrb[0].mxu0
        %v1532 = vadd.f32 %v1339, %v1531
        %v1533 = vpop.f32.mrb[0].mxu0
        %v1534 = vadd.f32 %v1341, %v1533
        %v1535 = vpop.f32.mrb[0].mxu0
        %v1536 = vadd.f32 %v1343, %v1535
        %1537 = vmatprep.mubr.bf16.mxu0 0
        %1538 = vmatmul.mubr.bf16.gmra.mrb[0].mxu0 %v772
        %v1539 = vpop.f32.mrb[0].mxu0
        %v1540 = vadd.f32 %v1347, %v1539
        %v1541 = vpop.f32.mrb[0].mxu0
        %v1542 = vadd.f32 %v1349, %v1541
        %v1543 = vpop.f32.mrb[0].mxu0
        %v1544 = vadd.f32 %v1351, %v1543
        %v1545 = vpop.f32.mrb[0].mxu0
        %v1546 = vadd.f32 %v1353, %v1545
        %1547 = vmatprep.mubr.bf16.mxu0 0
        %1548 = vmatmul.mubr.bf16.gmra.mrb[0].mxu0 %v775
        %v1549 = vpop.f32.mrb[0].mxu0
        %v1550 = vadd.f32 %v1357, %v1549
        %v1551 = vpop.f32.mrb[0].mxu0
        %v1552 = vadd.f32 %v1359, %v1551
        %v1553 = vpop.f32.mrb[0].mxu0
        %v1554 = vadd.f32 %v1361, %v1553
        %v1555 = vpop.f32.mrb[0].mxu0
        %v1556 = vadd.f32 %v1363, %v1555
        %1557 = vmatprep.mubr.bf16.mxu0 0
        %1558 = vmatmul.mubr.bf16.gmra.mrb[0].mxu0 %v778
        %v1559 = vpop.f32.mrb[0].mxu0
        %v1560 = vadd.f32 %v1367, %v1559
        %v1561 = vpop.f32.mrb[0].mxu0
        %v1562 = vadd.f32 %v1369, %v1561
        %v1563 = vpop.f32.mrb[0].mxu0
        %v1564 = vadd.f32 %v1371, %v1563
        %v1565 = vpop.f32.mrb[0].mxu0
        %v1566 = vadd.f32 %v1373, %v1565
        %1567 = vmatprep.mubr.bf16.mxu0 0
        %1568 = vmatmul.mubr.bf16.gmra.mrb[0].mxu0 %v781
        %v1569 = vpop.f32.mrb[0].mxu0
        %v1570 = vadd.f32 %v1377, %v1569
        %v1571 = vpop.f32.mrb[0].mxu0
        %v1572 = vadd.f32 %v1379, %v1571
        %v1573 = vpop.f32.mrb[0].mxu0
        %v1574 = vadd.f32 %v1381, %v1573
        %v1575 = vpop.f32.mrb[0].mxu0
        %v1576 = vadd.f32 %v1383, %v1575
        %1577 = vmatprep.mubr.bf16.mxu0 0
        %1578 = vmatmul.mubr.bf16.gmra.mrb[0].mxu0 %v784
        %v1579 = vpop.f32.mrb[0].mxu0
        %v1580 = vadd.f32 %v1387, %v1579
        %v1581 = vpop.f32.mrb[0].mxu0
        %v1582 = vadd.f32 %v1389, %v1581
        %v1583 = vpop.f32.mrb[0].mxu0
        %v1584 = vadd.f32 %v1391, %v1583
        %v1585 = vpop.f32.mrb[0].mxu0
        %v1586 = vadd.f32 %v1393, %v1585
        %1587 = vmatprep.mubr.bf16.mxu0 0
        %1588 = vmatmul.mubr.bf16.gmra.mrb[0].mxu0 %v787
        %v1589 = vpop.f32.mrb[0].mxu0
        %v1590 = vadd.f32 %v1397, %v1589
        %v1591 = vpop.f32.mrb[0].mxu0
        %v1592 = vadd.f32 %v1399, %v1591
        %v1593 = vpop.f32.mrb[0].mxu0
        %v1594 = vadd.f32 %v1401, %v1593
        %v1595 = vpop.f32.mrb[0].mxu0
        %v1596 = vadd.f32 %v1403, %v1595
        %1597 = vmatprep.mubr.bf16.mxu0 0
        %1598 = vmatmul.mubr.bf16.gmra.mrb[0].mxu0 %v790
        %v1599 = vpop.f32.mrb[0].mxu0
        %v1600 = vadd.f32 %v1407, %v1599
        %v1601 = vpop.f32.mrb[0].mxu0
        %v1602 = vadd.f32 %v1409, %v1601
        %v1603 = vpop.f32.mrb[0].mxu0
        %v1604 = vadd.f32 %v1411, %v1603
        %v1605 = vpop.f32.mrb[0].mxu0
        %v1606 = vadd.f32 %v1413, %v1605
        %1607 = vmatprep.mubr.bf16.mxu0 0
        %1608 = vmatmul.mubr.bf16.gmra.mrb[0].mxu0 %v793
        %v1609 = vpop.f32.mrb[0].mxu0
        %v1610 = vadd.f32 %v1417, %v1609
        %v1611 = vpop.f32.mrb[0].mxu0
        %v1612 = vadd.f32 %v1419, %v1611
        %v1613 = vpop.f32.mrb[0].mxu0
        %v1614 = vadd.f32 %v1421, %v1613
        %v1615 = vpop.f32.mrb[0].mxu0
        %v1616 = vadd.f32 %v1423, %v1615
        %1617 = vmatprep.mubr.bf16.mxu0 0
        %1618 = vmatmul.mubr.bf16.gmra.mrb[0].mxu0 %v796
        %v1619 = vpop.f32.mrb[0].mxu0
        %v1620 = vadd.f32 %v1427, %v1619
        %v1621 = vpop.f32.mrb[0].mxu0
        %v1622 = vadd.f32 %v1429, %v1621
        %v1623 = vpop.f32.mrb[0].mxu0
        %v1624 = vadd.f32 %v1431, %v1623
        %v1625 = vpop.f32.mrb[0].mxu0
        %v1626 = vadd.f32 %v1433, %v1625
        %1627 = vmatprep.mubr.bf16.mxu0 0
        %1628 = vmatmul.mubr.bf16.gmra.mrb[0].mxu0 %v799
        %v1629 = vpop.f32.mrb[0].mxu0
        %v1630 = vadd.f32 %v1437, %v1629
        %v1631 = vpop.f32.mrb[0].mxu0
        %v1632 = vadd.f32 %v1439, %v1631
        %v1633 = vpop.f32.mrb[0].mxu0
        %v1634 = vadd.f32 %v1441, %v1633
        %v1635 = vpop.f32.mrb[0].mxu0
        %v1636 = vadd.f32 %v1443, %v1635
        %1637 = vmatprep.mubr.bf16.mxu0 0
        %1638 = vmatmul.mubr.bf16.gmra.mrb[0].mxu0 %v802
        %v1639 = vpop.f32.mrb[0].mxu0
        %v1640 = vadd.f32 %v1447, %v1639
        %v1641 = vpop.f32.mrb[0].mxu0
        %v1642 = vadd.f32 %v1449, %v1641
        %v1643 = vpop.f32.mrb[0].mxu0
        %v1644 = vadd.f32 %v1451, %v1643
        %v1645 = vpop.f32.mrb[0].mxu0
        %v1646 = vadd.f32 %v1453, %v1645
        %1647 = vmatprep.mubr.bf16.mxu0 0
        %1648 = vmatmul.mubr.bf16.gmra.mrb[0].mxu0 %v805
        %v1649 = vpop.f32.mrb[0].mxu0
        %v1650 = vadd.f32 %v1457, %v1649
        %v1651 = vpop.f32.mrb[0].mxu0
        %v1652 = vadd.f32 %v1459, %v1651
        %v1653 = vpop.f32.mrb[0].mxu0
        %v1654 = vadd.f32 %v1461, %v1653
        %v1655 = vpop.f32.mrb[0].mxu0
        %v1656 = vadd.f32 %v1463, %v1655
        %1657 = vmatprep.mubr.bf16.mxu0 0
        %1658 = vmatmul.mubr.bf16.gmra.mrb[0].mxu0 %v808
        %v1659 = vpop.f32.mrb[0].mxu0
        %v1660 = vadd.f32 %v1467, %v1659
        %v1661 = vpop.f32.mrb[0].mxu0
        %v1662 = vadd.f32 %v1469, %v1661
        %v1663 = vpop.f32.mrb[0].mxu0
        %v1664 = vadd.f32 %v1471, %v1663
        %v1665 = vpop.f32.mrb[0].mxu0
        %v1666 = vadd.f32 %v1473, %v1665
        %1667 = vmatprep.mubr.bf16.mxu0 0
        %1668 = vmatmul.mubr.bf16.gmra.mrb[0].mxu0 %v811
        %v1669 = vpop.f32.mrb[0].mxu0
        %v1670 = vadd.f32 %v1477, %v1669
        %v1671 = vpop.f32.mrb[0].mxu0
        %v1672 = vadd.f32 %v1479, %v1671
        %v1673 = vpop.f32.mrb[0].mxu0
        %v1674 = vadd.f32 %v1481, %v1673
        %v1675 = vpop.f32.mrb[0].mxu0
        %v1676 = vadd.f32 %v1483, %v1675
        %1677 = vdwg.mxu0
        %1678 = vmatprep.subr.bf16.mxu0 0
        %1679 = vmatpush1.bf16.msra.mxu0 %v1150
        %1680 = vmatprep.subr.bf16.mxu0 0
        %1681 = vmatpush1.bf16.msra.mxu0 %v1153
        %1682 = vmatprep.subr.bf16.mxu0 0
        %1683 = vmatpush1.bf16.msra.mxu0 %v1156
        %1684 = vmatprep.subr.bf16.mxu0 0
        %1685 = vmatpush1.bf16.msra.mxu0 %v1159
        %1686 = vmatprep.subr.bf16.mxu0 0
        %1687 = vmatpush1.bf16.msra.mxu0 %v1162
        %1688 = vmatprep.subr.bf16.mxu0 0
        %1689 = vmatpush1.bf16.msra.mxu0 %v1165
        %1690 = vmatprep.subr.bf16.mxu0 0
        %1691 = vmatpush1.bf16.msra.mxu0 %v1168
        %1692 = vmatprep.subr.bf16.mxu0 0
        %1693 = vmatpush1.bf16.msra.mxu0 %v1171
        %1694 = vmatprep.subr.bf16.mxu0 0
        %1695 = vmatpush1.bf16.msra.mxu0 %v1174
        %1696 = vmatprep.subr.bf16.mxu0 0
        %1697 = vmatpush1.bf16.msra.mxu0 %v1177
        %1698 = vmatprep.subr.bf16.mxu0 0
        %1699 = vmatpush1.bf16.msra.mxu0 %v1180
        %1700 = vmatprep.subr.bf16.mxu0 0
        %1701 = vmatpush1.bf16.msra.mxu0 %v1183
        %1702 = vmatprep.subr.bf16.mxu0 0
        %1703 = vmatpush1.bf16.msra.mxu0 %v1186
        %1704 = vmatprep.subr.bf16.mxu0 0
        %1705 = vmatpush1.bf16.msra.mxu0 %v1189
        %1706 = vmatprep.subr.bf16.mxu0 0
        %1707 = vmatpush1.bf16.msra.mxu0 %v1192
        %1708 = vmatprep.subr.bf16.mxu0 0
        %1709 = vmatpush1.bf16.msra.mxu0 %v1195
        %1710 = vmatprep.mubr.bf16.mxu0 %v765
        %1711 = vmatmul.mubr.bf16.gmra.mrb[0].mxu0 %v764
        %v1712 = vpop.f32.mrb[0].mxu0
        %v1713 = vadd.f32 0.0, %v1712
        %v1714 = vpop.f32.mrb[0].mxu0
        %v1715 = vpop.f32.mrb[0].mxu0
        %v1716 = vadd.f32 0.0, %v1715
        %v1717 = vpop.f32.mrb[0].mxu0
        %1718 = vmatprep.mubr.bf16.mxu0 %v768
        %1719 = vmatmul.mubr.bf16.gmra.mrb[0].mxu0 %v767
        %v1720 = vpop.f32.mrb[0].mxu0
        %v1721 = vadd.f32 0.0, %v1720
        %v1722 = vpop.f32.mrb[0].mxu0
        %v1723 = vpop.f32.mrb[0].mxu0
        %v1724 = vadd.f32 0.0, %v1723
        %v1725 = vpop.f32.mrb[0].mxu0
        %1726 = vmatprep.mubr.bf16.mxu0 %v771
        %1727 = vmatmul.mubr.bf16.gmra.mrb[0].mxu0 %v770
        %v1728 = vpop.f32.mrb[0].mxu0
        %v1729 = vadd.f32 0.0, %v1728
        %v1730 = vpop.f32.mrb[0].mxu0
        %v1731 = vpop.f32.mrb[0].mxu0
        %v1732 = vadd.f32 0.0, %v1731
        %v1733 = vpop.f32.mrb[0].mxu0
        %1734 = vmatprep.mubr.bf16.mxu0 %v774
        %1735 = vmatmul.mubr.bf16.gmra.mrb[0].mxu0 %v773
        %v1736 = vpop.f32.mrb[0].mxu0
        %v1737 = vadd.f32 0.0, %v1736
        %v1738 = vpop.f32.mrb[0].mxu0
        %v1739 = vpop.f32.mrb[0].mxu0
        %v1740 = vadd.f32 0.0, %v1739
        %v1741 = vpop.f32.mrb[0].mxu0
        %1742 = vmatprep.mubr.bf16.mxu0 %v777
        %1743 = vmatmul.mubr.bf16.gmra.mrb[0].mxu0 %v776
        %v1744 = vpop.f32.mrb[0].mxu0
        %v1745 = vadd.f32 0.0, %v1744
        %v1746 = vpop.f32.mrb[0].mxu0
        %v1747 = vpop.f32.mrb[0].mxu0
        %v1748 = vadd.f32 0.0, %v1747
        %v1749 = vpop.f32.mrb[0].mxu0
        %1750 = vmatprep.mubr.bf16.mxu0 %v780
        %1751 = vmatmul.mubr.bf16.gmra.mrb[0].mxu0 %v779
        %v1752 = vpop.f32.mrb[0].mxu0
        %v1753 = vadd.f32 0.0, %v1752
        %v1754 = vpop.f32.mrb[0].mxu0
        %v1755 = vpop.f32.mrb[0].mxu0
        %v1756 = vadd.f32 0.0, %v1755
        %v1757 = vpop.f32.mrb[0].mxu0
        %1758 = vmatprep.mubr.bf16.mxu0 %v783
        %1759 = vmatmul.mubr.bf16.gmra.mrb[0].mxu0 %v782
        %v1760 = vpop.f32.mrb[0].mxu0
        %v1761 = vadd.f32 0.0, %v1760
        %v1762 = vpop.f32.mrb[0].mxu0
        %v1763 = vpop.f32.mrb[0].mxu0
        %v1764 = vadd.f32 0.0, %v1763
        %v1765 = vpop.f32.mrb[0].mxu0
        %1766 = vmatprep.mubr.bf16.mxu0 %v786
        %1767 = vmatmul.mubr.bf16.gmra.mrb[0].mxu0 %v785
        %v1768 = vpop.f32.mrb[0].mxu0
        %v1769 = vadd.f32 0.0, %v1768
        %v1770 = vpop.f32.mrb[0].mxu0
        %v1771 = vpop.f32.mrb[0].mxu0
        %v1772 = vadd.f32 0.0, %v1771
        %v1773 = vpop.f32.mrb[0].mxu0
        %1774 = vmatprep.mubr.bf16.mxu0 %v789
        %1775 = vmatmul.mubr.bf16.gmra.mrb[0].mxu0 %v788
        %v1776 = vpop.f32.mrb[0].mxu0
        %v1777 = vadd.f32 0.0, %v1776
        %v1778 = vpop.f32.mrb[0].mxu0
        %v1779 = vpop.f32.mrb[0].mxu0
        %v1780 = vadd.f32 0.0, %v1779
        %v1781 = vpop.f32.mrb[0].mxu0
        %1782 = vmatprep.mubr.bf16.mxu0 %v792
        %1783 = vmatmul.mubr.bf16.gmra.mrb[0].mxu0 %v791
        %v1784 = vpop.f32.mrb[0].mxu0
        %v1785 = vadd.f32 0.0, %v1784
        %v1786 = vpop.f32.mrb[0].mxu0
        %v1787 = vpop.f32.mrb[0].mxu0
        %v1788 = vadd.f32 0.0, %v1787
        %v1789 = vpop.f32.mrb[0].mxu0
        %1790 = vmatprep.mubr.bf16.mxu0 %v795
        %1791 = vmatmul.mubr.bf16.gmra.mrb[0].mxu0 %v794
        %v1792 = vpop.f32.mrb[0].mxu0
        %v1793 = vadd.f32 0.0, %v1792
        %v1794 = vpop.f32.mrb[0].mxu0
        %v1795 = vpop.f32.mrb[0].mxu0
        %v1796 = vadd.f32 0.0, %v1795
        %v1797 = vpop.f32.mrb[0].mxu0
        %1798 = vmatprep.mubr.bf16.mxu0 %v798
        %1799 = vmatmul.mubr.bf16.gmra.mrb[0].mxu0 %v797
        %v1800 = vpop.f32.mrb[0].mxu0
        %v1801 = vadd.f32 0.0, %v1800
        %v1802 = vpop.f32.mrb[0].mxu0
        %v1803 = vpop.f32.mrb[0].mxu0
        %v1804 = vadd.f32 0.0, %v1803
        %v1805 = vpop.f32.mrb[0].mxu0
        %1806 = vmatprep.mubr.bf16.mxu0 %v801
        %1807 = vmatmul.mubr.bf16.gmra.mrb[0].mxu0 %v800
        %v1808 = vpop.f32.mrb[0].mxu0
        %v1809 = vadd.f32 0.0, %v1808
        %v1810 = vpop.f32.mrb[0].mxu0
        %v1811 = vpop.f32.mrb[0].mxu0
        %v1812 = vadd.f32 0.0, %v1811
        %v1813 = vpop.f32.mrb[0].mxu0
        %1814 = vmatprep.mubr.bf16.mxu0 %v804
        %1815 = vmatmul.mubr.bf16.gmra.mrb[0].mxu0 %v803
        %v1816 = vpop.f32.mrb[0].mxu0
        %v1817 = vadd.f32 0.0, %v1816
        %v1818 = vpop.f32.mrb[0].mxu0
        %v1819 = vpop.f32.mrb[0].mxu0
        %v1820 = vadd.f32 0.0, %v1819
        %v1821 = vpop.f32.mrb[0].mxu0
        %1822 = vmatprep.mubr.bf16.mxu0 %v807
        %1823 = vmatmul.mubr.bf16.gmra.mrb[0].mxu0 %v806
        %v1824 = vpop.f32.mrb[0].mxu0
        %v1825 = vadd.f32 0.0, %v1824
        %v1826 = vpop.f32.mrb[0].mxu0
        %v1827 = vpop.f32.mrb[0].mxu0
        %v1828 = vadd.f32 0.0, %v1827
        %v1829 = vpop.f32.mrb[0].mxu0
        %1830 = vmatprep.mubr.bf16.mxu0 %v810
        %1831 = vmatmul.mubr.bf16.gmra.mrb[0].mxu0 %v809
        %v1832 = vpop.f32.mrb[0].mxu0
        %v1833 = vadd.f32 0.0, %v1832
        %v1834 = vpop.f32.mrb[0].mxu0
        %v1835 = vpop.f32.mrb[0].mxu0
        %v1836 = vadd.f32 0.0, %v1835
        %v1837 = vpop.f32.mrb[0].mxu0
        %1838 = vdwg.mxu0
        %1839 = vmatprep.subr.bf16.mxu0 0
        %1840 = vmatpush1.bf16.msra.mxu0 %v1198
        %1841 = vmatprep.subr.bf16.mxu0 0
        %1842 = vmatpush1.bf16.msra.mxu0 %v1201
        %1843 = vmatprep.subr.bf16.mxu0 0
        %1844 = vmatpush1.bf16.msra.mxu0 %v1204
        %1845 = vmatprep.subr.bf16.mxu0 0
        %1846 = vmatpush1.bf16.msra.mxu0 %v1207
        %1847 = vmatprep.subr.bf16.mxu0 0
        %1848 = vmatpush1.bf16.msra.mxu0 %v1210
        %1849 = vmatprep.subr.bf16.mxu0 0
        %1850 = vmatpush1.bf16.msra.mxu0 %v1213
        %1851 = vmatprep.subr.bf16.mxu0 0
        %1852 = vmatpush1.bf16.msra.mxu0 %v1216
        %1853 = vmatprep.subr.bf16.mxu0 0
        %1854 = vmatpush1.bf16.msra.mxu0 %v1219
        %1855 = vmatprep.subr.bf16.mxu0 0
        %1856 = vmatpush1.bf16.msra.mxu0 0
        %1857 = vmatprep.subr.bf16.mxu0 0
        %1858 = vmatpush1.bf16.msra.mxu0 0
        %1859 = vmatprep.subr.bf16.mxu0 0
        %1860 = vmatpush1.bf16.msra.mxu0 0
        %1861 = vmatprep.subr.bf16.mxu0 0
        %1862 = vmatpush1.bf16.msra.mxu0 0
        %1863 = vmatprep.subr.bf16.mxu0 0
        %1864 = vmatpush1.bf16.msra.mxu0 0
        %1865 = vmatprep.subr.bf16.mxu0 0
        %1866 = vmatpush1.bf16.msra.mxu0 0
        %1867 = vmatprep.subr.bf16.mxu0 0
        %1868 = vmatpush1.bf16.msra.mxu0 0
        %1869 = vmatprep.subr.bf16.mxu0 0
        %1870 = vmatpush1.bf16.msra.mxu0 0
        %1871 = vmatprep.mubr.bf16.mxu0 0
        %1872 = vmatmul.mubr.bf16.gmra.mrb[0].mxu0 %v766
        %v1873 = vpop.f32.mrb[0].mxu0
        %v1874 = vadd.f32 %v1713, %v1873
        %v1875 = vpop.f32.mrb[0].mxu0
        %v1876 = vpop.f32.mrb[0].mxu0
        %v1877 = vadd.f32 %v1716, %v1876
        %v1878 = vpop.f32.mrb[0].mxu0
        %1879 = vmatprep.mubr.bf16.mxu0 0
        %1880 = vmatmul.mubr.bf16.gmra.mrb[0].mxu0 %v769
        %v1881 = vpop.f32.mrb[0].mxu0
        %v1882 = vadd.f32 %v1721, %v1881
        %v1883 = vpop.f32.mrb[0].mxu0
        %v1884 = vpop.f32.mrb[0].mxu0
        %v1885 = vadd.f32 %v1724, %v1884
        %v1886 = vpop.f32.mrb[0].mxu0
        %1887 = vmatprep.mubr.bf16.mxu0 0
        %1888 = vmatmul.mubr.bf16.gmra.mrb[0].mxu0 %v772
        %v1889 = vpop.f32.mrb[0].mxu0
        %v1890 = vadd.f32 %v1729, %v1889
        %v1891 = vpop.f32.mrb[0].mxu0
        %v1892 = vpop.f32.mrb[0].mxu0
        %v1893 = vadd.f32 %v1732, %v1892
        %v1894 = vpop.f32.mrb[0].mxu0
        %1895 = vmatprep.mubr.bf16.mxu0 0
        %1896 = vmatmul.mubr.bf16.gmra.mrb[0].mxu0 %v775
        %v1897 = vpop.f32.mrb[0].mxu0
        %v1898 = vadd.f32 %v1737, %v1897
        %v1899 = vpop.f32.mrb[0].mxu0
        %v1900 = vpop.f32.mrb[0].mxu0
        %v1901 = vadd.f32 %v1740, %v1900
        %v1902 = vpop.f32.mrb[0].mxu0
        %1903 = vmatprep.mubr.bf16.mxu0 0
        %1904 = vmatmul.mubr.bf16.gmra.mrb[0].mxu0 %v778
        %v1905 = vpop.f32.mrb[0].mxu0
        %v1906 = vadd.f32 %v1745, %v1905
        %v1907 = vpop.f32.mrb[0].mxu0
        %v1908 = vpop.f32.mrb[0].mxu0
        %v1909 = vadd.f32 %v1748, %v1908
        %v1910 = vpop.f32.mrb[0].mxu0
        %1911 = vmatprep.mubr.bf16.mxu0 0
        %1912 = vmatmul.mubr.bf16.gmra.mrb[0].mxu0 %v781
        %v1913 = vpop.f32.mrb[0].mxu0
        %v1914 = vadd.f32 %v1753, %v1913
        %v1915 = vpop.f32.mrb[0].mxu0
        %v1916 = vpop.f32.mrb[0].mxu0
        %v1917 = vadd.f32 %v1756, %v1916
        %v1918 = vpop.f32.mrb[0].mxu0
        %1919 = vmatprep.mubr.bf16.mxu0 0
        %1920 = vmatmul.mubr.bf16.gmra.mrb[0].mxu0 %v784
        %v1921 = vpop.f32.mrb[0].mxu0
        %v1922 = vadd.f32 %v1761, %v1921
        %v1923 = vpop.f32.mrb[0].mxu0
        %v1924 = vpop.f32.mrb[0].mxu0
        %v1925 = vadd.f32 %v1764, %v1924
        %v1926 = vpop.f32.mrb[0].mxu0
        %1927 = vmatprep.mubr.bf16.mxu0 0
        %1928 = vmatmul.mubr.bf16.gmra.mrb[0].mxu0 %v787
        %v1929 = vpop.f32.mrb[0].mxu0
        %v1930 = vadd.f32 %v1769, %v1929
        %v1931 = vpop.f32.mrb[0].mxu0
        %v1932 = vpop.f32.mrb[0].mxu0
        %v1933 = vadd.f32 %v1772, %v1932
        %v1934 = vpop.f32.mrb[0].mxu0
        %1935 = vmatprep.mubr.bf16.mxu0 0
        %1936 = vmatmul.mubr.bf16.gmra.mrb[0].mxu0 %v790
        %v1937 = vpop.f32.mrb[0].mxu0
        %v1938 = vadd.f32 %v1777, %v1937
        %v1939 = vpop.f32.mrb[0].mxu0
        %v1940 = vpop.f32.mrb[0].mxu0
        %v1941 = vadd.f32 %v1780, %v1940
        %v1942 = vpop.f32.mrb[0].mxu0
        %1943 = vmatprep.mubr.bf16.mxu0 0
        %1944 = vmatmul.mubr.bf16.gmra.mrb[0].mxu0 %v793
        %v1945 = vpop.f32.mrb[0].mxu0
        %v1946 = vadd.f32 %v1785, %v1945
        %v1947 = vpop.f32.mrb[0].mxu0
        %v1948 = vpop.f32.mrb[0].mxu0
        %v1949 = vadd.f32 %v1788, %v1948
        %v1950 = vpop.f32.mrb[0].mxu0
        %1951 = vmatprep.mubr.bf16.mxu0 0
        %1952 = vmatmul.mubr.bf16.gmra.mrb[0].mxu0 %v796
        %v1953 = vpop.f32.mrb[0].mxu0
        %v1954 = vadd.f32 %v1793, %v1953
        %v1955 = vpop.f32.mrb[0].mxu0
        %v1956 = vpop.f32.mrb[0].mxu0
        %v1957 = vadd.f32 %v1796, %v1956
        %v1958 = vpop.f32.mrb[0].mxu0
        %1959 = vmatprep.mubr.bf16.mxu0 0
        %1960 = vmatmul.mubr.bf16.gmra.mrb[0].mxu0 %v799
        %v1961 = vpop.f32.mrb[0].mxu0
        %v1962 = vadd.f32 %v1801, %v1961
        %v1963 = vpop.f32.mrb[0].mxu0
        %v1964 = vpop.f32.mrb[0].mxu0
        %v1965 = vadd.f32 %v1804, %v1964
        %v1966 = vpop.f32.mrb[0].mxu0
        %1967 = vmatprep.mubr.bf16.mxu0 0
        %1968 = vmatmul.mubr.bf16.gmra.mrb[0].mxu0 %v802
        %v1969 = vpop.f32.mrb[0].mxu0
        %v1970 = vadd.f32 %v1809, %v1969
        %v1971 = vpop.f32.mrb[0].mxu0
        %v1972 = vpop.f32.mrb[0].mxu0
        %v1973 = vadd.f32 %v1812, %v1972
        %v1974 = vpop.f32.mrb[0].mxu0
        %1975 = vmatprep.mubr.bf16.mxu0 0
        %1976 = vmatmul.mubr.bf16.gmra.mrb[0].mxu0 %v805
        %v1977 = vpop.f32.mrb[0].mxu0
        %v1978 = vadd.f32 %v1817, %v1977
        %v1979 = vpop.f32.mrb[0].mxu0
        %v1980 = vpop.f32.mrb[0].mxu0
        %v1981 = vadd.f32 %v1820, %v1980
        %v1982 = vpop.f32.mrb[0].mxu0
        %1983 = vmatprep.mubr.bf16.mxu0 0
        %1984 = vmatmul.mubr.bf16.gmra.mrb[0].mxu0 %v808
        %v1985 = vpop.f32.mrb[0].mxu0
        %v1986 = vadd.f32 %v1825, %v1985
        %v1987 = vpop.f32.mrb[0].mxu0
        %v1988 = vpop.f32.mrb[0].mxu0
        %v1989 = vadd.f32 %v1828, %v1988
        %v1990 = vpop.f32.mrb[0].mxu0
        %1991 = vmatprep.mubr.bf16.mxu0 0
        %1992 = vmatmul.mubr.bf16.gmra.mrb[0].mxu0 %v811
        %v1993 = vpop.f32.mrb[0].mxu0
        %v1994 = vadd.f32 %v1833, %v1993
        %v1995 = vpop.f32.mrb[0].mxu0
        %v1996 = vpop.f32.mrb[0].mxu0
        %v1997 = vadd.f32 %v1836, %v1996
        %v1998 = vpop.f32.mrb[0].mxu0
        %1999 = vdwg.mxu0
        %v2000 = vsel %vm396, %v1670, 0.0
        %v2001 = vsel %vm397, %v1674, 0.0
        %v2002 = vsel %vm398, %v1520, 0.0
        %v2003 = vsel %vm399, %v1524, 0.0
        %v2004 = vsel %vm400, %v1530, 0.0
        %v2005 = vsel %vm401, %v1534, 0.0
        %v2006 = vsel %vm402, %v1540, 0.0
        %v2007 = vsel %vm403, %v1544, 0.0
        %v2008 = vsel %vm404, %v1550, 0.0
        %v2009 = vsel %vm405, %v1554, 0.0
        %v2010 = vsel %vm406, %v1560, 0.0
        %v2011 = vsel %vm407, %v1564, 0.0
        %v2012 = vsel %vm408, %v1570, 0.0
        %v2013 = vsel %vm409, %v1574, 0.0
        %v2014 = vsel %vm410, %v1580, 0.0
        %v2015 = vsel %vm411, %v1584, 0.0
        %v2016 = vsel %vm412, %v1590, 0.0
        %v2017 = vsel %vm413, %v1594, 0.0
        %v2018 = vsel %vm414, %v1600, 0.0
        %v2019 = vsel %vm415, %v1604, 0.0
        %v2020 = vsel %vm416, %v1610, 0.0
        %v2021 = vsel %vm417, %v1614, 0.0
        %v2022 = vsel %vm418, %v1620, 0.0
        %v2023 = vsel %vm419, %v1624, 0.0
        %v2024 = vsel %vm420, %v1630, 0.0
        %v2025 = vsel %vm421, %v1634, 0.0
        %v2026 = vsel %vm422, %v1640, 0.0
        %v2027 = vsel %vm423, %v1644, 0.0
        %v2028 = vsel %vm424, %v1650, 0.0
        %v2029 = vsel %vm425, %v1654, 0.0
        %v2030 = vsel %vm426, %v1660, 0.0
        %v2031 = vsel %vm427, %v1664, 0.0
        %v2032 = vadd.f32 %v1522, %v2000
        %v2033 = vadd.f32 %v1526, %v2001
        %v2034 = vadd.f32 %v1532, %v2002
        %v2035 = vadd.f32 %v1536, %v2003
        %v2036 = vadd.f32 %v1542, %v2004
        %v2037 = vadd.f32 %v1546, %v2005
        %v2038 = vadd.f32 %v1552, %v2006
        %v2039 = vadd.f32 %v1556, %v2007
        %v2040 = vadd.f32 %v1562, %v2008
        %v2041 = vadd.f32 %v1566, %v2009
        %v2042 = vadd.f32 %v1572, %v2010
        %v2043 = vadd.f32 %v1576, %v2011
        %v2044 = vadd.f32 %v1582, %v2012
        %v2045 = vadd.f32 %v1586, %v2013
        %v2046 = vadd.f32 %v1592, %v2014
        %v2047 = vadd.f32 %v1596, %v2015
        %v2048 = vadd.f32 %v1602, %v2016
        %v2049 = vadd.f32 %v1606, %v2017
        %v2050 = vadd.f32 %v1612, %v2018
        %v2051 = vadd.f32 %v1616, %v2019
        %v2052 = vadd.f32 %v1622, %v2020
        %v2053 = vadd.f32 %v1626, %v2021
        %v2054 = vadd.f32 %v1632, %v2022
        %v2055 = vadd.f32 %v1636, %v2023
        %v2056 = vadd.f32 %v1642, %v2024
        %v2057 = vadd.f32 %v1646, %v2025
        %v2058 = vadd.f32 %v1652, %v2026
        %v2059 = vadd.f32 %v1656, %v2027
        %v2060 = vadd.f32 %v1662, %v2028
        %v2061 = vadd.f32 %v1666, %v2029
        %v2062 = vadd.f32 %v1672, %v2030
        %v2063 = vadd.f32 %v1676, %v2031
        %v2064 = vsel %vm428, %v1882, 0.0
        %v2065 = vsel %vm429, %v1885, 0.0
        %v2066 = vsel %vm430, %v1890, 0.0
        %v2067 = vsel %vm431, %v1893, 0.0
        %v2068 = vsel %vm432, %v1898, 0.0
        %v2069 = vsel %vm433, %v1901, 0.0
        %v2070 = vsel %vm434, %v1906, 0.0
        %v2071 = vsel %vm435, %v1909, 0.0
        %v2072 = vsel %vm436, %v1914, 0.0
        %v2073 = vsel %vm437, %v1917, 0.0
        %v2074 = vsel %vm438, %v1922, 0.0
        %v2075 = vsel %vm439, %v1925, 0.0
        %v2076 = vsel %vm440, %v1930, 0.0
        %v2077 = vsel %vm441, %v1933, 0.0
        %v2078 = vsel %vm442, %v1938, 0.0
        %v2079 = vsel %vm443, %v1941, 0.0
        %v2080 = vsel %vm444, %v1946, 0.0
        %v2081 = vsel %vm445, %v1949, 0.0
        %v2082 = vsel %vm446, %v1954, 0.0
        %v2083 = vsel %vm447, %v1957, 0.0
        %v2084 = vsel %vm448, %v1962, 0.0
        %v2085 = vsel %vm449, %v1965, 0.0
        %v2086 = vsel %vm450, %v1970, 0.0
        %v2087 = vsel %vm451, %v1973, 0.0
        %v2088 = vsel %vm452, %v1978, 0.0
        %v2089 = vsel %vm453, %v1981, 0.0
        %v2090 = vsel %vm454, %v1986, 0.0
        %v2091 = vsel %vm455, %v1989, 0.0
        %v2092 = vsel %vm456, %v1994, 0.0
        %v2093 = vsel %vm457, %v1997, 0.0
        %v2094 = vsel %vm458, %v1874, 0.0
        %v2095 = vsel %vm459, %v1877, 0.0
        %v2096 = vadd.f32 %v2032, %v2064
        %v2097 = vadd.f32 %v2033, %v2065
        %v2098 = vadd.f32 %v2034, %v2066
        %v2099 = vadd.f32 %v2035, %v2067
        %v2100 = vadd.f32 %v2036, %v2068
        %v2101 = vadd.f32 %v2037, %v2069
        %v2102 = vadd.f32 %v2038, %v2070
        %v2103 = vadd.f32 %v2039, %v2071
        %v2104 = vadd.f32 %v2040, %v2072
        %v2105 = vadd.f32 %v2041, %v2073
        %v2106 = vadd.f32 %v2042, %v2074
        %v2107 = vadd.f32 %v2043, %v2075
        %v2108 = vadd.f32 %v2044, %v2076
        %v2109 = vadd.f32 %v2045, %v2077
        %v2110 = vadd.f32 %v2046, %v2078
        %v2111 = vadd.f32 %v2047, %v2079
        %v2112 = vadd.f32 %v2048, %v2080
        %v2113 = vadd.f32 %v2049, %v2081
        %v2114 = vadd.f32 %v2050, %v2082
        %v2115 = vadd.f32 %v2051, %v2083
        %v2116 = vadd.f32 %v2052, %v2084
        %v2117 = vadd.f32 %v2053, %v2085
        %v2118 = vadd.f32 %v2054, %v2086
        %v2119 = vadd.f32 %v2055, %v2087
        %v2120 = vadd.f32 %v2056, %v2088
        %v2121 = vadd.f32 %v2057, %v2089
        %v2122 = vadd.f32 %v2058, %v2090
        %v2123 = vadd.f32 %v2059, %v2091
        %v2124 = vadd.f32 %v2060, %v2092
        %v2125 = vadd.f32 %v2061, %v2093
        %v2126 = vadd.f32 %v2062, %v2094
        %v2127 = vadd.f32 %v2063, %v2095
        %v2128 = vld [vmem:[%s5] sm:$0x1]
        %v2130 = vlaneseq
        %v2131 = vshrl.u32 %v2130, 7
        %v2132 = vsub.s32 0, %v2131
        %v2133 = vrot.slane %v2128, %v2132
        %v2135 = vmul.f32 %v2096, %v2133
        %v2136 = vmul.f32 %v2097, %v2133
        %v2137 = vmul.f32 %v2098, %v2133
        %v2138 = vmul.f32 %v2099, %v2133
        %v2139 = vmul.f32 %v2100, %v2133
        %v2140 = vmul.f32 %v2101, %v2133
        %v2141 = vmul.f32 %v2102, %v2133
        %v2142 = vmul.f32 %v2103, %v2133
        %v2143 = vmul.f32 %v2104, %v2133
        %v2144 = vmul.f32 %v2105, %v2133
        %v2145 = vmul.f32 %v2106, %v2133
        %v2146 = vmul.f32 %v2107, %v2133
        %v2147 = vmul.f32 %v2108, %v2133
        %v2148 = vmul.f32 %v2109, %v2133
        %v2149 = vmul.f32 %v2110, %v2133
        %v2150 = vmul.f32 %v2111, %v2133
        %v2151 = vmul.f32 %v2112, %v2133
        %v2152 = vmul.f32 %v2113, %v2133
        %v2153 = vmul.f32 %v2114, %v2133
        %v2154 = vmul.f32 %v2115, %v2133
        %v2155 = vmul.f32 %v2116, %v2133
        %v2156 = vmul.f32 %v2117, %v2133
        %v2157 = vmul.f32 %v2118, %v2133
        %v2158 = vmul.f32 %v2119, %v2133
        %v2159 = vmul.f32 %v2120, %v2133
        %v2160 = vmul.f32 %v2121, %v2133
        %v2161 = vmul.f32 %v2122, %v2133
        %v2162 = vmul.f32 %v2123, %v2133
        %v2163 = vmul.f32 %v2124, %v2133
        %v2164 = vmul.f32 %v2125, %v2133
        %v2165 = vmul.f32 %v2126, %v2133
        %v2166 = vmul.f32 %v2127, %v2133
        %v2167 = vld [vmem:[%s6] sm:$0x1]
        %v2169 = vlaneseq
        %v2170 = vshrl.u32 %v2169, 7
        %v2171 = vsub.s32 0, %v2170
        %v2172 = vrot.slane %v2167, %v2171
        %v2174 = vadd.f32 %v2135, %v2172
        %v2175 = vadd.f32 %v2136, %v2172
        %v2176 = vadd.f32 %v2137, %v2172
        %v2177 = vadd.f32 %v2138, %v2172
        %v2178 = vadd.f32 %v2139, %v2172
        %v2179 = vadd.f32 %v2140, %v2172
        %v2180 = vadd.f32 %v2141, %v2172
        %v2181 = vadd.f32 %v2142, %v2172
        %v2182 = vadd.f32 %v2143, %v2172
        %v2183 = vadd.f32 %v2144, %v2172
        %v2184 = vadd.f32 %v2145, %v2172
        %v2185 = vadd.f32 %v2146, %v2172
        %v2186 = vadd.f32 %v2147, %v2172
        %v2187 = vadd.f32 %v2148, %v2172
        %v2188 = vadd.f32 %v2149, %v2172
        %v2189 = vadd.f32 %v2150, %v2172
        %v2190 = vadd.f32 %v2151, %v2172
        %v2191 = vadd.f32 %v2152, %v2172
        %v2192 = vadd.f32 %v2153, %v2172
        %v2193 = vadd.f32 %v2154, %v2172
        %v2194 = vadd.f32 %v2155, %v2172
        %v2195 = vadd.f32 %v2156, %v2172
        %v2196 = vadd.f32 %v2157, %v2172
        %v2197 = vadd.f32 %v2158, %v2172
        %v2198 = vadd.f32 %v2159, %v2172
        %v2199 = vadd.f32 %v2160, %v2172
        %v2200 = vadd.f32 %v2161, %v2172
        %v2201 = vadd.f32 %v2162, %v2172
        %v2202 = vadd.f32 %v2163, %v2172
        %v2203 = vadd.f32 %v2164, %v2172
        %v2204 = vadd.f32 %v2165, %v2172
        %v2205 = vadd.f32 %v2166, %v2172
        %v2206 = vmax.f32 %v2174, 0.0
        %v2207 = vmax.f32 %v2175, 0.0
        %v2208 = vmax.f32 %v2176, 0.0
        %v2209 = vmax.f32 %v2177, 0.0
        %v2210 = vmax.f32 %v2178, 0.0
        %v2211 = vmax.f32 %v2179, 0.0
        %v2212 = vmax.f32 %v2180, 0.0
        %v2213 = vmax.f32 %v2181, 0.0
        %v2214 = vmax.f32 %v2182, 0.0
        %v2215 = vmax.f32 %v2183, 0.0
        %v2216 = vmax.f32 %v2184, 0.0
        %v2217 = vmax.f32 %v2185, 0.0
        %v2218 = vmax.f32 %v2186, 0.0
        %v2219 = vmax.f32 %v2187, 0.0
        %v2220 = vmax.f32 %v2188, 0.0
        %v2221 = vmax.f32 %v2189, 0.0
        %v2222 = vmax.f32 %v2190, 0.0
        %v2223 = vmax.f32 %v2191, 0.0
        %v2224 = vmax.f32 %v2192, 0.0
        %v2225 = vmax.f32 %v2193, 0.0
        %v2226 = vmax.f32 %v2194, 0.0
        %v2227 = vmax.f32 %v2195, 0.0
        %v2228 = vmax.f32 %v2196, 0.0
        %v2229 = vmax.f32 %v2197, 0.0
        %v2230 = vmax.f32 %v2198, 0.0
        %v2231 = vmax.f32 %v2199, 0.0
        %v2232 = vmax.f32 %v2200, 0.0
        %v2233 = vmax.f32 %v2201, 0.0
        %v2234 = vmax.f32 %v2202, 0.0
        %v2235 = vmax.f32 %v2203, 0.0
        %v2236 = vmax.f32 %v2204, 0.0
        %v2237 = vmax.f32 %v2205, 0.0
        %v2238 = vrot.slane %v2206, 7
        %v2239 = vrot.slane %v2207, 7
        %v2240 = vrot.slane %v2208, 7
        %v2241 = vrot.slane %v2209, 7
        %v2242 = vrot.slane %v2210, 7
        %v2243 = vrot.slane %v2211, 7
        %v2244 = vrot.slane %v2212, 7
        %v2245 = vrot.slane %v2213, 7
        %v2246 = vrot.slane %v2214, 7
        %v2247 = vrot.slane %v2215, 7
        %v2248 = vrot.slane %v2216, 7
        %v2249 = vrot.slane %v2217, 7
        %v2250 = vrot.slane %v2218, 7
        %v2251 = vrot.slane %v2219, 7
        %v2252 = vrot.slane %v2220, 7
        %v2253 = vrot.slane %v2221, 7
        %v2254 = vrot.slane %v2222, 7
        %v2255 = vrot.slane %v2223, 7
        %v2256 = vrot.slane %v2224, 7
        %v2257 = vrot.slane %v2225, 7
        %v2258 = vrot.slane %v2226, 7
        %v2259 = vrot.slane %v2227, 7
        %v2260 = vrot.slane %v2228, 7
        %v2261 = vrot.slane %v2229, 7
        %v2262 = vrot.slane %v2230, 7
        %v2263 = vrot.slane %v2231, 7
        %v2264 = vrot.slane %v2232, 7
        %v2265 = vrot.slane %v2233, 7
        %v2266 = vrot.slane %v2234, 7
        %v2267 = vrot.slane %v2235, 7
        %v2268 = vrot.slane %v2236, 7
        %v2269 = vrot.slane %v2237, 7
        %v2270 = vsel %vm602, %v2268, %v2269
        %v2271 = vsel %vm602, %v2267, %v2268
        %v2272 = vsel %vm602, %v2266, %v2267
        %v2273 = vsel %vm602, %v2265, %v2266
        %v2274 = vsel %vm602, %v2264, %v2265
        %v2275 = vsel %vm602, %v2263, %v2264
        %v2276 = vsel %vm602, %v2262, %v2263
        %v2277 = vsel %vm602, %v2261, %v2262
        %v2278 = vsel %vm602, %v2260, %v2261
        %v2279 = vsel %vm602, %v2259, %v2260
        %v2280 = vsel %vm602, %v2258, %v2259
        %v2281 = vsel %vm602, %v2257, %v2258
        %v2282 = vsel %vm602, %v2256, %v2257
        %v2283 = vsel %vm602, %v2255, %v2256
        %v2284 = vsel %vm602, %v2254, %v2255
        %v2285 = vsel %vm602, %v2253, %v2254
        %v2286 = vsel %vm602, %v2252, %v2253
        %v2287 = vsel %vm602, %v2251, %v2252
        %v2288 = vsel %vm602, %v2250, %v2251
        %v2289 = vsel %vm602, %v2249, %v2250
        %v2290 = vsel %vm602, %v2248, %v2249
        %v2291 = vsel %vm602, %v2247, %v2248
        %v2292 = vsel %vm602, %v2246, %v2247
        %v2293 = vsel %vm602, %v2245, %v2246
        %v2294 = vsel %vm602, %v2244, %v2245
        %v2295 = vsel %vm602, %v2243, %v2244
        %v2296 = vsel %vm602, %v2242, %v2243
        %v2297 = vsel %vm602, %v2241, %v2242
        %v2298 = vsel %vm602, %v2240, %v2241
        %v2299 = vsel %vm602, %v2239, %v2240
        %v2300 = vsel %vm602, %v2238, %v2239
        %v2301 = vsel %vm602, %v2269, %v2238
        %v2302 = vsel %vm392, %v2301, 0.0
        %v2303 = vsel %vm393, %v2300, 0.0
        %v2304 = vsel %vm392, %v2299, 0.0
        %v2305 = vsel %vm393, %v2298, 0.0
        %v2306 = vsel %vm392, %v2297, 0.0
        %v2307 = vsel %vm393, %v2296, 0.0
        %v2308 = vsel %vm392, %v2295, 0.0
        %v2309 = vsel %vm393, %v2294, 0.0
        %v2310 = vsel %vm392, %v2293, 0.0
        %v2311 = vsel %vm393, %v2292, 0.0
        %v2312 = vsel %vm392, %v2291, 0.0
        %v2313 = vsel %vm393, %v2290, 0.0
        %v2314 = vsel %vm392, %v2289, 0.0
        %v2315 = vsel %vm393, %v2288, 0.0
        %v2316 = vsel %vm392, %v2287, 0.0
        %v2317 = vsel %vm393, %v2286, 0.0
        %v2318 = vsel %vm392, %v2285, 0.0
        %v2319 = vsel %vm393, %v2284, 0.0
        %v2320 = vsel %vm392, %v2283, 0.0
        %v2321 = vsel %vm393, %v2282, 0.0
        %v2322 = vsel %vm392, %v2281, 0.0
        %v2323 = vsel %vm393, %v2280, 0.0
        %v2324 = vsel %vm392, %v2279, 0.0
        %v2325 = vsel %vm393, %v2278, 0.0
        %v2326 = vsel %vm392, %v2277, 0.0
        %v2327 = vsel %vm393, %v2276, 0.0
        %v2328 = vsel %vm392, %v2275, 0.0
        %v2329 = vsel %vm393, %v2274, 0.0
        %v2330 = vsel %vm392, %v2273, 0.0
        %v2331 = vsel %vm393, %v2272, 0.0
        %v2332 = vsel %vm392, %v2271, 0.0
        %v2333 = vsel %vm393, %v2270, 0.0
        %v2334 = vrot.slane %v2206, 1
        %v2335 = vrot.slane %v2207, 1
        %v2336 = vrot.slane %v2208, 1
        %v2337 = vrot.slane %v2209, 1
        %v2338 = vrot.slane %v2210, 1
        %v2339 = vrot.slane %v2211, 1
        %v2340 = vrot.slane %v2212, 1
        %v2341 = vrot.slane %v2213, 1
        %v2342 = vrot.slane %v2214, 1
        %v2343 = vrot.slane %v2215, 1
        %v2344 = vrot.slane %v2216, 1
        %v2345 = vrot.slane %v2217, 1
        %v2346 = vrot.slane %v2218, 1
        %v2347 = vrot.slane %v2219, 1
        %v2348 = vrot.slane %v2220, 1
        %v2349 = vrot.slane %v2221, 1
        %v2350 = vrot.slane %v2222, 1
        %v2351 = vrot.slane %v2223, 1
        %v2352 = vrot.slane %v2224, 1
        %v2353 = vrot.slane %v2225, 1
        %v2354 = vrot.slane %v2226, 1
        %v2355 = vrot.slane %v2227, 1
        %v2356 = vrot.slane %v2228, 1
        %v2357 = vrot.slane %v2229, 1
        %v2358 = vrot.slane %v2230, 1
        %v2359 = vrot.slane %v2231, 1
        %v2360 = vrot.slane %v2232, 1
        %v2361 = vrot.slane %v2233, 1
        %v2362 = vrot.slane %v2234, 1
        %v2363 = vrot.slane %v2235, 1
        %v2364 = vrot.slane %v2236, 1
        %v2365 = vrot.slane %v2237, 1
        %v2366 = vsel %vm699, %v2364, %v2365
        %v2367 = vsel %vm699, %v2363, %v2364
        %v2368 = vsel %vm699, %v2362, %v2363
        %v2369 = vsel %vm699, %v2361, %v2362
        %v2370 = vsel %vm699, %v2360, %v2361
        %v2371 = vsel %vm699, %v2359, %v2360
        %v2372 = vsel %vm699, %v2358, %v2359
        %v2373 = vsel %vm699, %v2357, %v2358
        %v2374 = vsel %vm699, %v2356, %v2357
        %v2375 = vsel %vm699, %v2355, %v2356
        %v2376 = vsel %vm699, %v2354, %v2355
        %v2377 = vsel %vm699, %v2353, %v2354
        %v2378 = vsel %vm699, %v2352, %v2353
        %v2379 = vsel %vm699, %v2351, %v2352
        %v2380 = vsel %vm699, %v2350, %v2351
        %v2381 = vsel %vm699, %v2349, %v2350
        %v2382 = vsel %vm699, %v2348, %v2349
        %v2383 = vsel %vm699, %v2347, %v2348
        %v2384 = vsel %vm699, %v2346, %v2347
        %v2385 = vsel %vm699, %v2345, %v2346
        %v2386 = vsel %vm699, %v2344, %v2345
        %v2387 = vsel %vm699, %v2343, %v2344
        %v2388 = vsel %vm699, %v2342, %v2343
        %v2389 = vsel %vm699, %v2341, %v2342
        %v2390 = vsel %vm699, %v2340, %v2341
        %v2391 = vsel %vm699, %v2339, %v2340
        %v2392 = vsel %vm699, %v2338, %v2339
        %v2393 = vsel %vm699, %v2337, %v2338
        %v2394 = vsel %vm699, %v2336, %v2337
        %v2395 = vsel %vm699, %v2335, %v2336
        %v2396 = vsel %vm699, %v2334, %v2335
        %v2397 = vsel %vm699, %v2365, %v2334
        %v2398 = vsel %vm394, %v2396, 0.0
        %v2399 = vsel %vm395, %v2395, 0.0
        %v2400 = vsel %vm394, %v2394, 0.0
        %v2401 = vsel %vm395, %v2393, 0.0
        %v2402 = vsel %vm394, %v2392, 0.0
        %v2403 = vsel %vm395, %v2391, 0.0
        %v2404 = vsel %vm394, %v2390, 0.0
        %v2405 = vsel %vm395, %v2389, 0.0
        %v2406 = vsel %vm394, %v2388, 0.0
        %v2407 = vsel %vm395, %v2387, 0.0
        %v2408 = vsel %vm394, %v2386, 0.0
        %v2409 = vsel %vm395, %v2385, 0.0
        %v2410 = vsel %vm394, %v2384, 0.0
        %v2411 = vsel %vm395, %v2383, 0.0
        %v2412 = vsel %vm394, %v2382, 0.0
        %v2413 = vsel %vm395, %v2381, 0.0
        %v2414 = vsel %vm394, %v2380, 0.0
        %v2415 = vsel %vm395, %v2379, 0.0
        %v2416 = vsel %vm394, %v2378, 0.0
        %v2417 = vsel %vm395, %v2377, 0.0
        %v2418 = vsel %vm394, %v2376, 0.0
        %v2419 = vsel %vm395, %v2375, 0.0
        %v2420 = vsel %vm394, %v2374, 0.0
        %v2421 = vsel %vm395, %v2373, 0.0
        %v2422 = vsel %vm394, %v2372, 0.0
        %v2423 = vsel %vm395, %v2371, 0.0
        %v2424 = vsel %vm394, %v2370, 0.0
        %v2425 = vsel %vm395, %v2369, 0.0
        %v2426 = vsel %vm394, %v2368, 0.0
        %v2427 = vsel %vm395, %v2367, 0.0
        %v2428 = vsel %vm394, %v2366, 0.0
        %v2429 = vsel %vm395, %v2397, 0.0
        %v2430 = vpack.c.bf16 %v2303, %v2302
        %v2431 = vpack.c.bf16 %v2207, %v2206
        %v2432 = vpack.c.bf16 %v2399, %v2398
        %v2433 = vpack.c.bf16 %v2305, %v2304
        %v2434 = vpack.c.bf16 %v2209, %v2208
        %v2435 = vpack.c.bf16 %v2401, %v2400
        %v2436 = vpack.c.bf16 %v2307, %v2306
        %v2437 = vpack.c.bf16 %v2211, %v2210
        %v2438 = vpack.c.bf16 %v2403, %v2402
        %v2439 = vpack.c.bf16 %v2309, %v2308
        %v2440 = vpack.c.bf16 %v2213, %v2212
        %v2441 = vpack.c.bf16 %v2405, %v2404
        %v2442 = vpack.c.bf16 %v2311, %v2310
        %v2443 = vpack.c.bf16 %v2215, %v2214
        %v2444 = vpack.c.bf16 %v2407, %v2406
        %v2445 = vpack.c.bf16 %v2313, %v2312
        %v2446 = vpack.c.bf16 %v2217, %v2216
        %v2447 = vpack.c.bf16 %v2409, %v2408
        %v2448 = vpack.c.bf16 %v2315, %v2314
        %v2449 = vpack.c.bf16 %v2219, %v2218
        %v2450 = vpack.c.bf16 %v2411, %v2410
        %v2451 = vpack.c.bf16 %v2317, %v2316
        %v2452 = vpack.c.bf16 %v2221, %v2220
        %v2453 = vpack.c.bf16 %v2413, %v2412
        %v2454 = vpack.c.bf16 %v2319, %v2318
        %v2455 = vpack.c.bf16 %v2223, %v2222
        %v2456 = vpack.c.bf16 %v2415, %v2414
        %v2457 = vpack.c.bf16 %v2321, %v2320
        %v2458 = vpack.c.bf16 %v2225, %v2224
        %v2459 = vpack.c.bf16 %v2417, %v2416
        %v2460 = vpack.c.bf16 %v2323, %v2322
        %v2461 = vpack.c.bf16 %v2227, %v2226
        %v2462 = vpack.c.bf16 %v2419, %v2418
        %v2463 = vpack.c.bf16 %v2325, %v2324
        %v2464 = vpack.c.bf16 %v2229, %v2228
        %v2465 = vpack.c.bf16 %v2421, %v2420
        %v2466 = vpack.c.bf16 %v2327, %v2326
        %v2467 = vpack.c.bf16 %v2231, %v2230
        %v2468 = vpack.c.bf16 %v2423, %v2422
        %v2469 = vpack.c.bf16 %v2329, %v2328
        %v2470 = vpack.c.bf16 %v2233, %v2232
        %v2471 = vpack.c.bf16 %v2425, %v2424
        %v2472 = vpack.c.bf16 %v2331, %v2330
        %v2473 = vpack.c.bf16 %v2235, %v2234
        %v2474 = vpack.c.bf16 %v2427, %v2426
        %v2475 = vpack.c.bf16 %v2333, %v2332
        %v2476 = vpack.c.bf16 %v2237, %v2236
        %v2477 = vpack.c.bf16 %v2429, %v2428
        %v2478 = vld [vmem:[#allocation7] sm:$0xff]
        %v2479 = vld [vmem:[#allocation7 + $0x8] sm:$0xf]
        %v2480 = vld [vmem:[#allocation7 + $0xc] sm:$0xff]
        %v2481 = vld [vmem:[#allocation7 + $0x14] sm:$0xf]
        %v2482 = vld [vmem:[#allocation7 + $0x18] sm:$0xff]
        %v2483 = vld [vmem:[#allocation7 + $0x20] sm:$0xf]
        %v2484 = vld [vmem:[#allocation7 + $0x24] sm:$0xff]
        %v2485 = vld [vmem:[#allocation7 + $0x2c] sm:$0xf]
        %v2486 = vld [vmem:[#allocation7 + $0x30] sm:$0xff]
        %v2487 = vld [vmem:[#allocation7 + $0x38] sm:$0xf]
        %v2488 = vld [vmem:[#allocation7 + $0x3c] sm:$0xff]
        %v2489 = vld [vmem:[#allocation7 + $0x44] sm:$0xf]
        %v2490 = vld [vmem:[#allocation7 + $0x48] sm:$0xff]
        %v2491 = vld [vmem:[#allocation7 + $0x50] sm:$0xf]
        %v2492 = vld [vmem:[#allocation7 + $0x54] sm:$0xff]
        %v2493 = vld [vmem:[#allocation7 + $0x5c] sm:$0xf]
        %v2494 = vld [vmem:[#allocation7 + $0x60] sm:$0xff]
        %v2495 = vld [vmem:[#allocation7 + $0x68] sm:$0xf]
        %v2496 = vld [vmem:[#allocation7 + $0x6c] sm:$0xff]
        %v2497 = vld [vmem:[#allocation7 + $0x74] sm:$0xf]
        %v2498 = vld [vmem:[#allocation7 + $0x78] sm:$0xff]
        %v2499 = vld [vmem:[#allocation7 + $0x80] sm:$0xf]
        %v2500 = vld [vmem:[#allocation7 + $0x84] sm:$0xff]
        %v2501 = vld [vmem:[#allocation7 + $0x8c] sm:$0xf]
        %v2502 = vld [vmem:[#allocation7 + $0x90] sm:$0xff]
        %v2503 = vld [vmem:[#allocation7 + $0x98] sm:$0xf]
        %v2504 = vld [vmem:[#allocation7 + $0x9c] sm:$0xff]
        %v2505 = vld [vmem:[#allocation7 + $0xa4] sm:$0xf]
        %v2506 = vld [vmem:[#allocation7 + $0xa8] sm:$0xff]
        %v2507 = vld [vmem:[#allocation7 + $0xb0] sm:$0xf]
        %v2508 = vld [vmem:[#allocation7 + $0xb4] sm:$0xff]
        %v2509 = vld [vmem:[#allocation7 + $0xbc] sm:$0xf]
        %v2510 = vld [vmem:[#allocation7 + $0xc0] sm:$0xff]
        %v2511 = vld [vmem:[#allocation7 + $0xc8] sm:$0xf]
        %v2512 = vld [vmem:[#allocation7 + $0xcc] sm:$0xff]
        %v2513 = vld [vmem:[#allocation7 + $0xd4] sm:$0xf]
        %v2514 = vld [vmem:[#allocation7 + $0xd8] sm:$0xff]
        %v2515 = vld [vmem:[#allocation7 + $0xe0] sm:$0xf]
        %v2516 = vld [vmem:[#allocation7 + $0xe4] sm:$0xff]
        %v2517 = vld [vmem:[#allocation7 + $0xec] sm:$0xf]
        %v2518 = vld [vmem:[#allocation7 + $0xf0] sm:$0xff]
        %v2519 = vld [vmem:[#allocation7 + $0xf8] sm:$0xf]
        %v2520 = vld [vmem:[#allocation7 + $0xfc] sm:$0xff]
        %v2521 = vld [vmem:[#allocation7 + $0x104] sm:$0xf]
        %v2522 = vld [vmem:[#allocation7 + $0x108] sm:$0xff]
        %v2523 = vld [vmem:[#allocation7 + $0x110] sm:$0xf]
        %v2524 = vld [vmem:[#allocation7 + $0x114] sm:$0xff]
        %v2525 = vld [vmem:[#allocation7 + $0x11c] sm:$0xf]
        %v2526 = vld [vmem:[#allocation7 + $0x120] sm:$0xff]
        %v2527 = vld [vmem:[#allocation7 + $0x128] sm:$0xf]
        %v2528 = vld [vmem:[#allocation7 + $0x12c] sm:$0xff]
        %v2529 = vld [vmem:[#allocation7 + $0x134] sm:$0xf]
        %v2530 = vld [vmem:[#allocation7 + $0x138] sm:$0xff]
        %v2531 = vld [vmem:[#allocation7 + $0x140] sm:$0xf]
        %v2532 = vld [vmem:[#allocation7 + $0x144] sm:$0xff]
        %v2533 = vld [vmem:[#allocation7 + $0x14c] sm:$0xf]
        %v2534 = vld [vmem:[#allocation7 + $0x150] sm:$0xff]
        %v2535 = vld [vmem:[#allocation7 + $0x158] sm:$0xf]
        %v2536 = vld [vmem:[#allocation7 + $0x15c] sm:$0xff]
        %v2537 = vld [vmem:[#allocation7 + $0x164] sm:$0xf]
        %v2538 = vld [vmem:[#allocation7 + $0x168] sm:$0xff]
        %v2539 = vld [vmem:[#allocation7 + $0x170] sm:$0xf]
        %v2540 = vld [vmem:[#allocation7 + $0x174] sm:$0xff]
        %v2541 = vld [vmem:[#allocation7 + $0x17c] sm:$0xf]
        %v2542 = vld [vmem:[#allocation7 + $0x180] sm:$0xff]
        %v2543 = vld [vmem:[#allocation7 + $0x188] sm:$0xf]
        %v2544 = vld [vmem:[#allocation7 + $0x18c] sm:$0xff]
        %v2545 = vld [vmem:[#allocation7 + $0x194] sm:$0xf]
        %v2546 = vld [vmem:[#allocation7 + $0x198] sm:$0xff]
        %v2547 = vld [vmem:[#allocation7 + $0x1a0] sm:$0xf]
        %v2548 = vld [vmem:[#allocation7 + $0x1a4] sm:$0xff]
        %v2549 = vld [vmem:[#allocation7 + $0x1ac] sm:$0xf]
        %v2550 = vld [vmem:[#allocation7 + $0x1b0] sm:$0xff]
        %v2551 = vld [vmem:[#allocation7 + $0x1b8] sm:$0xf]
        %v2552 = vld [vmem:[#allocation7 + $0x1bc] sm:$0xff]
        %v2553 = vld [vmem:[#allocation7 + $0x1c4] sm:$0xf]
        %v2554 = vld [vmem:[#allocation7 + $0x1c8] sm:$0xff]
        %v2555 = vld [vmem:[#allocation7 + $0x1d0] sm:$0xf]
        %v2556 = vld [vmem:[#allocation7 + $0x1d4] sm:$0xff]
        %v2557 = vld [vmem:[#allocation7 + $0x1dc] sm:$0xf]
        %v2558 = vld [vmem:[#allocation7 + $0x1e0] sm:$0xff]
        %v2559 = vld [vmem:[#allocation7 + $0x1e8] sm:$0xf]
        %v2560 = vld [vmem:[#allocation7 + $0x1ec] sm:$0xff]
        %v2561 = vld [vmem:[#allocation7 + $0x1f4] sm:$0xf]
        %v2562 = vld [vmem:[#allocation7 + $0x1f8] sm:$0xff]
        %v2563 = vld [vmem:[#allocation7 + $0x200] sm:$0xf]
        %v2564 = vld [vmem:[#allocation7 + $0x204] sm:$0xff]
        %v2565 = vld [vmem:[#allocation7 + $0x20c] sm:$0xf]
        %v2566 = vld [vmem:[#allocation7 + $0x210] sm:$0xff]
        %v2567 = vld [vmem:[#allocation7 + $0x218] sm:$0xf]
        %v2568 = vld [vmem:[#allocation7 + $0x21c] sm:$0xff]
        %v2569 = vld [vmem:[#allocation7 + $0x224] sm:$0xf]
        %v2570 = vld [vmem:[#allocation7 + $0x228] sm:$0xff]
        %v2571 = vld [vmem:[#allocation7 + $0x230] sm:$0xf]
        %v2572 = vld [vmem:[#allocation7 + $0x234] sm:$0xff]
        %v2573 = vld [vmem:[#allocation7 + $0x23c] sm:$0xf]
        %v2670 = vunpack.c.l.b16 %v2478
        %v2671 = vunpack.c.h.b16 %v2478
        %v2672 = vunpack.c.l.b16 %v2479
        %v2673 = vunpack.c.l.b16 %v2480
        %v2674 = vunpack.c.h.b16 %v2480
        %v2675 = vunpack.c.l.b16 %v2481
        %v2676 = vunpack.c.l.b16 %v2482
        %v2677 = vunpack.c.h.b16 %v2482
        %v2678 = vunpack.c.l.b16 %v2483
        %v2679 = vunpack.c.l.b16 %v2484
        %v2680 = vunpack.c.h.b16 %v2484
        %v2681 = vunpack.c.l.b16 %v2485
        %v2682 = vunpack.c.l.b16 %v2486
        %v2683 = vunpack.c.h.b16 %v2486
        %v2684 = vunpack.c.l.b16 %v2487
        %v2685 = vunpack.c.l.b16 %v2488
        %v2686 = vunpack.c.h.b16 %v2488
        %v2687 = vunpack.c.l.b16 %v2489
        %v2688 = vunpack.c.l.b16 %v2490
        %v2689 = vunpack.c.h.b16 %v2490
        %v2690 = vunpack.c.l.b16 %v2491
        %v2691 = vunpack.c.l.b16 %v2492
        %v2692 = vunpack.c.h.b16 %v2492
        %v2693 = vunpack.c.l.b16 %v2493
        %v2694 = vunpack.c.l.b16 %v2494
        %v2695 = vunpack.c.h.b16 %v2494
        %v2696 = vunpack.c.l.b16 %v2495
        %v2697 = vunpack.c.l.b16 %v2496
        %v2698 = vunpack.c.h.b16 %v2496
        %v2699 = vunpack.c.l.b16 %v2497
        %v2700 = vunpack.c.l.b16 %v2498
        %v2701 = vunpack.c.h.b16 %v2498
        %v2702 = vunpack.c.l.b16 %v2499
        %v2703 = vunpack.c.l.b16 %v2500
        %v2704 = vunpack.c.h.b16 %v2500
        %v2705 = vunpack.c.l.b16 %v2501
        %v2706 = vunpack.c.l.b16 %v2502
        %v2707 = vunpack.c.h.b16 %v2502
        %v2708 = vunpack.c.l.b16 %v2503
        %v2709 = vunpack.c.l.b16 %v2504
        %v2710 = vunpack.c.h.b16 %v2504
        %v2711 = vunpack.c.l.b16 %v2505
        %v2712 = vunpack.c.l.b16 %v2506
        %v2713 = vunpack.c.h.b16 %v2506
        %v2714 = vunpack.c.l.b16 %v2507
        %v2715 = vunpack.c.l.b16 %v2508
        %v2716 = vunpack.c.h.b16 %v2508
        %v2717 = vunpack.c.l.b16 %v2509
        %v2718 = vunpack.c.l.b16 %v2510
        %v2719 = vunpack.c.h.b16 %v2510
        %v2720 = vunpack.c.l.b16 %v2511
        %v2721 = vunpack.c.l.b16 %v2512
        %v2722 = vunpack.c.h.b16 %v2512
        %v2723 = vunpack.c.l.b16 %v2513
        %v2724 = vunpack.c.l.b16 %v2514
        %v2725 = vunpack.c.h.b16 %v2514
        %v2726 = vunpack.c.l.b16 %v2515
        %v2727 = vunpack.c.l.b16 %v2516
        %v2728 = vunpack.c.h.b16 %v2516
        %v2729 = vunpack.c.l.b16 %v2517
        %v2730 = vunpack.c.l.b16 %v2518
        %v2731 = vunpack.c.h.b16 %v2518
        %v2732 = vunpack.c.l.b16 %v2519
        %v2733 = vunpack.c.l.b16 %v2520
        %v2734 = vunpack.c.h.b16 %v2520
        %v2735 = vunpack.c.l.b16 %v2521
        %v2736 = vunpack.c.l.b16 %v2522
        %v2737 = vunpack.c.h.b16 %v2522
        %v2738 = vunpack.c.l.b16 %v2523
        %v2739 = vunpack.c.l.b16 %v2524
        %v2740 = vunpack.c.h.b16 %v2524
        %v2741 = vunpack.c.l.b16 %v2525
        %v2742 = vunpack.c.l.b16 %v2526
        %v2743 = vunpack.c.h.b16 %v2526
        %v2744 = vunpack.c.l.b16 %v2527
        %v2745 = vunpack.c.l.b16 %v2528
        %v2746 = vunpack.c.h.b16 %v2528
        %v2747 = vunpack.c.l.b16 %v2529
        %v2748 = vunpack.c.l.b16 %v2530
        %v2749 = vunpack.c.h.b16 %v2530
        %v2750 = vunpack.c.l.b16 %v2531
        %v2751 = vunpack.c.l.b16 %v2532
        %v2752 = vunpack.c.h.b16 %v2532
        %v2753 = vunpack.c.l.b16 %v2533
        %v2754 = vunpack.c.l.b16 %v2534
        %v2755 = vunpack.c.h.b16 %v2534
        %v2756 = vunpack.c.l.b16 %v2535
        %v2757 = vunpack.c.l.b16 %v2536
        %v2758 = vunpack.c.h.b16 %v2536
        %v2759 = vunpack.c.l.b16 %v2537
        %v2760 = vunpack.c.l.b16 %v2538
        %v2761 = vunpack.c.h.b16 %v2538
        %v2762 = vunpack.c.l.b16 %v2539
        %v2763 = vunpack.c.l.b16 %v2540
        %v2764 = vunpack.c.h.b16 %v2540
        %v2765 = vunpack.c.l.b16 %v2541
        %v2766 = vunpack.c.l.b16 %v2542
        %v2767 = vunpack.c.h.b16 %v2542
        %v2768 = vunpack.c.l.b16 %v2543
        %v2769 = vunpack.c.l.b16 %v2544
        %v2770 = vunpack.c.h.b16 %v2544
        %v2771 = vunpack.c.l.b16 %v2545
        %v2772 = vunpack.c.l.b16 %v2546
        %v2773 = vunpack.c.h.b16 %v2546
        %v2774 = vunpack.c.l.b16 %v2547
        %v2775 = vunpack.c.l.b16 %v2548
        %v2776 = vunpack.c.h.b16 %v2548
        %v2777 = vunpack.c.l.b16 %v2549
        %v2778 = vunpack.c.l.b16 %v2550
        %v2779 = vunpack.c.h.b16 %v2550
        %v2780 = vunpack.c.l.b16 %v2551
        %v2781 = vunpack.c.l.b16 %v2552
        %v2782 = vunpack.c.h.b16 %v2552
        %v2783 = vunpack.c.l.b16 %v2553
        %v2784 = vunpack.c.l.b16 %v2554
        %v2785 = vunpack.c.h.b16 %v2554
        %v2786 = vunpack.c.l.b16 %v2555
        %v2787 = vunpack.c.l.b16 %v2556
        %v2788 = vunpack.c.h.b16 %v2556
        %v2789 = vunpack.c.l.b16 %v2557
        %v2790 = vunpack.c.l.b16 %v2558
        %v2791 = vunpack.c.h.b16 %v2558
        %v2792 = vunpack.c.l.b16 %v2559
        %v2793 = vunpack.c.l.b16 %v2560
        %v2794 = vunpack.c.h.b16 %v2560
        %v2795 = vunpack.c.l.b16 %v2561
        %v2796 = vunpack.c.l.b16 %v2562
        %v2797 = vunpack.c.h.b16 %v2562
        %v2798 = vunpack.c.l.b16 %v2563
        %v2799 = vunpack.c.l.b16 %v2564
        %v2800 = vunpack.c.h.b16 %v2564
        %v2801 = vunpack.c.l.b16 %v2565
        %v2802 = vunpack.c.l.b16 %v2566
        %v2803 = vunpack.c.h.b16 %v2566
        %v2804 = vunpack.c.l.b16 %v2567
        %v2805 = vunpack.c.l.b16 %v2568
        %v2806 = vunpack.c.h.b16 %v2568
        %v2807 = vunpack.c.l.b16 %v2569
        %v2808 = vunpack.c.l.b16 %v2570
        %v2809 = vunpack.c.h.b16 %v2570
        %v2810 = vunpack.c.l.b16 %v2571
        %v2811 = vunpack.c.l.b16 %v2572
        %v2812 = vunpack.c.h.b16 %v2572
        %v2813 = vunpack.c.l.b16 %v2573
        %v2814 = vpack.c.b16 %v2673, %v2670
        %v2815 = vpack.c.b16 %v2674, %v2671
        %v2816 = vpack.c.b16 %v2675, %v2672
        %v2817 = vpack.c.b16 %v2679, %v2676
        %v2818 = vpack.c.b16 %v2680, %v2677
        %v2819 = vpack.c.b16 %v2681, %v2678
        %v2820 = vpack.c.b16 %v2685, %v2682
        %v2821 = vpack.c.b16 %v2686, %v2683
        %v2822 = vpack.c.b16 %v2687, %v2684
        %v2823 = vpack.c.b16 %v2691, %v2688
        %v2824 = vpack.c.b16 %v2692, %v2689
        %v2825 = vpack.c.b16 %v2693, %v2690
        %v2826 = vpack.c.b16 %v2697, %v2694
        %v2827 = vpack.c.b16 %v2698, %v2695
        %v2828 = vpack.c.b16 %v2699, %v2696
        %v2829 = vpack.c.b16 %v2703, %v2700
        %v2830 = vpack.c.b16 %v2704, %v2701
        %v2831 = vpack.c.b16 %v2705, %v2702
        %v2832 = vpack.c.b16 %v2709, %v2706
        %v2833 = vpack.c.b16 %v2710, %v2707
        %v2834 = vpack.c.b16 %v2711, %v2708
        %v2835 = vpack.c.b16 %v2715, %v2712
        %v2836 = vpack.c.b16 %v2716, %v2713
        %v2837 = vpack.c.b16 %v2717, %v2714
        %v2838 = vpack.c.b16 %v2721, %v2718
        %v2839 = vpack.c.b16 %v2722, %v2719
        %v2840 = vpack.c.b16 %v2723, %v2720
        %v2841 = vpack.c.b16 %v2727, %v2724
        %v2842 = vpack.c.b16 %v2728, %v2725
        %v2843 = vpack.c.b16 %v2729, %v2726
        %v2844 = vpack.c.b16 %v2733, %v2730
        %v2845 = vpack.c.b16 %v2734, %v2731
        %v2846 = vpack.c.b16 %v2735, %v2732
        %v2847 = vpack.c.b16 %v2739, %v2736
        %v2848 = vpack.c.b16 %v2740, %v2737
        %v2849 = vpack.c.b16 %v2741, %v2738
        %v2850 = vpack.c.b16 %v2745, %v2742
        %v2851 = vpack.c.b16 %v2746, %v2743
        %v2852 = vpack.c.b16 %v2747, %v2744
        %v2853 = vpack.c.b16 %v2751, %v2748
        %v2854 = vpack.c.b16 %v2752, %v2749
        %v2855 = vpack.c.b16 %v2753, %v2750
        %v2856 = vpack.c.b16 %v2757, %v2754
        %v2857 = vpack.c.b16 %v2758, %v2755
        %v2858 = vpack.c.b16 %v2759, %v2756
        %v2859 = vpack.c.b16 %v2763, %v2760
        %v2860 = vpack.c.b16 %v2764, %v2761
        %v2861 = vpack.c.b16 %v2765, %v2762
        %v2862 = vpack.c.b16 %v2769, %v2766
        %v2863 = vpack.c.b16 %v2770, %v2767
        %v2864 = vpack.c.b16 %v2771, %v2768
        %v2865 = vpack.c.b16 %v2775, %v2772
        %v2866 = vpack.c.b16 %v2776, %v2773
        %v2867 = vpack.c.b16 %v2777, %v2774
        %v2868 = vpack.c.b16 %v2781, %v2778
        %v2869 = vpack.c.b16 %v2782, %v2779
        %v2870 = vpack.c.b16 %v2783, %v2780
        %v2871 = vpack.c.b16 %v2787, %v2784
        %v2872 = vpack.c.b16 %v2788, %v2785
        %v2873 = vpack.c.b16 %v2789, %v2786
        %v2874 = vpack.c.b16 %v2793, %v2790
        %v2875 = vpack.c.b16 %v2794, %v2791
        %v2876 = vpack.c.b16 %v2795, %v2792
        %v2877 = vpack.c.b16 %v2799, %v2796
        %v2878 = vpack.c.b16 %v2800, %v2797
        %v2879 = vpack.c.b16 %v2801, %v2798
        %v2880 = vpack.c.b16 %v2805, %v2802
        %v2881 = vpack.c.b16 %v2806, %v2803
        %v2882 = vpack.c.b16 %v2807, %v2804
        %v2883 = vpack.c.b16 %v2811, %v2808
        %v2884 = vpack.c.b16 %v2812, %v2809
        %v2885 = vpack.c.b16 %v2813, %v2810
        %2958 = vmatprep.subr.bf16.mxu0 %v2815
        %2959 = vmatpush1.bf16.msra.mxu0 %v2814
        %2960 = vmatprep.subr.bf16.mxu0 %v2818
        %2961 = vmatpush1.bf16.msra.mxu0 %v2817
        %2962 = vmatprep.subr.bf16.mxu0 %v2821
        %2963 = vmatpush1.bf16.msra.mxu0 %v2820
        %2964 = vmatprep.subr.bf16.mxu0 %v2824
        %2965 = vmatpush1.bf16.msra.mxu0 %v2823
        %2966 = vmatprep.subr.bf16.mxu0 %v2827
        %2967 = vmatpush1.bf16.msra.mxu0 %v2826
        %2968 = vmatprep.subr.bf16.mxu0 %v2830
        %2969 = vmatpush1.bf16.msra.mxu0 %v2829
        %2970 = vmatprep.subr.bf16.mxu0 %v2833
        %2971 = vmatpush1.bf16.msra.mxu0 %v2832
        %2972 = vmatprep.subr.bf16.mxu0 %v2836
        %2973 = vmatpush1.bf16.msra.mxu0 %v2835
        %2974 = vmatprep.subr.bf16.mxu0 %v2839
        %2975 = vmatpush1.bf16.msra.mxu0 %v2838
        %2976 = vmatprep.subr.bf16.mxu0 %v2842
        %2977 = vmatpush1.bf16.msra.mxu0 %v2841
        %2978 = vmatprep.subr.bf16.mxu0 %v2845
        %2979 = vmatpush1.bf16.msra.mxu0 %v2844
        %2980 = vmatprep.subr.bf16.mxu0 %v2848
        %2981 = vmatpush1.bf16.msra.mxu0 %v2847
        %2982 = vmatprep.subr.bf16.mxu0 %v2851
        %2983 = vmatpush1.bf16.msra.mxu0 %v2850
        %2984 = vmatprep.subr.bf16.mxu0 %v2854
        %2985 = vmatpush1.bf16.msra.mxu0 %v2853
        %2986 = vmatprep.subr.bf16.mxu0 %v2857
        %2987 = vmatpush1.bf16.msra.mxu0 %v2856
        %2988 = vmatprep.subr.bf16.mxu0 %v2860
        %2989 = vmatpush1.bf16.msra.mxu0 %v2859
        %2990 = vmatprep.mubr.bf16.mxu0 %v2431
        %2991 = vmatmul.mubr.bf16.gmra.mrb[0].mxu0 %v2430
        %v2992 = vpop.f32.mrb[0].mxu0
        %v2993 = vadd.f32 0.0, %v2992
        %v2994 = vpop.f32.mrb[0].mxu0
        %v2995 = vadd.f32 0.0, %v2994
        %v2996 = vpop.f32.mrb[0].mxu0
        %v2997 = vadd.f32 0.0, %v2996
        %v2998 = vpop.f32.mrb[0].mxu0
        %v2999 = vadd.f32 0.0, %v2998
        %3000 = vmatprep.mubr.bf16.mxu0 %v2434
        %3001 = vmatmul.mubr.bf16.gmra.mrb[0].mxu0 %v2433
        %v3002 = vpop.f32.mrb[0].mxu0
        %v3003 = vadd.f32 0.0, %v3002
        %v3004 = vpop.f32.mrb[0].mxu0
        %v3005 = vadd.f32 0.0, %v3004
        %v3006 = vpop.f32.mrb[0].mxu0
        %v3007 = vadd.f32 0.0, %v3006
        %v3008 = vpop.f32.mrb[0].mxu0
        %v3009 = vadd.f32 0.0, %v3008
        %3010 = vmatprep.mubr.bf16.mxu0 %v2437
        %3011 = vmatmul.mubr.bf16.gmra.mrb[0].mxu0 %v2436
        %v3012 = vpop.f32.mrb[0].mxu0
        %v3013 = vadd.f32 0.0, %v3012
        %v3014 = vpop.f32.mrb[0].mxu0
        %v3015 = vadd.f32 0.0, %v3014
        %v3016 = vpop.f32.mrb[0].mxu0
        %v3017 = vadd.f32 0.0, %v3016
        %v3018 = vpop.f32.mrb[0].mxu0
        %v3019 = vadd.f32 0.0, %v3018
        %3020 = vmatprep.mubr.bf16.mxu0 %v2440
        %3021 = vmatmul.mubr.bf16.gmra.mrb[0].mxu0 %v2439
        %v3022 = vpop.f32.mrb[0].mxu0
        %v3023 = vadd.f32 0.0, %v3022
        %v3024 = vpop.f32.mrb[0].mxu0
        %v3025 = vadd.f32 0.0, %v3024
        %v3026 = vpop.f32.mrb[0].mxu0
        %v3027 = vadd.f32 0.0, %v3026
        %v3028 = vpop.f32.mrb[0].mxu0
        %v3029 = vadd.f32 0.0, %v3028
        %3030 = vmatprep.mubr.bf16.mxu0 %v2443
        %3031 = vmatmul.mubr.bf16.gmra.mrb[0].mxu0 %v2442
        %v3032 = vpop.f32.mrb[0].mxu0
        %v3033 = vadd.f32 0.0, %v3032
        %v3034 = vpop.f32.mrb[0].mxu0
        %v3035 = vadd.f32 0.0, %v3034
        %v3036 = vpop.f32.mrb[0].mxu0
        %v3037 = vadd.f32 0.0, %v3036
        %v3038 = vpop.f32.mrb[0].mxu0
        %v3039 = vadd.f32 0.0, %v3038
        %3040 = vmatprep.mubr.bf16.mxu0 %v2446
        %3041 = vmatmul.mubr.bf16.gmra.mrb[0].mxu0 %v2445
        %v3042 = vpop.f32.mrb[0].mxu0
        %v3043 = vadd.f32 0.0, %v3042
        %v3044 = vpop.f32.mrb[0].mxu0
        %v3045 = vadd.f32 0.0, %v3044
        %v3046 = vpop.f32.mrb[0].mxu0
        %v3047 = vadd.f32 0.0, %v3046
        %v3048 = vpop.f32.mrb[0].mxu0
        %v3049 = vadd.f32 0.0, %v3048
        %3050 = vmatprep.mubr.bf16.mxu0 %v2449
        %3051 = vmatmul.mubr.bf16.gmra.mrb[0].mxu0 %v2448
        %v3052 = vpop.f32.mrb[0].mxu0
        %v3053 = vadd.f32 0.0, %v3052
        %v3054 = vpop.f32.mrb[0].mxu0
        %v3055 = vadd.f32 0.0, %v3054
        %v3056 = vpop.f32.mrb[0].mxu0
        %v3057 = vadd.f32 0.0, %v3056
        %v3058 = vpop.f32.mrb[0].mxu0
        %v3059 = vadd.f32 0.0, %v3058
        %3060 = vmatprep.mubr.bf16.mxu0 %v2452
        %3061 = vmatmul.mubr.bf16.gmra.mrb[0].mxu0 %v2451
        %v3062 = vpop.f32.mrb[0].mxu0
        %v3063 = vadd.f32 0.0, %v3062
        %v3064 = vpop.f32.mrb[0].mxu0
        %v3065 = vadd.f32 0.0, %v3064
        %v3066 = vpop.f32.mrb[0].mxu0
        %v3067 = vadd.f32 0.0, %v3066
        %v3068 = vpop.f32.mrb[0].mxu0
        %v3069 = vadd.f32 0.0, %v3068
        %3070 = vmatprep.mubr.bf16.mxu0 %v2455
        %3071 = vmatmul.mubr.bf16.gmra.mrb[0].mxu0 %v2454
        %v3072 = vpop.f32.mrb[0].mxu0
        %v3073 = vadd.f32 0.0, %v3072
        %v3074 = vpop.f32.mrb[0].mxu0
        %v3075 = vadd.f32 0.0, %v3074
        %v3076 = vpop.f32.mrb[0].mxu0
        %v3077 = vadd.f32 0.0, %v3076
        %v3078 = vpop.f32.mrb[0].mxu0
        %v3079 = vadd.f32 0.0, %v3078
        %3080 = vmatprep.mubr.bf16.mxu0 %v2458
        %3081 = vmatmul.mubr.bf16.gmra.mrb[0].mxu0 %v2457
        %v3082 = vpop.f32.mrb[0].mxu0
        %v3083 = vadd.f32 0.0, %v3082
        %v3084 = vpop.f32.mrb[0].mxu0
        %v3085 = vadd.f32 0.0, %v3084
        %v3086 = vpop.f32.mrb[0].mxu0
        %v3087 = vadd.f32 0.0, %v3086
        %v3088 = vpop.f32.mrb[0].mxu0
        %v3089 = vadd.f32 0.0, %v3088
        %3090 = vmatprep.mubr.bf16.mxu0 %v2461
        %3091 = vmatmul.mubr.bf16.gmra.mrb[0].mxu0 %v2460
        %v3092 = vpop.f32.mrb[0].mxu0
        %v3093 = vadd.f32 0.0, %v3092
        %v3094 = vpop.f32.mrb[0].mxu0
        %v3095 = vadd.f32 0.0, %v3094
        %v3096 = vpop.f32.mrb[0].mxu0
        %v3097 = vadd.f32 0.0, %v3096
        %v3098 = vpop.f32.mrb[0].mxu0
        %v3099 = vadd.f32 0.0, %v3098
        %3100 = vmatprep.mubr.bf16.mxu0 %v2464
        %3101 = vmatmul.mubr.bf16.gmra.mrb[0].mxu0 %v2463
        %v3102 = vpop.f32.mrb[0].mxu0
        %v3103 = vadd.f32 0.0, %v3102
        %v3104 = vpop.f32.mrb[0].mxu0
        %v3105 = vadd.f32 0.0, %v3104
        %v3106 = vpop.f32.mrb[0].mxu0
        %v3107 = vadd.f32 0.0, %v3106
        %v3108 = vpop.f32.mrb[0].mxu0
        %v3109 = vadd.f32 0.0, %v3108
        %3110 = vmatprep.mubr.bf16.mxu0 %v2467
        %3111 = vmatmul.mubr.bf16.gmra.mrb[0].mxu0 %v2466
        %v3112 = vpop.f32.mrb[0].mxu0
        %v3113 = vadd.f32 0.0, %v3112
        %v3114 = vpop.f32.mrb[0].mxu0
        %v3115 = vadd.f32 0.0, %v3114
        %v3116 = vpop.f32.mrb[0].mxu0
        %v3117 = vadd.f32 0.0, %v3116
        %v3118 = vpop.f32.mrb[0].mxu0
        %v3119 = vadd.f32 0.0, %v3118
        %3120 = vmatprep.mubr.bf16.mxu0 %v2470
        %3121 = vmatmul.mubr.bf16.gmra.mrb[0].mxu0 %v2469
        %v3122 = vpop.f32.mrb[0].mxu0
        %v3123 = vadd.f32 0.0, %v3122
        %v3124 = vpop.f32.mrb[0].mxu0
        %v3125 = vadd.f32 0.0, %v3124
        %v3126 = vpop.f32.mrb[0].mxu0
        %v3127 = vadd.f32 0.0, %v3126
        %v3128 = vpop.f32.mrb[0].mxu0
        %v3129 = vadd.f32 0.0, %v3128
        %3130 = vmatprep.mubr.bf16.mxu0 %v2473
        %3131 = vmatmul.mubr.bf16.gmra.mrb[0].mxu0 %v2472
        %v3132 = vpop.f32.mrb[0].mxu0
        %v3133 = vadd.f32 0.0, %v3132
        %v3134 = vpop.f32.mrb[0].mxu0
        %v3135 = vadd.f32 0.0, %v3134
        %v3136 = vpop.f32.mrb[0].mxu0
        %v3137 = vadd.f32 0.0, %v3136
        %v3138 = vpop.f32.mrb[0].mxu0
        %v3139 = vadd.f32 0.0, %v3138
        %3140 = vmatprep.mubr.bf16.mxu0 %v2476
        %3141 = vmatmul.mubr.bf16.gmra.mrb[0].mxu0 %v2475
        %v3142 = vpop.f32.mrb[0].mxu0
        %v3143 = vadd.f32 0.0, %v3142
        %v3144 = vpop.f32.mrb[0].mxu0
        %v3145 = vadd.f32 0.0, %v3144
        %v3146 = vpop.f32.mrb[0].mxu0
        %v3147 = vadd.f32 0.0, %v3146
        %v3148 = vpop.f32.mrb[0].mxu0
        %v3149 = vadd.f32 0.0, %v3148
        %3150 = vdwg.mxu0
        %3151 = vmatprep.subr.bf16.mxu0 %v2863
        %3152 = vmatpush1.bf16.msra.mxu0 %v2862
        %3153 = vmatprep.subr.bf16.mxu0 %v2866
        %3154 = vmatpush1.bf16.msra.mxu0 %v2865
        %3155 = vmatprep.subr.bf16.mxu0 %v2869
        %3156 = vmatpush1.bf16.msra.mxu0 %v2868
        %3157 = vmatprep.subr.bf16.mxu0 %v2872
        %3158 = vmatpush1.bf16.msra.mxu0 %v2871
        %3159 = vmatprep.subr.bf16.mxu0 %v2875
        %3160 = vmatpush1.bf16.msra.mxu0 %v2874
        %3161 = vmatprep.subr.bf16.mxu0 %v2878
        %3162 = vmatpush1.bf16.msra.mxu0 %v2877
        %3163 = vmatprep.subr.bf16.mxu0 %v2881
        %3164 = vmatpush1.bf16.msra.mxu0 %v2880
        %3165 = vmatprep.subr.bf16.mxu0 %v2884
        %3166 = vmatpush1.bf16.msra.mxu0 %v2883
        %3167 = vmatprep.subr.bf16.mxu0 0
        %3168 = vmatpush1.bf16.msra.mxu0 0
        %3169 = vmatprep.subr.bf16.mxu0 0
        %3170 = vmatpush1.bf16.msra.mxu0 0
        %3171 = vmatprep.subr.bf16.mxu0 0
        %3172 = vmatpush1.bf16.msra.mxu0 0
        %3173 = vmatprep.subr.bf16.mxu0 0
        %3174 = vmatpush1.bf16.msra.mxu0 0
        %3175 = vmatprep.subr.bf16.mxu0 0
        %3176 = vmatpush1.bf16.msra.mxu0 0
        %3177 = vmatprep.subr.bf16.mxu0 0
        %3178 = vmatpush1.bf16.msra.mxu0 0
        %3179 = vmatprep.subr.bf16.mxu0 0
        %3180 = vmatpush1.bf16.msra.mxu0 0
        %3181 = vmatprep.subr.bf16.mxu0 0
        %3182 = vmatpush1.bf16.msra.mxu0 0
        %3183 = vmatprep.mubr.bf16.mxu0 0
        %3184 = vmatmul.mubr.bf16.gmra.mrb[0].mxu0 %v2432
        %v3185 = vpop.f32.mrb[0].mxu0
        %v3186 = vadd.f32 %v2993, %v3185
        %v3187 = vpop.f32.mrb[0].mxu0
        %v3188 = vadd.f32 %v2995, %v3187
        %v3189 = vpop.f32.mrb[0].mxu0
        %v3190 = vadd.f32 %v2997, %v3189
        %v3191 = vpop.f32.mrb[0].mxu0
        %v3192 = vadd.f32 %v2999, %v3191
        %3193 = vmatprep.mubr.bf16.mxu0 0
        %3194 = vmatmul.mubr.bf16.gmra.mrb[0].mxu0 %v2435
        %v3195 = vpop.f32.mrb[0].mxu0
        %v3196 = vadd.f32 %v3003, %v3195
        %v3197 = vpop.f32.mrb[0].mxu0
        %v3198 = vadd.f32 %v3005, %v3197
        %v3199 = vpop.f32.mrb[0].mxu0
        %v3200 = vadd.f32 %v3007, %v3199
        %v3201 = vpop.f32.mrb[0].mxu0
        %v3202 = vadd.f32 %v3009, %v3201
        %3203 = vmatprep.mubr.bf16.mxu0 0
        %3204 = vmatmul.mubr.bf16.gmra.mrb[0].mxu0 %v2438
        %v3205 = vpop.f32.mrb[0].mxu0
        %v3206 = vadd.f32 %v3013, %v3205
        %v3207 = vpop.f32.mrb[0].mxu0
        %v3208 = vadd.f32 %v3015, %v3207
        %v3209 = vpop.f32.mrb[0].mxu0
        %v3210 = vadd.f32 %v3017, %v3209
        %v3211 = vpop.f32.mrb[0].mxu0
        %v3212 = vadd.f32 %v3019, %v3211
        %3213 = vmatprep.mubr.bf16.mxu0 0
        %3214 = vmatmul.mubr.bf16.gmra.mrb[0].mxu0 %v2441
        %v3215 = vpop.f32.mrb[0].mxu0
        %v3216 = vadd.f32 %v3023, %v3215
        %v3217 = vpop.f32.mrb[0].mxu0
        %v3218 = vadd.f32 %v3025, %v3217
        %v3219 = vpop.f32.mrb[0].mxu0
        %v3220 = vadd.f32 %v3027, %v3219
        %v3221 = vpop.f32.mrb[0].mxu0
        %v3222 = vadd.f32 %v3029, %v3221
        %3223 = vmatprep.mubr.bf16.mxu0 0
        %3224 = vmatmul.mubr.bf16.gmra.mrb[0].mxu0 %v2444
        %v3225 = vpop.f32.mrb[0].mxu0
        %v3226 = vadd.f32 %v3033, %v3225
        %v3227 = vpop.f32.mrb[0].mxu0
        %v3228 = vadd.f32 %v3035, %v3227
        %v3229 = vpop.f32.mrb[0].mxu0
        %v3230 = vadd.f32 %v3037, %v3229
        %v3231 = vpop.f32.mrb[0].mxu0
        %v3232 = vadd.f32 %v3039, %v3231
        %3233 = vmatprep.mubr.bf16.mxu0 0
        %3234 = vmatmul.mubr.bf16.gmra.mrb[0].mxu0 %v2447
        %v3235 = vpop.f32.mrb[0].mxu0
        %v3236 = vadd.f32 %v3043, %v3235
        %v3237 = vpop.f32.mrb[0].mxu0
        %v3238 = vadd.f32 %v3045, %v3237
        %v3239 = vpop.f32.mrb[0].mxu0
        %v3240 = vadd.f32 %v3047, %v3239
        %v3241 = vpop.f32.mrb[0].mxu0
        %v3242 = vadd.f32 %v3049, %v3241
        %3243 = vmatprep.mubr.bf16.mxu0 0
        %3244 = vmatmul.mubr.bf16.gmra.mrb[0].mxu0 %v2450
        %v3245 = vpop.f32.mrb[0].mxu0
        %v3246 = vadd.f32 %v3053, %v3245
        %v3247 = vpop.f32.mrb[0].mxu0
        %v3248 = vadd.f32 %v3055, %v3247
        %v3249 = vpop.f32.mrb[0].mxu0
        %v3250 = vadd.f32 %v3057, %v3249
        %v3251 = vpop.f32.mrb[0].mxu0
        %v3252 = vadd.f32 %v3059, %v3251
        %3253 = vmatprep.mubr.bf16.mxu0 0
        %3254 = vmatmul.mubr.bf16.gmra.mrb[0].mxu0 %v2453
        %v3255 = vpop.f32.mrb[0].mxu0
        %v3256 = vadd.f32 %v3063, %v3255
        %v3257 = vpop.f32.mrb[0].mxu0
        %v3258 = vadd.f32 %v3065, %v3257
        %v3259 = vpop.f32.mrb[0].mxu0
        %v3260 = vadd.f32 %v3067, %v3259
        %v3261 = vpop.f32.mrb[0].mxu0
        %v3262 = vadd.f32 %v3069, %v3261
        %3263 = vmatprep.mubr.bf16.mxu0 0
        %3264 = vmatmul.mubr.bf16.gmra.mrb[0].mxu0 %v2456
        %v3265 = vpop.f32.mrb[0].mxu0
        %v3266 = vadd.f32 %v3073, %v3265
        %v3267 = vpop.f32.mrb[0].mxu0
        %v3268 = vadd.f32 %v3075, %v3267
        %v3269 = vpop.f32.mrb[0].mxu0
        %v3270 = vadd.f32 %v3077, %v3269
        %v3271 = vpop.f32.mrb[0].mxu0
        %v3272 = vadd.f32 %v3079, %v3271
        %3273 = vmatprep.mubr.bf16.mxu0 0
        %3274 = vmatmul.mubr.bf16.gmra.mrb[0].mxu0 %v2459
        %v3275 = vpop.f32.mrb[0].mxu0
        %v3276 = vadd.f32 %v3083, %v3275
        %v3277 = vpop.f32.mrb[0].mxu0
        %v3278 = vadd.f32 %v3085, %v3277
        %v3279 = vpop.f32.mrb[0].mxu0
        %v3280 = vadd.f32 %v3087, %v3279
        %v3281 = vpop.f32.mrb[0].mxu0
        %v3282 = vadd.f32 %v3089, %v3281
        %3283 = vmatprep.mubr.bf16.mxu0 0
        %3284 = vmatmul.mubr.bf16.gmra.mrb[0].mxu0 %v2462
        %v3285 = vpop.f32.mrb[0].mxu0
        %v3286 = vadd.f32 %v3093, %v3285
        %v3287 = vpop.f32.mrb[0].mxu0
        %v3288 = vadd.f32 %v3095, %v3287
        %v3289 = vpop.f32.mrb[0].mxu0
        %v3290 = vadd.f32 %v3097, %v3289
        %v3291 = vpop.f32.mrb[0].mxu0
        %v3292 = vadd.f32 %v3099, %v3291
        %3293 = vmatprep.mubr.bf16.mxu0 0
        %3294 = vmatmul.mubr.bf16.gmra.mrb[0].mxu0 %v2465
        %v3295 = vpop.f32.mrb[0].mxu0
        %v3296 = vadd.f32 %v3103, %v3295
        %v3297 = vpop.f32.mrb[0].mxu0
        %v3298 = vadd.f32 %v3105, %v3297
        %v3299 = vpop.f32.mrb[0].mxu0
        %v3300 = vadd.f32 %v3107, %v3299
        %v3301 = vpop.f32.mrb[0].mxu0
        %v3302 = vadd.f32 %v3109, %v3301
        %3303 = vmatprep.mubr.bf16.mxu0 0
        %3304 = vmatmul.mubr.bf16.gmra.mrb[0].mxu0 %v2468
        %v3305 = vpop.f32.mrb[0].mxu0
        %v3306 = vadd.f32 %v3113, %v3305
        %v3307 = vpop.f32.mrb[0].mxu0
        %v3308 = vadd.f32 %v3115, %v3307
        %v3309 = vpop.f32.mrb[0].mxu0
        %v3310 = vadd.f32 %v3117, %v3309
        %v3311 = vpop.f32.mrb[0].mxu0
        %v3312 = vadd.f32 %v3119, %v3311
        %3313 = vmatprep.mubr.bf16.mxu0 0
        %3314 = vmatmul.mubr.bf16.gmra.mrb[0].mxu0 %v2471
        %v3315 = vpop.f32.mrb[0].mxu0
        %v3316 = vadd.f32 %v3123, %v3315
        %v3317 = vpop.f32.mrb[0].mxu0
        %v3318 = vadd.f32 %v3125, %v3317
        %v3319 = vpop.f32.mrb[0].mxu0
        %v3320 = vadd.f32 %v3127, %v3319
        %v3321 = vpop.f32.mrb[0].mxu0
        %v3322 = vadd.f32 %v3129, %v3321
        %3323 = vmatprep.mubr.bf16.mxu0 0
        %3324 = vmatmul.mubr.bf16.gmra.mrb[0].mxu0 %v2474
        %v3325 = vpop.f32.mrb[0].mxu0
        %v3326 = vadd.f32 %v3133, %v3325
        %v3327 = vpop.f32.mrb[0].mxu0
        %v3328 = vadd.f32 %v3135, %v3327
        %v3329 = vpop.f32.mrb[0].mxu0
        %v3330 = vadd.f32 %v3137, %v3329
        %v3331 = vpop.f32.mrb[0].mxu0
        %v3332 = vadd.f32 %v3139, %v3331
        %3333 = vmatprep.mubr.bf16.mxu0 0
        %3334 = vmatmul.mubr.bf16.gmra.mrb[0].mxu0 %v2477
        %v3335 = vpop.f32.mrb[0].mxu0
        %v3336 = vadd.f32 %v3143, %v3335
        %v3337 = vpop.f32.mrb[0].mxu0
        %v3338 = vadd.f32 %v3145, %v3337
        %v3339 = vpop.f32.mrb[0].mxu0
        %v3340 = vadd.f32 %v3147, %v3339
        %v3341 = vpop.f32.mrb[0].mxu0
        %v3342 = vadd.f32 %v3149, %v3341
        %3343 = vdwg.mxu0
        %3344 = vmatprep.subr.bf16.mxu0 0
        %3345 = vmatpush1.bf16.msra.mxu0 %v2816
        %3346 = vmatprep.subr.bf16.mxu0 0
        %3347 = vmatpush1.bf16.msra.mxu0 %v2819
        %3348 = vmatprep.subr.bf16.mxu0 0
        %3349 = vmatpush1.bf16.msra.mxu0 %v2822
        %3350 = vmatprep.subr.bf16.mxu0 0
        %3351 = vmatpush1.bf16.msra.mxu0 %v2825
        %3352 = vmatprep.subr.bf16.mxu0 0
        %3353 = vmatpush1.bf16.msra.mxu0 %v2828
        %3354 = vmatprep.subr.bf16.mxu0 0
        %3355 = vmatpush1.bf16.msra.mxu0 %v2831
        %3356 = vmatprep.subr.bf16.mxu0 0
        %3357 = vmatpush1.bf16.msra.mxu0 %v2834
        %3358 = vmatprep.subr.bf16.mxu0 0
        %3359 = vmatpush1.bf16.msra.mxu0 %v2837
        %3360 = vmatprep.subr.bf16.mxu0 0
        %3361 = vmatpush1.bf16.msra.mxu0 %v2840
        %3362 = vmatprep.subr.bf16.mxu0 0
        %3363 = vmatpush1.bf16.msra.mxu0 %v2843
        %3364 = vmatprep.subr.bf16.mxu0 0
        %3365 = vmatpush1.bf16.msra.mxu0 %v2846
        %3366 = vmatprep.subr.bf16.mxu0 0
        %3367 = vmatpush1.bf16.msra.mxu0 %v2849
        %3368 = vmatprep.subr.bf16.mxu0 0
        %3369 = vmatpush1.bf16.msra.mxu0 %v2852
        %3370 = vmatprep.subr.bf16.mxu0 0
        %3371 = vmatpush1.bf16.msra.mxu0 %v2855
        %3372 = vmatprep.subr.bf16.mxu0 0
        %3373 = vmatpush1.bf16.msra.mxu0 %v2858
        %3374 = vmatprep.subr.bf16.mxu0 0
        %3375 = vmatpush1.bf16.msra.mxu0 %v2861
        %3376 = vmatprep.mubr.bf16.mxu0 %v2431
        %3377 = vmatmul.mubr.bf16.gmra.mrb[0].mxu0 %v2430
        %v3378 = vpop.f32.mrb[0].mxu0
        %v3379 = vadd.f32 0.0, %v3378
        %v3380 = vpop.f32.mrb[0].mxu0
        %v3381 = vpop.f32.mrb[0].mxu0
        %v3382 = vadd.f32 0.0, %v3381
        %v3383 = vpop.f32.mrb[0].mxu0
        %3384 = vmatprep.mubr.bf16.mxu0 %v2434
        %3385 = vmatmul.mubr.bf16.gmra.mrb[0].mxu0 %v2433
        %v3386 = vpop.f32.mrb[0].mxu0
        %v3387 = vadd.f32 0.0, %v3386
        %v3388 = vpop.f32.mrb[0].mxu0
        %v3389 = vpop.f32.mrb[0].mxu0
        %v3390 = vadd.f32 0.0, %v3389
        %v3391 = vpop.f32.mrb[0].mxu0
        %3392 = vmatprep.mubr.bf16.mxu0 %v2437
        %3393 = vmatmul.mubr.bf16.gmra.mrb[0].mxu0 %v2436
        %v3394 = vpop.f32.mrb[0].mxu0
        %v3395 = vadd.f32 0.0, %v3394
        %v3396 = vpop.f32.mrb[0].mxu0
        %v3397 = vpop.f32.mrb[0].mxu0
        %v3398 = vadd.f32 0.0, %v3397
        %v3399 = vpop.f32.mrb[0].mxu0
        %3400 = vmatprep.mubr.bf16.mxu0 %v2440
        %3401 = vmatmul.mubr.bf16.gmra.mrb[0].mxu0 %v2439
        %v3402 = vpop.f32.mrb[0].mxu0
        %v3403 = vadd.f32 0.0, %v3402
        %v3404 = vpop.f32.mrb[0].mxu0
        %v3405 = vpop.f32.mrb[0].mxu0
        %v3406 = vadd.f32 0.0, %v3405
        %v3407 = vpop.f32.mrb[0].mxu0
        %3408 = vmatprep.mubr.bf16.mxu0 %v2443
        %3409 = vmatmul.mubr.bf16.gmra.mrb[0].mxu0 %v2442
        %v3410 = vpop.f32.mrb[0].mxu0
        %v3411 = vadd.f32 0.0, %v3410
        %v3412 = vpop.f32.mrb[0].mxu0
        %v3413 = vpop.f32.mrb[0].mxu0
        %v3414 = vadd.f32 0.0, %v3413
        %v3415 = vpop.f32.mrb[0].mxu0
        %3416 = vmatprep.mubr.bf16.mxu0 %v2446
        %3417 = vmatmul.mubr.bf16.gmra.mrb[0].mxu0 %v2445
        %v3418 = vpop.f32.mrb[0].mxu0
        %v3419 = vadd.f32 0.0, %v3418
        %v3420 = vpop.f32.mrb[0].mxu0
        %v3421 = vpop.f32.mrb[0].mxu0
        %v3422 = vadd.f32 0.0, %v3421
        %v3423 = vpop.f32.mrb[0].mxu0
        %3424 = vmatprep.mubr.bf16.mxu0 %v2449
        %3425 = vmatmul.mubr.bf16.gmra.mrb[0].mxu0 %v2448
        %v3426 = vpop.f32.mrb[0].mxu0
        %v3427 = vadd.f32 0.0, %v3426
        %v3428 = vpop.f32.mrb[0].mxu0
        %v3429 = vpop.f32.mrb[0].mxu0
        %v3430 = vadd.f32 0.0, %v3429
        %v3431 = vpop.f32.mrb[0].mxu0
        %3432 = vmatprep.mubr.bf16.mxu0 %v2452
        %3433 = vmatmul.mubr.bf16.gmra.mrb[0].mxu0 %v2451
        %v3434 = vpop.f32.mrb[0].mxu0
        %v3435 = vadd.f32 0.0, %v3434
        %v3436 = vpop.f32.mrb[0].mxu0
        %v3437 = vpop.f32.mrb[0].mxu0
        %v3438 = vadd.f32 0.0, %v3437
        %v3439 = vpop.f32.mrb[0].mxu0
        %3440 = vmatprep.mubr.bf16.mxu0 %v2455
        %3441 = vmatmul.mubr.bf16.gmra.mrb[0].mxu0 %v2454
        %v3442 = vpop.f32.mrb[0].mxu0
        %v3443 = vadd.f32 0.0, %v3442
        %v3444 = vpop.f32.mrb[0].mxu0
        %v3445 = vpop.f32.mrb[0].mxu0
        %v3446 = vadd.f32 0.0, %v3445
        %v3447 = vpop.f32.mrb[0].mxu0
        %3448 = vmatprep.mubr.bf16.mxu0 %v2458
        %3449 = vmatmul.mubr.bf16.gmra.mrb[0].mxu0 %v2457
        %v3450 = vpop.f32.mrb[0].mxu0
        %v3451 = vadd.f32 0.0, %v3450
        %v3452 = vpop.f32.mrb[0].mxu0
        %v3453 = vpop.f32.mrb[0].mxu0
        %v3454 = vadd.f32 0.0, %v3453
        %v3455 = vpop.f32.mrb[0].mxu0
        %3456 = vmatprep.mubr.bf16.mxu0 %v2461
        %3457 = vmatmul.mubr.bf16.gmra.mrb[0].mxu0 %v2460
        %v3458 = vpop.f32.mrb[0].mxu0
        %v3459 = vadd.f32 0.0, %v3458
        %v3460 = vpop.f32.mrb[0].mxu0
        %v3461 = vpop.f32.mrb[0].mxu0
        %v3462 = vadd.f32 0.0, %v3461
        %v3463 = vpop.f32.mrb[0].mxu0
        %3464 = vmatprep.mubr.bf16.mxu0 %v2464
        %3465 = vmatmul.mubr.bf16.gmra.mrb[0].mxu0 %v2463
        %v3466 = vpop.f32.mrb[0].mxu0
        %v3467 = vadd.f32 0.0, %v3466
        %v3468 = vpop.f32.mrb[0].mxu0
        %v3469 = vpop.f32.mrb[0].mxu0
        %v3470 = vadd.f32 0.0, %v3469
        %v3471 = vpop.f32.mrb[0].mxu0
        %3472 = vmatprep.mubr.bf16.mxu0 %v2467
        %3473 = vmatmul.mubr.bf16.gmra.mrb[0].mxu0 %v2466
        %v3474 = vpop.f32.mrb[0].mxu0
        %v3475 = vadd.f32 0.0, %v3474
        %v3476 = vpop.f32.mrb[0].mxu0
        %v3477 = vpop.f32.mrb[0].mxu0
        %v3478 = vadd.f32 0.0, %v3477
        %v3479 = vpop.f32.mrb[0].mxu0
        %3480 = vmatprep.mubr.bf16.mxu0 %v2470
        %3481 = vmatmul.mubr.bf16.gmra.mrb[0].mxu0 %v2469
        %v3482 = vpop.f32.mrb[0].mxu0
        %v3483 = vadd.f32 0.0, %v3482
        %v3484 = vpop.f32.mrb[0].mxu0
        %v3485 = vpop.f32.mrb[0].mxu0
        %v3486 = vadd.f32 0.0, %v3485
        %v3487 = vpop.f32.mrb[0].mxu0
        %3488 = vmatprep.mubr.bf16.mxu0 %v2473
        %3489 = vmatmul.mubr.bf16.gmra.mrb[0].mxu0 %v2472
        %v3490 = vpop.f32.mrb[0].mxu0
        %v3491 = vadd.f32 0.0, %v3490
        %v3492 = vpop.f32.mrb[0].mxu0
        %v3493 = vpop.f32.mrb[0].mxu0
        %v3494 = vadd.f32 0.0, %v3493
        %v3495 = vpop.f32.mrb[0].mxu0
        %3496 = vmatprep.mubr.bf16.mxu0 %v2476
        %3497 = vmatmul.mubr.bf16.gmra.mrb[0].mxu0 %v2475
        %v3498 = vpop.f32.mrb[0].mxu0
        %v3499 = vadd.f32 0.0, %v3498
        %v3500 = vpop.f32.mrb[0].mxu0
        %v3501 = vpop.f32.mrb[0].mxu0
        %v3502 = vadd.f32 0.0, %v3501
        %v3503 = vpop.f32.mrb[0].mxu0
        %3504 = vdwg.mxu0
        %3505 = vmatprep.subr.bf16.mxu0 0
        %3506 = vmatpush1.bf16.msra.mxu0 %v2864
        %3507 = vmatprep.subr.bf16.mxu0 0
        %3508 = vmatpush1.bf16.msra.mxu0 %v2867
        %3509 = vmatprep.subr.bf16.mxu0 0
        %3510 = vmatpush1.bf16.msra.mxu0 %v2870
        %3511 = vmatprep.subr.bf16.mxu0 0
        %3512 = vmatpush1.bf16.msra.mxu0 %v2873
        %3513 = vmatprep.subr.bf16.mxu0 0
        %3514 = vmatpush1.bf16.msra.mxu0 %v2876
        %3515 = vmatprep.subr.bf16.mxu0 0
        %3516 = vmatpush1.bf16.msra.mxu0 %v2879
        %3517 = vmatprep.subr.bf16.mxu0 0
        %3518 = vmatpush1.bf16.msra.mxu0 %v2882
        %3519 = vmatprep.subr.bf16.mxu0 0
        %3520 = vmatpush1.bf16.msra.mxu0 %v2885
        %3521 = vmatprep.subr.bf16.mxu0 0
        %3522 = vmatpush1.bf16.msra.mxu0 0
        %3523 = vmatprep.subr.bf16.mxu0 0
        %3524 = vmatpush1.bf16.msra.mxu0 0
        %3525 = vmatprep.subr.bf16.mxu0 0
        %3526 = vmatpush1.bf16.msra.mxu0 0
        %3527 = vmatprep.subr.bf16.mxu0 0
        %3528 = vmatpush1.bf16.msra.mxu0 0
        %3529 = vmatprep.subr.bf16.mxu0 0
        %3530 = vmatpush1.bf16.msra.mxu0 0
        %3531 = vmatprep.subr.bf16.mxu0 0
        %3532 = vmatpush1.bf16.msra.mxu0 0
        %3533 = vmatprep.subr.bf16.mxu0 0
        %3534 = vmatpush1.bf16.msra.mxu0 0
        %3535 = vmatprep.subr.bf16.mxu0 0
        %3536 = vmatpush1.bf16.msra.mxu0 0
        %3537 = vmatprep.mubr.bf16.mxu0 0
        %3538 = vmatmul.mubr.bf16.gmra.mrb[0].mxu0 %v2432
        %v3539 = vpop.f32.mrb[0].mxu0
        %v3540 = vadd.f32 %v3379, %v3539
        %v3541 = vpop.f32.mrb[0].mxu0
        %v3542 = vpop.f32.mrb[0].mxu0
        %v3543 = vadd.f32 %v3382, %v3542
        %v3544 = vpop.f32.mrb[0].mxu0
        %3545 = vmatprep.mubr.bf16.mxu0 0
        %3546 = vmatmul.mubr.bf16.gmra.mrb[0].mxu0 %v2435
        %v3547 = vpop.f32.mrb[0].mxu0
        %v3548 = vadd.f32 %v3387, %v3547
        %v3549 = vpop.f32.mrb[0].mxu0
        %v3550 = vpop.f32.mrb[0].mxu0
        %v3551 = vadd.f32 %v3390, %v3550
        %v3552 = vpop.f32.mrb[0].mxu0
        %3553 = vmatprep.mubr.bf16.mxu0 0
        %3554 = vmatmul.mubr.bf16.gmra.mrb[0].mxu0 %v2438
        %v3555 = vpop.f32.mrb[0].mxu0
        %v3556 = vadd.f32 %v3395, %v3555
        %v3557 = vpop.f32.mrb[0].mxu0
        %v3558 = vpop.f32.mrb[0].mxu0
        %v3559 = vadd.f32 %v3398, %v3558
        %v3560 = vpop.f32.mrb[0].mxu0
        %3561 = vmatprep.mubr.bf16.mxu0 0
        %3562 = vmatmul.mubr.bf16.gmra.mrb[0].mxu0 %v2441
        %v3563 = vpop.f32.mrb[0].mxu0
        %v3564 = vadd.f32 %v3403, %v3563
        %v3565 = vpop.f32.mrb[0].mxu0
        %v3566 = vpop.f32.mrb[0].mxu0
        %v3567 = vadd.f32 %v3406, %v3566
        %v3568 = vpop.f32.mrb[0].mxu0
        %3569 = vmatprep.mubr.bf16.mxu0 0
        %3570 = vmatmul.mubr.bf16.gmra.mrb[0].mxu0 %v2444
        %v3571 = vpop.f32.mrb[0].mxu0
        %v3572 = vadd.f32 %v3411, %v3571
        %v3573 = vpop.f32.mrb[0].mxu0
        %v3574 = vpop.f32.mrb[0].mxu0
        %v3575 = vadd.f32 %v3414, %v3574
        %v3576 = vpop.f32.mrb[0].mxu0
        %3577 = vmatprep.mubr.bf16.mxu0 0
        %3578 = vmatmul.mubr.bf16.gmra.mrb[0].mxu0 %v2447
        %v3579 = vpop.f32.mrb[0].mxu0
        %v3580 = vadd.f32 %v3419, %v3579
        %v3581 = vpop.f32.mrb[0].mxu0
        %v3582 = vpop.f32.mrb[0].mxu0
        %v3583 = vadd.f32 %v3422, %v3582
        %v3584 = vpop.f32.mrb[0].mxu0
        %3585 = vmatprep.mubr.bf16.mxu0 0
        %3586 = vmatmul.mubr.bf16.gmra.mrb[0].mxu0 %v2450
        %v3587 = vpop.f32.mrb[0].mxu0
        %v3588 = vadd.f32 %v3427, %v3587
        %v3589 = vpop.f32.mrb[0].mxu0
        %v3590 = vpop.f32.mrb[0].mxu0
        %v3591 = vadd.f32 %v3430, %v3590
        %v3592 = vpop.f32.mrb[0].mxu0
        %3593 = vmatprep.mubr.bf16.mxu0 0
        %3594 = vmatmul.mubr.bf16.gmra.mrb[0].mxu0 %v2453
        %v3595 = vpop.f32.mrb[0].mxu0
        %v3596 = vadd.f32 %v3435, %v3595
        %v3597 = vpop.f32.mrb[0].mxu0
        %v3598 = vpop.f32.mrb[0].mxu0
        %v3599 = vadd.f32 %v3438, %v3598
        %v3600 = vpop.f32.mrb[0].mxu0
        %3601 = vmatprep.mubr.bf16.mxu0 0
        %3602 = vmatmul.mubr.bf16.gmra.mrb[0].mxu0 %v2456
        %v3603 = vpop.f32.mrb[0].mxu0
        %v3604 = vadd.f32 %v3443, %v3603
        %v3605 = vpop.f32.mrb[0].mxu0
        %v3606 = vpop.f32.mrb[0].mxu0
        %v3607 = vadd.f32 %v3446, %v3606
        %v3608 = vpop.f32.mrb[0].mxu0
        %3609 = vmatprep.mubr.bf16.mxu0 0
        %3610 = vmatmul.mubr.bf16.gmra.mrb[0].mxu0 %v2459
        %v3611 = vpop.f32.mrb[0].mxu0
        %v3612 = vadd.f32 %v3451, %v3611
        %v3613 = vpop.f32.mrb[0].mxu0
        %v3614 = vpop.f32.mrb[0].mxu0
        %v3615 = vadd.f32 %v3454, %v3614
        %v3616 = vpop.f32.mrb[0].mxu0
        %3617 = vmatprep.mubr.bf16.mxu0 0
        %3618 = vmatmul.mubr.bf16.gmra.mrb[0].mxu0 %v2462
        %v3619 = vpop.f32.mrb[0].mxu0
        %v3620 = vadd.f32 %v3459, %v3619
        %v3621 = vpop.f32.mrb[0].mxu0
        %v3622 = vpop.f32.mrb[0].mxu0
        %v3623 = vadd.f32 %v3462, %v3622
        %v3624 = vpop.f32.mrb[0].mxu0
        %3625 = vmatprep.mubr.bf16.mxu0 0
        %3626 = vmatmul.mubr.bf16.gmra.mrb[0].mxu0 %v2465
        %v3627 = vpop.f32.mrb[0].mxu0
        %v3628 = vadd.f32 %v3467, %v3627
        %v3629 = vpop.f32.mrb[0].mxu0
        %v3630 = vpop.f32.mrb[0].mxu0
        %v3631 = vadd.f32 %v3470, %v3630
        %v3632 = vpop.f32.mrb[0].mxu0
        %3633 = vmatprep.mubr.bf16.mxu0 0
        %3634 = vmatmul.mubr.bf16.gmra.mrb[0].mxu0 %v2468
        %v3635 = vpop.f32.mrb[0].mxu0
        %v3636 = vadd.f32 %v3475, %v3635
        %v3637 = vpop.f32.mrb[0].mxu0
        %v3638 = vpop.f32.mrb[0].mxu0
        %v3639 = vadd.f32 %v3478, %v3638
        %v3640 = vpop.f32.mrb[0].mxu0
        %3641 = vmatprep.mubr.bf16.mxu0 0
        %3642 = vmatmul.mubr.bf16.gmra.mrb[0].mxu0 %v2471
        %v3643 = vpop.f32.mrb[0].mxu0
        %v3644 = vadd.f32 %v3483, %v3643
        %v3645 = vpop.f32.mrb[0].mxu0
        %v3646 = vpop.f32.mrb[0].mxu0
        %v3647 = vadd.f32 %v3486, %v3646
        %v3648 = vpop.f32.mrb[0].mxu0
        %3649 = vmatprep.mubr.bf16.mxu0 0
        %3650 = vmatmul.mubr.bf16.gmra.mrb[0].mxu0 %v2474
        %v3651 = vpop.f32.mrb[0].mxu0
        %v3652 = vadd.f32 %v3491, %v3651
        %v3653 = vpop.f32.mrb[0].mxu0
        %v3654 = vpop.f32.mrb[0].mxu0
        %v3655 = vadd.f32 %v3494, %v3654
        %v3656 = vpop.f32.mrb[0].mxu0
        %3657 = vmatprep.mubr.bf16.mxu0 0
        %3658 = vmatmul.mubr.bf16.gmra.mrb[0].mxu0 %v2477
        %v3659 = vpop.f32.mrb[0].mxu0
        %v3660 = vadd.f32 %v3499, %v3659
        %v3661 = vpop.f32.mrb[0].mxu0
        %v3662 = vpop.f32.mrb[0].mxu0
        %v3663 = vadd.f32 %v3502, %v3662
        %v3664 = vpop.f32.mrb[0].mxu0
        %3665 = vdwg.mxu0
        %v3666 = vsel %vm396, %v3336, 0.0
        %v3667 = vsel %vm397, %v3340, 0.0
        %v3668 = vsel %vm398, %v3186, 0.0
        %v3669 = vsel %vm399, %v3190, 0.0
        %v3670 = vsel %vm400, %v3196, 0.0
        %v3671 = vsel %vm401, %v3200, 0.0
        %v3672 = vsel %vm402, %v3206, 0.0
        %v3673 = vsel %vm403, %v3210, 0.0
        %v3674 = vsel %vm404, %v3216, 0.0
        %v3675 = vsel %vm405, %v3220, 0.0
        %v3676 = vsel %vm406, %v3226, 0.0
        %v3677 = vsel %vm407, %v3230, 0.0
        %v3678 = vsel %vm408, %v3236, 0.0
        %v3679 = vsel %vm409, %v3240, 0.0
        %v3680 = vsel %vm410, %v3246, 0.0
        %v3681 = vsel %vm411, %v3250, 0.0
        %v3682 = vsel %vm412, %v3256, 0.0
        %v3683 = vsel %vm413, %v3260, 0.0
        %v3684 = vsel %vm414, %v3266, 0.0
        %v3685 = vsel %vm415, %v3270, 0.0
        %v3686 = vsel %vm416, %v3276, 0.0
        %v3687 = vsel %vm417, %v3280, 0.0
        %v3688 = vsel %vm418, %v3286, 0.0
        %v3689 = vsel %vm419, %v3290, 0.0
        %v3690 = vsel %vm420, %v3296, 0.0
        %v3691 = vsel %vm421, %v3300, 0.0
        %v3692 = vsel %vm422, %v3306, 0.0
        %v3693 = vsel %vm423, %v3310, 0.0
        %v3694 = vsel %vm424, %v3316, 0.0
        %v3695 = vsel %vm425, %v3320, 0.0
        %v3696 = vsel %vm426, %v3326, 0.0
        %v3697 = vsel %vm427, %v3330, 0.0
        %v3698 = vadd.f32 %v3188, %v3666
        %v3699 = vadd.f32 %v3192, %v3667
        %v3700 = vadd.f32 %v3198, %v3668
        %v3701 = vadd.f32 %v3202, %v3669
        %v3702 = vadd.f32 %v3208, %v3670
        %v3703 = vadd.f32 %v3212, %v3671
        %v3704 = vadd.f32 %v3218, %v3672
        %v3705 = vadd.f32 %v3222, %v3673
        %v3706 = vadd.f32 %v3228, %v3674
        %v3707 = vadd.f32 %v3232, %v3675
        %v3708 = vadd.f32 %v3238, %v3676
        %v3709 = vadd.f32 %v3242, %v3677
        %v3710 = vadd.f32 %v3248, %v3678
        %v3711 = vadd.f32 %v3252, %v3679
        %v3712 = vadd.f32 %v3258, %v3680
        %v3713 = vadd.f32 %v3262, %v3681
        %v3714 = vadd.f32 %v3268, %v3682
        %v3715 = vadd.f32 %v3272, %v3683
        %v3716 = vadd.f32 %v3278, %v3684
        %v3717 = vadd.f32 %v3282, %v3685
        %v3718 = vadd.f32 %v3288, %v3686
        %v3719 = vadd.f32 %v3292, %v3687
        %v3720 = vadd.f32 %v3298, %v3688
        %v3721 = vadd.f32 %v3302, %v3689
        %v3722 = vadd.f32 %v3308, %v3690
        %v3723 = vadd.f32 %v3312, %v3691
        %v3724 = vadd.f32 %v3318, %v3692
        %v3725 = vadd.f32 %v3322, %v3693
        %v3726 = vadd.f32 %v3328, %v3694
        %v3727 = vadd.f32 %v3332, %v3695
        %v3728 = vadd.f32 %v3338, %v3696
        %v3729 = vadd.f32 %v3342, %v3697
        %v3730 = vsel %vm428, %v3548, 0.0
        %v3731 = vsel %vm429, %v3551, 0.0
        %v3732 = vsel %vm430, %v3556, 0.0
        %v3733 = vsel %vm431, %v3559, 0.0
        %v3734 = vsel %vm432, %v3564, 0.0
        %v3735 = vsel %vm433, %v3567, 0.0
        %v3736 = vsel %vm434, %v3572, 0.0
        %v3737 = vsel %vm435, %v3575, 0.0
        %v3738 = vsel %vm436, %v3580, 0.0
        %v3739 = vsel %vm437, %v3583, 0.0
        %v3740 = vsel %vm438, %v3588, 0.0
        %v3741 = vsel %vm439, %v3591, 0.0
        %v3742 = vsel %vm440, %v3596, 0.0
        %v3743 = vsel %vm441, %v3599, 0.0
        %v3744 = vsel %vm442, %v3604, 0.0
        %v3745 = vsel %vm443, %v3607, 0.0
        %v3746 = vsel %vm444, %v3612, 0.0
        %v3747 = vsel %vm445, %v3615, 0.0
        %v3748 = vsel %vm446, %v3620, 0.0
        %v3749 = vsel %vm447, %v3623, 0.0
        %v3750 = vsel %vm448, %v3628, 0.0
        %v3751 = vsel %vm449, %v3631, 0.0
        %v3752 = vsel %vm450, %v3636, 0.0
        %v3753 = vsel %vm451, %v3639, 0.0
        %v3754 = vsel %vm452, %v3644, 0.0
        %v3755 = vsel %vm453, %v3647, 0.0
        %v3756 = vsel %vm454, %v3652, 0.0
        %v3757 = vsel %vm455, %v3655, 0.0
        %v3758 = vsel %vm456, %v3660, 0.0
        %v3759 = vsel %vm457, %v3663, 0.0
        %v3760 = vsel %vm458, %v3540, 0.0
        %v3761 = vsel %vm459, %v3543, 0.0
        %v3762 = vadd.f32 %v3698, %v3730
        %v3763 = vadd.f32 %v3699, %v3731
        %v3764 = vadd.f32 %v3700, %v3732
        %v3765 = vadd.f32 %v3701, %v3733
        %v3766 = vadd.f32 %v3702, %v3734
        %v3767 = vadd.f32 %v3703, %v3735
        %v3768 = vadd.f32 %v3704, %v3736
        %v3769 = vadd.f32 %v3705, %v3737
        %v3770 = vadd.f32 %v3706, %v3738
        %v3771 = vadd.f32 %v3707, %v3739
        %v3772 = vadd.f32 %v3708, %v3740
        %v3773 = vadd.f32 %v3709, %v3741
        %v3774 = vadd.f32 %v3710, %v3742
        %v3775 = vadd.f32 %v3711, %v3743
        %v3776 = vadd.f32 %v3712, %v3744
        %v3777 = vadd.f32 %v3713, %v3745
        %v3778 = vadd.f32 %v3714, %v3746
        %v3779 = vadd.f32 %v3715, %v3747
        %v3780 = vadd.f32 %v3716, %v3748
        %v3781 = vadd.f32 %v3717, %v3749
        %v3782 = vadd.f32 %v3718, %v3750
        %v3783 = vadd.f32 %v3719, %v3751
        %v3784 = vadd.f32 %v3720, %v3752
        %v3785 = vadd.f32 %v3721, %v3753
        %v3786 = vadd.f32 %v3722, %v3754
        %v3787 = vadd.f32 %v3723, %v3755
        %v3788 = vadd.f32 %v3724, %v3756
        %v3789 = vadd.f32 %v3725, %v3757
        %v3790 = vadd.f32 %v3726, %v3758
        %v3791 = vadd.f32 %v3727, %v3759
        %v3792 = vadd.f32 %v3728, %v3760
        %v3793 = vadd.f32 %v3729, %v3761
        %v3794 = vadd.f32 %v3762, %v327
        %v3795 = vadd.f32 %v3763, %v328
        %v3796 = vadd.f32 %v3764, %v329
        %v3797 = vadd.f32 %v3765, %v330
        %v3798 = vadd.f32 %v3766, %v331
        %v3799 = vadd.f32 %v3767, %v332
        %v3800 = vadd.f32 %v3768, %v333
        %v3801 = vadd.f32 %v3769, %v334
        %v3802 = vadd.f32 %v3770, %v335
        %v3803 = vadd.f32 %v3771, %v336
        %v3804 = vadd.f32 %v3772, %v337
        %v3805 = vadd.f32 %v3773, %v338
        %v3806 = vadd.f32 %v3774, %v339
        %v3807 = vadd.f32 %v3775, %v340
        %v3808 = vadd.f32 %v3776, %v341
        %v3809 = vadd.f32 %v3777, %v342
        %v3810 = vadd.f32 %v3778, %v343
        %v3811 = vadd.f32 %v3779, %v344
        %v3812 = vadd.f32 %v3780, %v345
        %v3813 = vadd.f32 %v3781, %v346
        %v3814 = vadd.f32 %v3782, %v347
        %v3815 = vadd.f32 %v3783, %v348
        %v3816 = vadd.f32 %v3784, %v349
        %v3817 = vadd.f32 %v3785, %v350
        %v3818 = vadd.f32 %v3786, %v351
        %v3819 = vadd.f32 %v3787, %v352
        %v3820 = vadd.f32 %v3788, %v353
        %v3821 = vadd.f32 %v3789, %v354
        %v3822 = vadd.f32 %v3790, %v355
        %v3823 = vadd.f32 %v3791, %v356
        %v3824 = vadd.f32 %v3792, %v357
        %v3825 = vadd.f32 %v3793, %v358
        %3826 = vst [vmem:[%s325] sm:$0xff] %v3794
        %3827 = vst [vmem:[%s325 + $0x8] sm:$0xff] %v3795
        %3828 = vst [vmem:[%s325 + $0x10] sm:$0xff] %v3796
        %3829 = vst [vmem:[%s325 + $0x18] sm:$0xff] %v3797
        %3830 = vst [vmem:[%s325 + $0x20] sm:$0xff] %v3798
        %3831 = vst [vmem:[%s325 + $0x28] sm:$0xff] %v3799
        %3832 = vst [vmem:[%s325 + $0x30] sm:$0xff] %v3800
        %3833 = vst [vmem:[%s325 + $0x38] sm:$0xff] %v3801
        %3834 = vst [vmem:[%s325 + $0x40] sm:$0xff] %v3802
        %3835 = vst [vmem:[%s325 + $0x48] sm:$0xff] %v3803
        %3836 = vst [vmem:[%s325 + $0x50] sm:$0xff] %v3804
        %3837 = vst [vmem:[%s325 + $0x58] sm:$0xff] %v3805
        %3838 = vst [vmem:[%s325 + $0x60] sm:$0xff] %v3806
        %3839 = vst [vmem:[%s325 + $0x68] sm:$0xff] %v3807
        %3840 = vst [vmem:[%s325 + $0x70] sm:$0xff] %v3808
        %3841 = vst [vmem:[%s325 + $0x78] sm:$0xff] %v3809
        %3842 = vst [vmem:[%s325 + $0x80] sm:$0xff] %v3810
        %3843 = vst [vmem:[%s325 + $0x88] sm:$0xff] %v3811
        %3844 = vst [vmem:[%s325 + $0x90] sm:$0xff] %v3812
        %3845 = vst [vmem:[%s325 + $0x98] sm:$0xff] %v3813
        %3846 = vst [vmem:[%s325 + $0xa0] sm:$0xff] %v3814
        %3847 = vst [vmem:[%s325 + $0xa8] sm:$0xff] %v3815
        %3848 = vst [vmem:[%s325 + $0xb0] sm:$0xff] %v3816
        %3849 = vst [vmem:[%s325 + $0xb8] sm:$0xff] %v3817
        %3850 = vst [vmem:[%s325 + $0xc0] sm:$0xff] %v3818
        %3851 = vst [vmem:[%s325 + $0xc8] sm:$0xff] %v3819
        %3852 = vst [vmem:[%s325 + $0xd0] sm:$0xff] %v3820
        %3853 = vst [vmem:[%s325 + $0xd8] sm:$0xff] %v3821
        %3854 = vst [vmem:[%s325 + $0xe0] sm:$0xff] %v3822
        %3855 = vst [vmem:[%s325 + $0xe8] sm:$0xff] %v3823
        %3856 = vst [vmem:[%s325 + $0xf0] sm:$0xff] %v3824
        %3857 = vst [vmem:[%s325 + $0xf8] sm:$0xff] %v3825
        %s3858 = sand.u32 %s185, 1
        %s3859 = scalar_lea.sflag [#allocation4], %s3858
        %s3860 = sand.u32 %s185, 1
        %s3861 = smul.addr %s3860, 256
        %s3862 = scalar_lea.vmem [#allocation8], %s3861
        // Predicated region
        $region61: #{tpu_custom_call.1} parent=47 // pred_check
          %p3863 = pneg %p195
        $region62: #{tpu_custom_call.1} parent=47 // pred_check_branch
          %3865 = sbr.rel (%p3863) target = $region64
        $region63: #{tpu_custom_call.1} parent=47 // pred_region
          %s3867 = ssub.s32 4096, 4096
          %3868 = vsyncadd %s3859, %s3867
          %s3869 = smul.addr %s25, 32
          %s3870 = smul.addr %s3869, 128
          %s3871 = scalar_lea.hbm %s7, %s3870
          %s3872 = sshll.u32 %s3862, 4
          %s3873 = int_to_ptr.vmem [resolvable:$true] %s3872
          %3878 = dma.vmem_to_hbm [thread:$0]  %s3873, 4096, %s3871, %s3859, 128, 128, 8
        $region64: #{tpu_custom_call.1} parent=47 // pred_fallthru
          _
      $region48: #{tpu_custom_call.1} parent=5 // pred_fallthru
        _
      %p3879 = scmp.le.s32.totalorder 2, %s20
      // Predicated region
      $region65: #{tpu_custom_call.1} parent=5 // pred_check
        %p3880 = pneg %p3879
      $region66: #{tpu_custom_call.1} parent=5 // pred_check_branch
        %3882 = sbr.rel (%p3880) target = $region68
      $region67: #{tpu_custom_call.1} parent=5 // pred_region
        %s3883 = ssub.s32 %s20, 2
        // Predicated region
        $region69: #{tpu_custom_call.1} parent=67 // pred_check
          %p3884 = pneg %p201
        $region70: #{tpu_custom_call.1} parent=67 // pred_check_branch
          %3886 = sbr.rel (%p3884) target = $region72
        $region71: #{tpu_custom_call.1} parent=67 // pred_region
          %s3887 = sand.u32 %s186, 1
          %s3888 = scalar_lea.sflag [#allocation4], %s3887
          %s3889 = sand.u32 %s186, 1
          %s3890 = smul.addr %s3889, 256
          %s3891 = scalar_lea.vmem [#allocation8], %s3890
          %3892 = dma.done %s3888, 4096
        $region72: #{tpu_custom_call.1} parent=67 // pred_fallthru
          _
      $region68: #{tpu_custom_call.1} parent=5 // pred_fallthru
        _
    $region6: #{tpu_custom_call.1} parent=1 // loop_footer
      %s24 = sadd.s32 1, %s20
    $region7: #{tpu_custom_call.1} parent=1 // loop_footer_branch
      %19 = sbr.rel target = $region3
    $region8: #{tpu_custom_call.1} parent=1 // loop_exit
      _
    %3893 = vsyncpa [#allocation3], 1
    %s3894 = scalar_lea.sflag [#allocation3], 1
    %3895 = vsyncpa %s3894, 1
    %3896 = vsyncpa [#allocation6], 1
    %3897 = vsyncpa [#allocation4], 1
    %s3898 = scalar_lea.sflag [#allocation4], 1
    %3899 = vsyncpa %s3898, 1

</llo_original>
